<compile_context>
chip_gen: v5e
topology: v5e:2x2
jax: 0.10.0
libtpu: 0.0.40
codegen_flags: <defaults>
</compile_context>

<pallas_src>
import functools

import jax
import jax.numpy as jnp
from jax.experimental import pallas as pl
from jax.experimental.pallas import tpu as pltpu


def _sigmoid(x):
    # sigmoid(x) == 0.5 * tanh(x / 2) + 0.5 : single EUP transcendental,
    # no VPU divide, no exp overflow.
    return 0.5 * jnp.tanh(0.5 * x) + 0.5


def _cnn_lstm_kernel(C, H, x_ref, cwb_ref, hww_ref, gw_ref, vec_ref, o_ref,
                     tsum_ref, tmax_ref):
    """One batch tile of TB examples (examples on lanes, window on sublanes).

    x_ref    : (D, W, TB) VMEM  input tile (leading grid dim squeezed); f32 or bf16
    cwb_ref  : (C, D+1)   SMEM  0.5 * [conv1d weight | bias]  (affine pre-fold)
    hww_ref  : (H, H)     VMEM  hw_fc weight with 0.5/W folded in
    gw_ref   : (6H, C)    VMEM  0.5 * fused LSTM input proj, rows [i_f,i_b,g_f,g_b,o_f,o_b]
    vec_ref  : (P, 1)     VMEM  packed [hw_b' | gate bias | cls weight | cls bias]
    o_ref    : (1, TB)    VMEM  lane-dense output row
    tsum_ref : (C, TB)    VMEM  scratch: sum_w tanh(0.5*(conv+b))   (f32)
    tmax_ref : (C, TB)    VMEM  scratch: max_w tanh(0.5*(conv+b))   (f32)
    """
    D = x_ref.shape[0]
    cdt = x_ref.dtype  # f32 (default) or bf16 (v6e/v7x opt-in)

    # ---- Conv1d(k=1) -> tanh(0.5*y) -> window sum & max, one output channel
    # at a time; the big (C, W, TB) activation tensor is never materialised and
    # each channel's reduced rows go straight to VMEM scratch (short live
    # ranges, no spills).  The sigmoid affine is NOT applied here (hoisted /
    # folded downstream).
    for c in range(C):
        acc = cwb_ref[c, 0].astype(cdt) * x_ref[0]
        for d in range(1, D):
            acc = acc + cwb_ref[c, d].astype(cdt) * x_ref[d]
        t_c = jnp.tanh(acc + cwb_ref[c, D].astype(cdt))            # (W, TB)
        tsum_ref[c:c + 1, :] = jnp.sum(t_c.astype(jnp.float32), axis=0,
                                       keepdims=True)              # f32 accum
        tmax_ref[c:c + 1, :] = jnp.max(t_c, axis=0,
                                       keepdims=True).astype(jnp.float32)

    tsum = tsum_ref[...]                                           # (C, TB)
    tmax = tmax_ref[...]                                           # (C, TB)

    # ---- Channel attention: hw_fc on the window mean + softmax over channels.
    # 1/W and the 0.5*x+0.5 sigmoid affine are folded into hww/hw_b in the
    # wrapper, so the raw tanh W-sum feeds the MXU directly.
    hwb = vec_ref[0:H]                                             # (H, 1)
    logits = jnp.dot(hww_ref[...], tsum,
                     preferred_element_type=jnp.float32) + hwb     # (H, TB)
    e = jnp.exp(logits - jnp.max(logits, axis=0, keepdims=True))
    attn = e * pl.reciprocal(jnp.sum(e, axis=0, keepdims=True), approx=True)

    # max_w(sigmoid(y)) = 0.5*max_w(tanh(0.5*y)) + 0.5 (monotone affine) and
    # attn >= 0 (softmax) so max_w(attn*s) == attn*max_w(s).  The 0.5 scale is
    # folded into gw (wrapper), leaving m = attn * (tmax + 1).
    # Dropout(p=0.01) is identity in eval mode.
    m = attn * (tmax + 1.0)                                        # (C, TB)

    # ---- 1-step bidirectional LSTM with zero init state: only the input
    # projection + biases contribute (forget gate multiplies c0 == 0).  Both
    # directions fused into one MXU matmul; gate rows pre-ordered so h lands
    # directly in cls layout (no concat).
    gb = vec_ref[H:7 * H]                                          # (6H, 1)
    gates = jnp.dot(gw_ref[...], m,
                    preferred_element_type=jnp.float32) + gb       # (6H, TB)
    i_g = _sigmoid(gates[0:2 * H])
    g_g = jnp.tanh(gates[2 * H:4 * H])
    o_g = _sigmoid(gates[4 * H:6 * H])
    h = jnp.tanh(o_g * jnp.tanh(i_g * g_g))                        # (2H, TB)

    # ---- cls: Linear(2H, 1) + Tanh as multiply + sublane reduction (an M=1
    # matmul is not worth an MXU pass).  Output row is lane dense & unmasked.
    clsw = vec_ref[7 * H:9 * H]                                    # (2H, 1)
    clsb = vec_ref[9 * H:9 * H + 1]                                # (1, 1)
    o_ref[...] = jnp.tanh(jnp.sum(clsw * h, axis=0, keepdims=True) + clsb)


def _pick_batch_tile(B):
    """Largest tile that still leaves >= 2 grid steps (v7x megacore), min 128."""
    for tb in (512, 256, 128):
        if B >= 2 * tb:
            return tb
    return 128


def init_params(key, dim=4, lstm_units=16):
    """Deterministic synthetic parameters matching the module's shapes."""
    C, H = 16, lstm_units
    ks = jax.random.split(key, 12)

    def u(k, shape, fan_in):
        bound = 1.0 / float(fan_in) ** 0.5
        return jax.random.uniform(k, shape, jnp.float32, -bound, bound)

    # W_hh_{fwd,bwd} are intentionally not materialised: with a length-1
    # sequence and zero initial state they never contribute to the output.
    return dict(
        conv_w=u(ks[0], (C, dim), dim),          # Conv1d weight (k=1) squeezed
        conv_b=u(ks[1], (C,), dim),
        hw_w=u(ks[2], (H, H), H),
        hw_b=u(ks[3], (H,), H),
        w_ih_f=u(ks[4], (4 * H, C), H),
        b_ih_f=u(ks[5], (4 * H,), H),
        b_hh_f=u(ks[6], (4 * H,), H),
        w_ih_b=u(ks[7], (4 * H, C), H),
        b_ih_b=u(ks[8], (4 * H,), H),
        b_hh_b=u(ks[9], (4 * H,), H),
        cls_w=u(ks[10], (1, 2 * H), 2 * H),
        cls_b=u(ks[11], (1,), 2 * H),
    )


@functools.partial(jax.jit,
                   static_argnames=("lstm_units", "batch_tile", "conv_in_bf16"))
def cnn_lstm_forward(x, params, lstm_units=16, batch_tile=None,
                     conv_in_bf16=False):
    B, W, D = x.shape
    H = lstm_units
    C = params["conv_w"].shape[0]
    assert C == H, "hw_fc requires conv out-channels == lstm_units (both 16)"
    # Pool window == W by construction (module uses the same `window` for the
    # input sequence length and MaxPool1d), so the LSTM sees exactly 1 step.

    TB = batch_tile if batch_tile is not None else _pick_batch_tile(B)
    B_pad = ((B + TB - 1) // TB) * TB
    nt = B_pad // TB

    # Pad batch, then lay x out as (nt, D, W, TB): window on sublanes, examples
    # on lanes, and each grid step's block is ONE contiguous HBM transfer.
    # This is a single fused XLA pad+transpose.
    # TODO(synk): if the upstream producer can emit (nt, D, W, TB) directly (or
    # a persistent dataset is pre-transposed once), this HBM round-trip --
    # roughly equal to the kernel's own input traffic -- disappears entirely.
    xp = x if B_pad == B else jnp.pad(x, ((0, B_pad - B), (0, 0), (0, 0)))
    x_t = jnp.transpose(xp.reshape(nt, TB, W, D), (0, 3, 2, 1))
    if conv_in_bf16:
        # v6e/v7x only (bf16 VALU + EUP): halves the dominant conv/tanh phase
        # and the x DMA.  Keep f32 on v5e and whenever tight tolerances matter.
        x_t = x_t.astype(jnp.bfloat16)

    # Conv1d weight + bias, pre-scaled by 0.5 (sigmoid-affine hoist), packed
    # for cheap SMEM scalar reads: (C, D+1).
    cwb = 0.5 * jnp.concatenate(
        [params["conv_w"], params["conv_b"].reshape(C, 1)], axis=1)

    # hw_fc with the window-mean 1/W and the 0.5*x+0.5 sigmoid affine folded in:
    #   logits = hw_w @ (0.5/W * Tsum + 0.5) + hw_b
    #          = (0.5/W * hw_w) @ Tsum + (hw_b + 0.5 * rowsum(hw_w)).
    hww = (0.5 / W) * params["hw_w"]
    hwb_folded = params["hw_b"] + 0.5 * jnp.sum(params["hw_w"], axis=1)

    # Fused bidirectional LSTM input projection.  PyTorch gate order in
    # weight_ih is [i, f, g, o]; forget gate dropped (c0 == 0).  Rows grouped
    # per gate as [fwd; bwd]; pre-scaled by 0.5 so the kernel feeds
    # attn*(tmax+1) straight into the matmul.
    wf, wb = params["w_ih_f"], params["w_ih_b"]
    gw = 0.5 * jnp.concatenate(
        [wf[0:H], wb[0:H], wf[2 * H:3 * H], wb[2 * H:3 * H],
         wf[3 * H:4 * H], wb[3 * H:4 * H]], axis=0)                # (6H, C)
    bfv = params["b_ih_f"] + params["b_hh_f"]
    bbv = params["b_ih_b"] + params["b_hh_b"]
    gb = jnp.concatenate(
        [bfv[0:H], bbv[0:H], bfv[2 * H:3 * H], bbv[2 * H:3 * H],
         bfv[3 * H:4 * H], bbv[3 * H:4 * H]], axis=0)              # (6H,)

    # Remaining bias-like vectors + cls weight packed into one column operand.
    n_vec = 9 * H + 1
    pad = (-n_vec) % 8
    vec = jnp.concatenate(
        [hwb_folded, gb, params["cls_w"].reshape(-1),
         params["cls_b"].reshape(-1),
         jnp.zeros((pad,), jnp.float32)]).reshape(n_vec + pad, 1)

    kernel = functools.partial(_cnn_lstm_kernel, C, H)

    out_row = pl.pallas_call(
        kernel,
        out_shape=jax.ShapeDtypeStruct((1, B_pad), jnp.float32),
        grid=(nt,),
        in_specs=[
            # Leading grid dim squeezed -> kernel sees (D, W, TB); the block is
            # a single contiguous DMA per step.
            pl.BlockSpec((None, D, W, TB), lambda t: (t, 0, 0, 0)),
            pl.BlockSpec(memory_space=pltpu.MemorySpace.SMEM),
            pl.BlockSpec((H, H), lambda t: (0, 0)),
            pl.BlockSpec((6 * H, C), lambda t: (0, 0)),
            pl.BlockSpec(vec.shape, lambda t: (0, 0)),
        ],
        out_specs=pl.BlockSpec((1, TB), lambda t: (0, t)),
        scratch_shapes=[pltpu.VMEM((C, TB), jnp.float32),
                        pltpu.VMEM((C, TB), jnp.float32)],
        compiler_params=pltpu.CompilerParams(
            dimension_semantics=("parallel",)),
    )(x_t, cwb, hww, gw, vec)

    return out_row[0, :B].reshape(B, 1)


@jax.jit
def reference_forward(x, params):
    """Plain-jnp transcription of the PyTorch forward (eval mode)."""
    H = params["hw_w"].shape[0]
    xt = jnp.swapaxes(x, 1, 2)                                     # (B, D, W)
    y = jnp.einsum("cd,bdw->bcw", params["conv_w"], xt)
    s = jax.nn.sigmoid(y + params["conv_b"][None, :, None])        # (B, C, W)
    avg = s.mean(axis=2)                                           # (B, C)
    attn = jax.nn.softmax(avg @ params["hw_w"].T + params["hw_b"], axis=-1)
    pooled = (s * attn[:, :, None]).max(axis=2)                    # (B, C)

    def lstm_dir(w_ih, b_ih, b_hh):
        g = pooled @ w_ih.T + b_ih + b_hh
        i = jax.nn.sigmoid(g[:, 0:H])
        gg = jnp.tanh(g[:, 2 * H:3 * H])
        o = jax.nn.sigmoid(g[:, 3 * H:4 * H])
        return o * jnp.tanh(i * gg)

    h = jnp.tanh(jnp.concatenate(
        [lstm_dir(params["w_ih_f"], params["b_ih_f"], params["b_hh_f"]),
         lstm_dir(params["w_ih_b"], params["b_ih_b"], params["b_hh_b"])],
        axis=-1))
    return jnp.tanh(h @ params["cls_w"].T + params["cls_b"])


if __name__ == "__main__":
    # Small shapes consistent with the module: MaxPool1d(kernel_size=window)
    # requires seq_len == window (the LSTM then sees a length-1 sequence).
    WINDOW, DIM, H, B = 128, 4, 16, 2

    kp, kx = jax.random.split(jax.random.PRNGKey(0))
    params = init_params(kp, dim=DIM, lstm_units=H)
    x = jax.random.normal(kx, (B, WINDOW, DIM), jnp.float32)

    out = cnn_lstm_forward(x, params, lstm_units=H)
    out = jax.block_until_ready(out)

    ref = jax.block_until_ready(reference_forward(x, params))
    assert out.shape == (B, 1), out.shape
    assert bool(jnp.all(jnp.isfinite(out)))
    # Tolerance covers the hardware-approximate reciprocal in the softmax
    # normaliser and MXU accumulation-order differences (f32 path).
    assert bool(jnp.allclose(out, ref, atol=5e-3, rtol=5e-3)), (
        float(jnp.max(jnp.abs(out - ref))))
    print("KERNEL_OK")
</pallas_src>

<mosaic_0001>
module attributes {stable_mosaic.version = 11 : i64} {
  func.func @_cnn_lstm_kernel(%arg0: i32, %arg1: memref<1x4x128x128xf32, #tpu.memory_space<vmem>>, %arg2: memref<16x5xf32, #tpu.memory_space<smem>>, %arg3: memref<16x16xf32, #tpu.memory_space<vmem>>, %arg4: memref<96x16xf32, #tpu.memory_space<vmem>>, %arg5: memref<152x1xf32, #tpu.memory_space<vmem>>, %arg6: memref<1x128xf32, #tpu.memory_space<vmem>>, %arg7: memref<16x128xf32, #tpu.memory_space<vmem>>, %arg8: memref<16x128xf32, #tpu.memory_space<vmem>>) attributes {dimension_semantics = [#tpu.dimension_semantics<parallel>], iteration_bounds = array<i64: 1>, scalar_prefetch = 0 : i64, scratch_operands = 2 : i64, tpu.core_type = #tpu.core_type<tc>, window_params = [{transform_indices = @transform_0, window_bounds = array<i64: 1, 4, 128, 128>}, {transform_indices = @transform_1, window_bounds = array<i64: 16, 5>}, {pipeline_mode = #tpu.pipeline_mode<synchronous>, transform_indices = @transform_2, window_bounds = array<i64: 16, 16>}, {pipeline_mode = #tpu.pipeline_mode<synchronous>, transform_indices = @transform_3, window_bounds = array<i64: 96, 16>}, {pipeline_mode = #tpu.pipeline_mode<synchronous>, transform_indices = @transform_4, window_bounds = array<i64: 152, 1>}, {transform_indices = @transform_5, window_bounds = array<i64: 1, 128>}]} {
    %c0 = arith.constant 0 : index
    %c0_0 = arith.constant 0 : index
    %0 = memref.load %arg2[%c0, %c0_0] : memref<16x5xf32, #tpu.memory_space<smem>>
    %c0_1 = arith.constant 0 : index
    %c0_2 = arith.constant 0 : index
    %c0_3 = arith.constant 0 : index
    %c0_4 = arith.constant 0 : index
    %1 = vector.load %arg1[%c0_1, %c0_2, %c0_3, %c0_4] : memref<1x4x128x128xf32, #tpu.memory_space<vmem>>, vector<1x1x128x128xf32>
    %2 = vector.shape_cast %1 : vector<1x1x128x128xf32> to vector<128x128xf32>
    %3 = vector.broadcast %0 : f32 to vector<128x128xf32>
    %4 = arith.mulf %3, %2 : vector<128x128xf32>
    %c0_5 = arith.constant 0 : index
    %c1 = arith.constant 1 : index
    %5 = memref.load %arg2[%c0_5, %c1] : memref<16x5xf32, #tpu.memory_space<smem>>
    %c0_6 = arith.constant 0 : index
    %c1_7 = arith.constant 1 : index
    %c0_8 = arith.constant 0 : index
    %c0_9 = arith.constant 0 : index
    %6 = vector.load %arg1[%c0_6, %c1_7, %c0_8, %c0_9] : memref<1x4x128x128xf32, #tpu.memory_space<vmem>>, vector<1x1x128x128xf32>
    %7 = vector.shape_cast %6 : vector<1x1x128x128xf32> to vector<128x128xf32>
    %8 = vector.broadcast %5 : f32 to vector<128x128xf32>
    %9 = arith.mulf %8, %7 : vector<128x128xf32>
    %10 = arith.addf %4, %9 : vector<128x128xf32>
    %c0_10 = arith.constant 0 : index
    %c2 = arith.constant 2 : index
    %11 = memref.load %arg2[%c0_10, %c2] : memref<16x5xf32, #tpu.memory_space<smem>>
    %c0_11 = arith.constant 0 : index
    %c2_12 = arith.constant 2 : index
    %c0_13 = arith.constant 0 : index
    %c0_14 = arith.constant 0 : index
    %12 = vector.load %arg1[%c0_11, %c2_12, %c0_13, %c0_14] : memref<1x4x128x128xf32, #tpu.memory_space<vmem>>, vector<1x1x128x128xf32>
    %13 = vector.shape_cast %12 : vector<1x1x128x128xf32> to vector<128x128xf32>
    %14 = vector.broadcast %11 : f32 to vector<128x128xf32>
    %15 = arith.mulf %14, %13 : vector<128x128xf32>
    %16 = arith.addf %10, %15 : vector<128x128xf32>
    %c0_15 = arith.constant 0 : index
    %c3 = arith.constant 3 : index
    %17 = memref.load %arg2[%c0_15, %c3] : memref<16x5xf32, #tpu.memory_space<smem>>
    %c0_16 = arith.constant 0 : index
    %c3_17 = arith.constant 3 : index
    %c0_18 = arith.constant 0 : index
    %c0_19 = arith.constant 0 : index
    %18 = vector.load %arg1[%c0_16, %c3_17, %c0_18, %c0_19] : memref<1x4x128x128xf32, #tpu.memory_space<vmem>>, vector<1x1x128x128xf32>
    %19 = vector.shape_cast %18 : vector<1x1x128x128xf32> to vector<128x128xf32>
    %20 = vector.broadcast %17 : f32 to vector<128x128xf32>
    %21 = arith.mulf %20, %19 : vector<128x128xf32>
    %22 = arith.addf %16, %21 : vector<128x128xf32>
    %c0_20 = arith.constant 0 : index
    %c4 = arith.constant 4 : index
    %23 = memref.load %arg2[%c0_20, %c4] : memref<16x5xf32, #tpu.memory_space<smem>>
    %24 = vector.broadcast %23 : f32 to vector<128x128xf32>
    %25 = arith.addf %22, %24 : vector<128x128xf32>
    %26 = math.tanh %25 : vector<128x128xf32>
    %cst = arith.constant dense<0.000000e+00> : vector<128xf32>
    %27 = vector.multi_reduction <add>, %26, %cst [0] : vector<128x128xf32> to vector<128xf32>
    %28 = vector.shape_cast %27 : vector<128xf32> to vector<1x128xf32>
    %c0_21 = arith.constant 0 : index
    %c0_22 = arith.constant 0 : index
    %29 = vector.load %arg7[%c0_21, %c0_22] : memref<16x128xf32, #tpu.memory_space<vmem>>, vector<1x128xf32>
    tpu.vector_store %arg7[%c0_21, %c0_22], %28 {strides = array<i32>} : memref<16x128xf32, #tpu.memory_space<vmem>>, vector<1x128xf32>,
    %cst_23 = arith.constant dense<0xFF800000> : vector<128xf32>
    %30 = vector.multi_reduction <maximumf>, %26, %cst_23 [0] : vector<128x128xf32> to vector<128xf32>
    %31 = vector.shape_cast %30 : vector<128xf32> to vector<1x128xf32>
    %c0_24 = arith.constant 0 : index
    %c0_25 = arith.constant 0 : index
    %32 = vector.load %arg8[%c0_24, %c0_25] : memref<16x128xf32, #tpu.memory_space<vmem>>, vector<1x128xf32>
    tpu.vector_store %arg8[%c0_24, %c0_25], %31 {strides = array<i32>} : memref<16x128xf32, #tpu.memory_space<vmem>>, vector<1x128xf32>,
    %c1_26 = arith.constant 1 : index
    %c0_27 = arith.constant 0 : index
    %33 = memref.load %arg2[%c1_26, %c0_27] : memref<16x5xf32, #tpu.memory_space<smem>>
    %c0_28 = arith.constant 0 : index
    %c0_29 = arith.constant 0 : index
    %c0_30 = arith.constant 0 : index
    %c0_31 = arith.constant 0 : index
    %34 = vector.load %arg1[%c0_28, %c0_29, %c0_30, %c0_31] : memref<1x4x128x128xf32, #tpu.memory_space<vmem>>, vector<1x1x128x128xf32>
    %35 = vector.shape_cast %34 : vector<1x1x128x128xf32> to vector<128x128xf32>
    %36 = vector.broadcast %33 : f32 to vector<128x128xf32>
    %37 = arith.mulf %36, %35 : vector<128x128xf32>
    %c1_32 = arith.constant 1 : index
    %c1_33 = arith.constant 1 : index
    %38 = memref.load %arg2[%c1_32, %c1_33] : memref<16x5xf32, #tpu.memory_space<smem>>
    %c0_34 = arith.constant 0 : index
    %c1_35 = arith.constant 1 : index
    %c0_36 = arith.constant 0 : index
    %c0_37 = arith.constant 0 : index
    %39 = vector.load %arg1[%c0_34, %c1_35, %c0_36, %c0_37] : memref<1x4x128x128xf32, #tpu.memory_space<vmem>>, vector<1x1x128x128xf32>
    %40 = vector.shape_cast %39 : vector<1x1x128x128xf32> to vector<128x128xf32>
    %41 = vector.broadcast %38 : f32 to vector<128x128xf32>
    %42 = arith.mulf %41, %40 : vector<128x128xf32>
    %43 = arith.addf %37, %42 : vector<128x128xf32>
    %c1_38 = arith.constant 1 : index
    %c2_39 = arith.constant 2 : index
    %44 = memref.load %arg2[%c1_38, %c2_39] : memref<16x5xf32, #tpu.memory_space<smem>>
    %c0_40 = arith.constant 0 : index
    %c2_41 = arith.constant 2 : index
    %c0_42 = arith.constant 0 : index
    %c0_43 = arith.constant 0 : index
    %45 = vector.load %arg1[%c0_40, %c2_41, %c0_42, %c0_43] : memref<1x4x128x128xf32, #tpu.memory_space<vmem>>, vector<1x1x128x128xf32>
    %46 = vector.shape_cast %45 : vector<1x1x128x128xf32> to vector<128x128xf32>
    %47 = vector.broadcast %44 : f32 to vector<128x128xf32>
    %48 = arith.mulf %47, %46 : vector<128x128xf32>
    %49 = arith.addf %43, %48 : vector<128x128xf32>
    %c1_44 = arith.constant 1 : index
    %c3_45 = arith.constant 3 : index
    %50 = memref.load %arg2[%c1_44, %c3_45] : memref<16x5xf32, #tpu.memory_space<smem>>
    %c0_46 = arith.constant 0 : index
    %c3_47 = arith.constant 3 : index
    %c0_48 = arith.constant 0 : index
    %c0_49 = arith.constant 0 : index
    %51 = vector.load %arg1[%c0_46, %c3_47, %c0_48, %c0_49] : memref<1x4x128x128xf32, #tpu.memory_space<vmem>>, vector<1x1x128x128xf32>
    %52 = vector.shape_cast %51 : vector<1x1x128x128xf32> to vector<128x128xf32>
    %53 = vector.broadcast %50 : f32 to vector<128x128xf32>
    %54 = arith.mulf %53, %52 : vector<128x128xf32>
    %55 = arith.addf %49, %54 : vector<128x128xf32>
    %c1_50 = arith.constant 1 : index
    %c4_51 = arith.constant 4 : index
    %56 = memref.load %arg2[%c1_50, %c4_51] : memref<16x5xf32, #tpu.memory_space<smem>>
    %57 = vector.broadcast %56 : f32 to vector<128x128xf32>
    %58 = arith.addf %55, %57 : vector<128x128xf32>
    %59 = math.tanh %58 : vector<128x128xf32>
    %cst_52 = arith.constant dense<0.000000e+00> : vector<128xf32>
    %60 = vector.multi_reduction <add>, %59, %cst_52 [0] : vector<128x128xf32> to vector<128xf32>
    %61 = vector.shape_cast %60 : vector<128xf32> to vector<1x128xf32>
    %c1_53 = arith.constant 1 : index
    %c0_54 = arith.constant 0 : index
    %62 = vector.load %arg7[%c1_53, %c0_54] : memref<16x128xf32, #tpu.memory_space<vmem>>, vector<1x128xf32>
    tpu.vector_store %arg7[%c1_53, %c0_54], %61 {strides = array<i32>} : memref<16x128xf32, #tpu.memory_space<vmem>>, vector<1x128xf32>,
    %cst_55 = arith.constant dense<0xFF800000> : vector<128xf32>
    %63 = vector.multi_reduction <maximumf>, %59, %cst_55 [0] : vector<128x128xf32> to vector<128xf32>
    %64 = vector.shape_cast %63 : vector<128xf32> to vector<1x128xf32>
    %c1_56 = arith.constant 1 : index
    %c0_57 = arith.constant 0 : index
    %65 = vector.load %arg8[%c1_56, %c0_57] : memref<16x128xf32, #tpu.memory_space<vmem>>, vector<1x128xf32>
    tpu.vector_store %arg8[%c1_56, %c0_57], %64 {strides = array<i32>} : memref<16x128xf32, #tpu.memory_space<vmem>>, vector<1x128xf32>,
    %c2_58 = arith.constant 2 : index
    %c0_59 = arith.constant 0 : index
    %66 = memref.load %arg2[%c2_58, %c0_59] : memref<16x5xf32, #tpu.memory_space<smem>>
    %c0_60 = arith.constant 0 : index
    %c0_61 = arith.constant 0 : index
    %c0_62 = arith.constant 0 : index
    %c0_63 = arith.constant 0 : index
    %67 = vector.load %arg1[%c0_60, %c0_61, %c0_62, %c0_63] : memref<1x4x128x128xf32, #tpu.memory_space<vmem>>, vector<1x1x128x128xf32>
    %68 = vector.shape_cast %67 : vector<1x1x128x128xf32> to vector<128x128xf32>
    %69 = vector.broadcast %66 : f32 to vector<128x128xf32>
    %70 = arith.mulf %69, %68 : vector<128x128xf32>
    %c2_64 = arith.constant 2 : index
    %c1_65 = arith.constant 1 : index
    %71 = memref.load %arg2[%c2_64, %c1_65] : memref<16x5xf32, #tpu.memory_space<smem>>
    %c0_66 = arith.constant 0 : index
    %c1_67 = arith.constant 1 : index
    %c0_68 = arith.constant 0 : index
    %c0_69 = arith.constant 0 : index
    %72 = vector.load %arg1[%c0_66, %c1_67, %c0_68, %c0_69] : memref<1x4x128x128xf32, #tpu.memory_space<vmem>>, vector<1x1x128x128xf32>
    %73 = vector.shape_cast %72 : vector<1x1x128x128xf32> to vector<128x128xf32>
    %74 = vector.broadcast %71 : f32 to vector<128x128xf32>
    %75 = arith.mulf %74, %73 : vector<128x128xf32>
    %76 = arith.addf %70, %75 : vector<128x128xf32>
    %c2_70 = arith.constant 2 : index
    %c2_71 = arith.constant 2 : index
    %77 = memref.load %arg2[%c2_70, %c2_71] : memref<16x5xf32, #tpu.memory_space<smem>>
    %c0_72 = arith.constant 0 : index
    %c2_73 = arith.constant 2 : index
    %c0_74 = arith.constant 0 : index
    %c0_75 = arith.constant 0 : index
    %78 = vector.load %arg1[%c0_72, %c2_73, %c0_74, %c0_75] : memref<1x4x128x128xf32, #tpu.memory_space<vmem>>, vector<1x1x128x128xf32>
    %79 = vector.shape_cast %78 : vector<1x1x128x128xf32> to vector<128x128xf32>
    %80 = vector.broadcast %77 : f32 to vector<128x128xf32>
    %81 = arith.mulf %80, %79 : vector<128x128xf32>
    %82 = arith.addf %76, %81 : vector<128x128xf32>
    %c2_76 = arith.constant 2 : index
    %c3_77 = arith.constant 3 : index
    %83 = memref.load %arg2[%c2_76, %c3_77] : memref<16x5xf32, #tpu.memory_space<smem>>
    %c0_78 = arith.constant 0 : index
    %c3_79 = arith.constant 3 : index
    %c0_80 = arith.constant 0 : index
    %c0_81 = arith.constant 0 : index
    %84 = vector.load %arg1[%c0_78, %c3_79, %c0_80, %c0_81] : memref<1x4x128x128xf32, #tpu.memory_space<vmem>>, vector<1x1x128x128xf32>
    %85 = vector.shape_cast %84 : vector<1x1x128x128xf32> to vector<128x128xf32>
    %86 = vector.broadcast %83 : f32 to vector<128x128xf32>
    %87 = arith.mulf %86, %85 : vector<128x128xf32>
    %88 = arith.addf %82, %87 : vector<128x128xf32>
    %c2_82 = arith.constant 2 : index
    %c4_83 = arith.constant 4 : index
    %89 = memref.load %arg2[%c2_82, %c4_83] : memref<16x5xf32, #tpu.memory_space<smem>>
    %90 = vector.broadcast %89 : f32 to vector<128x128xf32>
    %91 = arith.addf %88, %90 : vector<128x128xf32>
    %92 = math.tanh %91 : vector<128x128xf32>
    %cst_84 = arith.constant dense<0.000000e+00> : vector<128xf32>
    %93 = vector.multi_reduction <add>, %92, %cst_84 [0] : vector<128x128xf32> to vector<128xf32>
    %94 = vector.shape_cast %93 : vector<128xf32> to vector<1x128xf32>
    %c2_85 = arith.constant 2 : index
    %c0_86 = arith.constant 0 : index
    %95 = vector.load %arg7[%c2_85, %c0_86] : memref<16x128xf32, #tpu.memory_space<vmem>>, vector<1x128xf32>
    tpu.vector_store %arg7[%c2_85, %c0_86], %94 {strides = array<i32>} : memref<16x128xf32, #tpu.memory_space<vmem>>, vector<1x128xf32>,
    %cst_87 = arith.constant dense<0xFF800000> : vector<128xf32>
    %96 = vector.multi_reduction <maximumf>, %92, %cst_87 [0] : vector<128x128xf32> to vector<128xf32>
    %97 = vector.shape_cast %96 : vector<128xf32> to vector<1x128xf32>
    %c2_88 = arith.constant 2 : index
    %c0_89 = arith.constant 0 : index
    %98 = vector.load %arg8[%c2_88, %c0_89] : memref<16x128xf32, #tpu.memory_space<vmem>>, vector<1x128xf32>
    tpu.vector_store %arg8[%c2_88, %c0_89], %97 {strides = array<i32>} : memref<16x128xf32, #tpu.memory_space<vmem>>, vector<1x128xf32>,
    %c3_90 = arith.constant 3 : index
    %c0_91 = arith.constant 0 : index
    %99 = memref.load %arg2[%c3_90, %c0_91] : memref<16x5xf32, #tpu.memory_space<smem>>
    %c0_92 = arith.constant 0 : index
    %c0_93 = arith.constant 0 : index
    %c0_94 = arith.constant 0 : index
    %c0_95 = arith.constant 0 : index
    %100 = vector.load %arg1[%c0_92, %c0_93, %c0_94, %c0_95] : memref<1x4x128x128xf32, #tpu.memory_space<vmem>>, vector<1x1x128x128xf32>
    %101 = vector.shape_cast %100 : vector<1x1x128x128xf32> to vector<128x128xf32>
    %102 = vector.broadcast %99 : f32 to vector<128x128xf32>
    %103 = arith.mulf %102, %101 : vector<128x128xf32>
    %c3_96 = arith.constant 3 : index
    %c1_97 = arith.constant 1 : index
    %104 = memref.load %arg2[%c3_96, %c1_97] : memref<16x5xf32, #tpu.memory_space<smem>>
    %c0_98 = arith.constant 0 : index
    %c1_99 = arith.constant 1 : index
    %c0_100 = arith.constant 0 : index
    %c0_101 = arith.constant 0 : index
    %105 = vector.load %arg1[%c0_98, %c1_99, %c0_100, %c0_101] : memref<1x4x128x128xf32, #tpu.memory_space<vmem>>, vector<1x1x128x128xf32>
    %106 = vector.shape_cast %105 : vector<1x1x128x128xf32> to vector<128x128xf32>
    %107 = vector.broadcast %104 : f32 to vector<128x128xf32>
    %108 = arith.mulf %107, %106 : vector<128x128xf32>
    %109 = arith.addf %103, %108 : vector<128x128xf32>
    %c3_102 = arith.constant 3 : index
    %c2_103 = arith.constant 2 : index
    %110 = memref.load %arg2[%c3_102, %c2_103] : memref<16x5xf32, #tpu.memory_space<smem>>
    %c0_104 = arith.constant 0 : index
    %c2_105 = arith.constant 2 : index
    %c0_106 = arith.constant 0 : index
    %c0_107 = arith.constant 0 : index
    %111 = vector.load %arg1[%c0_104, %c2_105, %c0_106, %c0_107] : memref<1x4x128x128xf32, #tpu.memory_space<vmem>>, vector<1x1x128x128xf32>
    %112 = vector.shape_cast %111 : vector<1x1x128x128xf32> to vector<128x128xf32>
    %113 = vector.broadcast %110 : f32 to vector<128x128xf32>
    %114 = arith.mulf %113, %112 : vector<128x128xf32>
    %115 = arith.addf %109, %114 : vector<128x128xf32>
    %c3_108 = arith.constant 3 : index
    %c3_109 = arith.constant 3 : index
    %116 = memref.load %arg2[%c3_108, %c3_109] : memref<16x5xf32, #tpu.memory_space<smem>>
    %c0_110 = arith.constant 0 : index
    %c3_111 = arith.constant 3 : index
    %c0_112 = arith.constant 0 : index
    %c0_113 = arith.constant 0 : index
    %117 = vector.load %arg1[%c0_110, %c3_111, %c0_112, %c0_113] : memref<1x4x128x128xf32, #tpu.memory_space<vmem>>, vector<1x1x128x128xf32>
    %118 = vector.shape_cast %117 : vector<1x1x128x128xf32> to vector<128x128xf32>
    %119 = vector.broadcast %116 : f32 to vector<128x128xf32>
    %120 = arith.mulf %119, %118 : vector<128x128xf32>
    %121 = arith.addf %115, %120 : vector<128x128xf32>
    %c3_114 = arith.constant 3 : index
    %c4_115 = arith.constant 4 : index
    %122 = memref.load %arg2[%c3_114, %c4_115] : memref<16x5xf32, #tpu.memory_space<smem>>
    %123 = vector.broadcast %122 : f32 to vector<128x128xf32>
    %124 = arith.addf %121, %123 : vector<128x128xf32>
    %125 = math.tanh %124 : vector<128x128xf32>
    %cst_116 = arith.constant dense<0.000000e+00> : vector<128xf32>
    %126 = vector.multi_reduction <add>, %125, %cst_116 [0] : vector<128x128xf32> to vector<128xf32>
    %127 = vector.shape_cast %126 : vector<128xf32> to vector<1x128xf32>
    %c3_117 = arith.constant 3 : index
    %c0_118 = arith.constant 0 : index
    %128 = vector.load %arg7[%c3_117, %c0_118] : memref<16x128xf32, #tpu.memory_space<vmem>>, vector<1x128xf32>
    tpu.vector_store %arg7[%c3_117, %c0_118], %127 {strides = array<i32>} : memref<16x128xf32, #tpu.memory_space<vmem>>, vector<1x128xf32>,
    %cst_119 = arith.constant dense<0xFF800000> : vector<128xf32>
    %129 = vector.multi_reduction <maximumf>, %125, %cst_119 [0] : vector<128x128xf32> to vector<128xf32>
    %130 = vector.shape_cast %129 : vector<128xf32> to vector<1x128xf32>
    %c3_120 = arith.constant 3 : index
    %c0_121 = arith.constant 0 : index
    %131 = vector.load %arg8[%c3_120, %c0_121] : memref<16x128xf32, #tpu.memory_space<vmem>>, vector<1x128xf32>
    tpu.vector_store %arg8[%c3_120, %c0_121], %130 {strides = array<i32>} : memref<16x128xf32, #tpu.memory_space<vmem>>, vector<1x128xf32>,
    %c4_122 = arith.constant 4 : index
    %c0_123 = arith.constant 0 : index
    %132 = memref.load %arg2[%c4_122, %c0_123] : memref<16x5xf32, #tpu.memory_space<smem>>
    %c0_124 = arith.constant 0 : index
    %c0_125 = arith.constant 0 : index
    %c0_126 = arith.constant 0 : index
    %c0_127 = arith.constant 0 : index
    %133 = vector.load %arg1[%c0_124, %c0_125, %c0_126, %c0_127] : memref<1x4x128x128xf32, #tpu.memory_space<vmem>>, vector<1x1x128x128xf32>
    %134 = vector.shape_cast %133 : vector<1x1x128x128xf32> to vector<128x128xf32>
    %135 = vector.broadcast %132 : f32 to vector<128x128xf32>
    %136 = arith.mulf %135, %134 : vector<128x128xf32>
    %c4_128 = arith.constant 4 : index
    %c1_129 = arith.constant 1 : index
    %137 = memref.load %arg2[%c4_128, %c1_129] : memref<16x5xf32, #tpu.memory_space<smem>>
    %c0_130 = arith.constant 0 : index
    %c1_131 = arith.constant 1 : index
    %c0_132 = arith.constant 0 : index
    %c0_133 = arith.constant 0 : index
    %138 = vector.load %arg1[%c0_130, %c1_131, %c0_132, %c0_133] : memref<1x4x128x128xf32, #tpu.memory_space<vmem>>, vector<1x1x128x128xf32>
    %139 = vector.shape_cast %138 : vector<1x1x128x128xf32> to vector<128x128xf32>
    %140 = vector.broadcast %137 : f32 to vector<128x128xf32>
    %141 = arith.mulf %140, %139 : vector<128x128xf32>
    %142 = arith.addf %136, %141 : vector<128x128xf32>
    %c4_134 = arith.constant 4 : index
    %c2_135 = arith.constant 2 : index
    %143 = memref.load %arg2[%c4_134, %c2_135] : memref<16x5xf32, #tpu.memory_space<smem>>
    %c0_136 = arith.constant 0 : index
    %c2_137 = arith.constant 2 : index
    %c0_138 = arith.constant 0 : index
    %c0_139 = arith.constant 0 : index
    %144 = vector.load %arg1[%c0_136, %c2_137, %c0_138, %c0_139] : memref<1x4x128x128xf32, #tpu.memory_space<vmem>>, vector<1x1x128x128xf32>
    %145 = vector.shape_cast %144 : vector<1x1x128x128xf32> to vector<128x128xf32>
    %146 = vector.broadcast %143 : f32 to vector<128x128xf32>
    %147 = arith.mulf %146, %145 : vector<128x128xf32>
    %148 = arith.addf %142, %147 : vector<128x128xf32>
    %c4_140 = arith.constant 4 : index
    %c3_141 = arith.constant 3 : index
    %149 = memref.load %arg2[%c4_140, %c3_141] : memref<16x5xf32, #tpu.memory_space<smem>>
    %c0_142 = arith.constant 0 : index
    %c3_143 = arith.constant 3 : index
    %c0_144 = arith.constant 0 : index
    %c0_145 = arith.constant 0 : index
    %150 = vector.load %arg1[%c0_142, %c3_143, %c0_144, %c0_145] : memref<1x4x128x128xf32, #tpu.memory_space<vmem>>, vector<1x1x128x128xf32>
    %151 = vector.shape_cast %150 : vector<1x1x128x128xf32> to vector<128x128xf32>
    %152 = vector.broadcast %149 : f32 to vector<128x128xf32>
    %153 = arith.mulf %152, %151 : vector<128x128xf32>
    %154 = arith.addf %148, %153 : vector<128x128xf32>
    %c4_146 = arith.constant 4 : index
    %c4_147 = arith.constant 4 : index
    %155 = memref.load %arg2[%c4_146, %c4_147] : memref<16x5xf32, #tpu.memory_space<smem>>
    %156 = vector.broadcast %155 : f32 to vector<128x128xf32>
    %157 = arith.addf %154, %156 : vector<128x128xf32>
    %158 = math.tanh %157 : vector<128x128xf32>
    %cst_148 = arith.constant dense<0.000000e+00> : vector<128xf32>
    %159 = vector.multi_reduction <add>, %158, %cst_148 [0] : vector<128x128xf32> to vector<128xf32>
    %160 = vector.shape_cast %159 : vector<128xf32> to vector<1x128xf32>
    %c4_149 = arith.constant 4 : index
    %c0_150 = arith.constant 0 : index
    %161 = vector.load %arg7[%c4_149, %c0_150] : memref<16x128xf32, #tpu.memory_space<vmem>>, vector<1x128xf32>
    tpu.vector_store %arg7[%c4_149, %c0_150], %160 {strides = array<i32>} : memref<16x128xf32, #tpu.memory_space<vmem>>, vector<1x128xf32>,
    %cst_151 = arith.constant dense<0xFF800000> : vector<128xf32>
    %162 = vector.multi_reduction <maximumf>, %158, %cst_151 [0] : vector<128x128xf32> to vector<128xf32>
    %163 = vector.shape_cast %162 : vector<128xf32> to vector<1x128xf32>
    %c4_152 = arith.constant 4 : index
    %c0_153 = arith.constant 0 : index
    %164 = vector.load %arg8[%c4_152, %c0_153] : memref<16x128xf32, #tpu.memory_space<vmem>>, vector<1x128xf32>
    tpu.vector_store %arg8[%c4_152, %c0_153], %163 {strides = array<i32>} : memref<16x128xf32, #tpu.memory_space<vmem>>, vector<1x128xf32>,
    %c5 = arith.constant 5 : index
    %c0_154 = arith.constant 0 : index
    %165 = memref.load %arg2[%c5, %c0_154] : memref<16x5xf32, #tpu.memory_space<smem>>
    %c0_155 = arith.constant 0 : index
    %c0_156 = arith.constant 0 : index
    %c0_157 = arith.constant 0 : index
    %c0_158 = arith.constant 0 : index
    %166 = vector.load %arg1[%c0_155, %c0_156, %c0_157, %c0_158] : memref<1x4x128x128xf32, #tpu.memory_space<vmem>>, vector<1x1x128x128xf32>
    %167 = vector.shape_cast %166 : vector<1x1x128x128xf32> to vector<128x128xf32>
    %168 = vector.broadcast %165 : f32 to vector<128x128xf32>
    %169 = arith.mulf %168, %167 : vector<128x128xf32>
    %c5_159 = arith.constant 5 : index
    %c1_160 = arith.constant 1 : index
    %170 = memref.load %arg2[%c5_159, %c1_160] : memref<16x5xf32, #tpu.memory_space<smem>>
    %c0_161 = arith.constant 0 : index
    %c1_162 = arith.constant 1 : index
    %c0_163 = arith.constant 0 : index
    %c0_164 = arith.constant 0 : index
    %171 = vector.load %arg1[%c0_161, %c1_162, %c0_163, %c0_164] : memref<1x4x128x128xf32, #tpu.memory_space<vmem>>, vector<1x1x128x128xf32>
    %172 = vector.shape_cast %171 : vector<1x1x128x128xf32> to vector<128x128xf32>
    %173 = vector.broadcast %170 : f32 to vector<128x128xf32>
    %174 = arith.mulf %173, %172 : vector<128x128xf32>
    %175 = arith.addf %169, %174 : vector<128x128xf32>
    %c5_165 = arith.constant 5 : index
    %c2_166 = arith.constant 2 : index
    %176 = memref.load %arg2[%c5_165, %c2_166] : memref<16x5xf32, #tpu.memory_space<smem>>
    %c0_167 = arith.constant 0 : index
    %c2_168 = arith.constant 2 : index
    %c0_169 = arith.constant 0 : index
    %c0_170 = arith.constant 0 : index
    %177 = vector.load %arg1[%c0_167, %c2_168, %c0_169, %c0_170] : memref<1x4x128x128xf32, #tpu.memory_space<vmem>>, vector<1x1x128x128xf32>
    %178 = vector.shape_cast %177 : vector<1x1x128x128xf32> to vector<128x128xf32>
    %179 = vector.broadcast %176 : f32 to vector<128x128xf32>
    %180 = arith.mulf %179, %178 : vector<128x128xf32>
    %181 = arith.addf %175, %180 : vector<128x128xf32>
    %c5_171 = arith.constant 5 : index
    %c3_172 = arith.constant 3 : index
    %182 = memref.load %arg2[%c5_171, %c3_172] : memref<16x5xf32, #tpu.memory_space<smem>>
    %c0_173 = arith.constant 0 : index
    %c3_174 = arith.constant 3 : index
    %c0_175 = arith.constant 0 : index
    %c0_176 = arith.constant 0 : index
    %183 = vector.load %arg1[%c0_173, %c3_174, %c0_175, %c0_176] : memref<1x4x128x128xf32, #tpu.memory_space<vmem>>, vector<1x1x128x128xf32>
    %184 = vector.shape_cast %183 : vector<1x1x128x128xf32> to vector<128x128xf32>
    %185 = vector.broadcast %182 : f32 to vector<128x128xf32>
    %186 = arith.mulf %185, %184 : vector<128x128xf32>
    %187 = arith.addf %181, %186 : vector<128x128xf32>
    %c5_177 = arith.constant 5 : index
    %c4_178 = arith.constant 4 : index
    %188 = memref.load %arg2[%c5_177, %c4_178] : memref<16x5xf32, #tpu.memory_space<smem>>
    %189 = vector.broadcast %188 : f32 to vector<128x128xf32>
    %190 = arith.addf %187, %189 : vector<128x128xf32>
    %191 = math.tanh %190 : vector<128x128xf32>
    %cst_179 = arith.constant dense<0.000000e+00> : vector<128xf32>
    %192 = vector.multi_reduction <add>, %191, %cst_179 [0] : vector<128x128xf32> to vector<128xf32>
    %193 = vector.shape_cast %192 : vector<128xf32> to vector<1x128xf32>
    %c5_180 = arith.constant 5 : index
    %c0_181 = arith.constant 0 : index
    %194 = vector.load %arg7[%c5_180, %c0_181] : memref<16x128xf32, #tpu.memory_space<vmem>>, vector<1x128xf32>
    tpu.vector_store %arg7[%c5_180, %c0_181], %193 {strides = array<i32>} : memref<16x128xf32, #tpu.memory_space<vmem>>, vector<1x128xf32>,
    %cst_182 = arith.constant dense<0xFF800000> : vector<128xf32>
    %195 = vector.multi_reduction <maximumf>, %191, %cst_182 [0] : vector<128x128xf32> to vector<128xf32>
    %196 = vector.shape_cast %195 : vector<128xf32> to vector<1x128xf32>
    %c5_183 = arith.constant 5 : index
    %c0_184 = arith.constant 0 : index
    %197 = vector.load %arg8[%c5_183, %c0_184] : memref<16x128xf32, #tpu.memory_space<vmem>>, vector<1x128xf32>
    tpu.vector_store %arg8[%c5_183, %c0_184], %196 {strides = array<i32>} : memref<16x128xf32, #tpu.memory_space<vmem>>, vector<1x128xf32>,
    %c6 = arith.constant 6 : index
    %c0_185 = arith.constant 0 : index
    %198 = memref.load %arg2[%c6, %c0_185] : memref<16x5xf32, #tpu.memory_space<smem>>
    %c0_186 = arith.constant 0 : index
    %c0_187 = arith.constant 0 : index
    %c0_188 = arith.constant 0 : index
    %c0_189 = arith.constant 0 : index
    %199 = vector.load %arg1[%c0_186, %c0_187, %c0_188, %c0_189] : memref<1x4x128x128xf32, #tpu.memory_space<vmem>>, vector<1x1x128x128xf32>
    %200 = vector.shape_cast %199 : vector<1x1x128x128xf32> to vector<128x128xf32>
    %201 = vector.broadcast %198 : f32 to vector<128x128xf32>
    %202 = arith.mulf %201, %200 : vector<128x128xf32>
    %c6_190 = arith.constant 6 : index
    %c1_191 = arith.constant 1 : index
    %203 = memref.load %arg2[%c6_190, %c1_191] : memref<16x5xf32, #tpu.memory_space<smem>>
    %c0_192 = arith.constant 0 : index
    %c1_193 = arith.constant 1 : index
    %c0_194 = arith.constant 0 : index
    %c0_195 = arith.constant 0 : index
    %204 = vector.load %arg1[%c0_192, %c1_193, %c0_194, %c0_195] : memref<1x4x128x128xf32, #tpu.memory_space<vmem>>, vector<1x1x128x128xf32>
    %205 = vector.shape_cast %204 : vector<1x1x128x128xf32> to vector<128x128xf32>
    %206 = vector.broadcast %203 : f32 to vector<128x128xf32>
    %207 = arith.mulf %206, %205 : vector<128x128xf32>
    %208 = arith.addf %202, %207 : vector<128x128xf32>
    %c6_196 = arith.constant 6 : index
    %c2_197 = arith.constant 2 : index
    %209 = memref.load %arg2[%c6_196, %c2_197] : memref<16x5xf32, #tpu.memory_space<smem>>
    %c0_198 = arith.constant 0 : index
    %c2_199 = arith.constant 2 : index
    %c0_200 = arith.constant 0 : index
    %c0_201 = arith.constant 0 : index
    %210 = vector.load %arg1[%c0_198, %c2_199, %c0_200, %c0_201] : memref<1x4x128x128xf32, #tpu.memory_space<vmem>>, vector<1x1x128x128xf32>
    %211 = vector.shape_cast %210 : vector<1x1x128x128xf32> to vector<128x128xf32>
    %212 = vector.broadcast %209 : f32 to vector<128x128xf32>
    %213 = arith.mulf %212, %211 : vector<128x128xf32>
    %214 = arith.addf %208, %213 : vector<128x128xf32>
    %c6_202 = arith.constant 6 : index
    %c3_203 = arith.constant 3 : index
    %215 = memref.load %arg2[%c6_202, %c3_203] : memref<16x5xf32, #tpu.memory_space<smem>>
    %c0_204 = arith.constant 0 : index
    %c3_205 = arith.constant 3 : index
    %c0_206 = arith.constant 0 : index
    %c0_207 = arith.constant 0 : index
    %216 = vector.load %arg1[%c0_204, %c3_205, %c0_206, %c0_207] : memref<1x4x128x128xf32, #tpu.memory_space<vmem>>, vector<1x1x128x128xf32>
    %217 = vector.shape_cast %216 : vector<1x1x128x128xf32> to vector<128x128xf32>
    %218 = vector.broadcast %215 : f32 to vector<128x128xf32>
    %219 = arith.mulf %218, %217 : vector<128x128xf32>
    %220 = arith.addf %214, %219 : vector<128x128xf32>
    %c6_208 = arith.constant 6 : index
    %c4_209 = arith.constant 4 : index
    %221 = memref.load %arg2[%c6_208, %c4_209] : memref<16x5xf32, #tpu.memory_space<smem>>
    %222 = vector.broadcast %221 : f32 to vector<128x128xf32>
    %223 = arith.addf %220, %222 : vector<128x128xf32>
    %224 = math.tanh %223 : vector<128x128xf32>
    %cst_210 = arith.constant dense<0.000000e+00> : vector<128xf32>
    %225 = vector.multi_reduction <add>, %224, %cst_210 [0] : vector<128x128xf32> to vector<128xf32>
    %226 = vector.shape_cast %225 : vector<128xf32> to vector<1x128xf32>
    %c6_211 = arith.constant 6 : index
    %c0_212 = arith.constant 0 : index
    %227 = vector.load %arg7[%c6_211, %c0_212] : memref<16x128xf32, #tpu.memory_space<vmem>>, vector<1x128xf32>
    tpu.vector_store %arg7[%c6_211, %c0_212], %226 {strides = array<i32>} : memref<16x128xf32, #tpu.memory_space<vmem>>, vector<1x128xf32>,
    %cst_213 = arith.constant dense<0xFF800000> : vector<128xf32>
    %228 = vector.multi_reduction <maximumf>, %224, %cst_213 [0] : vector<128x128xf32> to vector<128xf32>
    %229 = vector.shape_cast %228 : vector<128xf32> to vector<1x128xf32>
    %c6_214 = arith.constant 6 : index
    %c0_215 = arith.constant 0 : index
    %230 = vector.load %arg8[%c6_214, %c0_215] : memref<16x128xf32, #tpu.memory_space<vmem>>, vector<1x128xf32>
    tpu.vector_store %arg8[%c6_214, %c0_215], %229 {strides = array<i32>} : memref<16x128xf32, #tpu.memory_space<vmem>>, vector<1x128xf32>,
    %c7 = arith.constant 7 : index
    %c0_216 = arith.constant 0 : index
    %231 = memref.load %arg2[%c7, %c0_216] : memref<16x5xf32, #tpu.memory_space<smem>>
    %c0_217 = arith.constant 0 : index
    %c0_218 = arith.constant 0 : index
    %c0_219 = arith.constant 0 : index
    %c0_220 = arith.constant 0 : index
    %232 = vector.load %arg1[%c0_217, %c0_218, %c0_219, %c0_220] : memref<1x4x128x128xf32, #tpu.memory_space<vmem>>, vector<1x1x128x128xf32>
    %233 = vector.shape_cast %232 : vector<1x1x128x128xf32> to vector<128x128xf32>
    %234 = vector.broadcast %231 : f32 to vector<128x128xf32>
    %235 = arith.mulf %234, %233 : vector<128x128xf32>
    %c7_221 = arith.constant 7 : index
    %c1_222 = arith.constant 1 : index
    %236 = memref.load %arg2[%c7_221, %c1_222] : memref<16x5xf32, #tpu.memory_space<smem>>
    %c0_223 = arith.constant 0 : index
    %c1_224 = arith.constant 1 : index
    %c0_225 = arith.constant 0 : index
    %c0_226 = arith.constant 0 : index
    %237 = vector.load %arg1[%c0_223, %c1_224, %c0_225, %c0_226] : memref<1x4x128x128xf32, #tpu.memory_space<vmem>>, vector<1x1x128x128xf32>
    %238 = vector.shape_cast %237 : vector<1x1x128x128xf32> to vector<128x128xf32>
    %239 = vector.broadcast %236 : f32 to vector<128x128xf32>
    %240 = arith.mulf %239, %238 : vector<128x128xf32>
    %241 = arith.addf %235, %240 : vector<128x128xf32>
    %c7_227 = arith.constant 7 : index
    %c2_228 = arith.constant 2 : index
    %242 = memref.load %arg2[%c7_227, %c2_228] : memref<16x5xf32, #tpu.memory_space<smem>>
    %c0_229 = arith.constant 0 : index
    %c2_230 = arith.constant 2 : index
    %c0_231 = arith.constant 0 : index
    %c0_232 = arith.constant 0 : index
    %243 = vector.load %arg1[%c0_229, %c2_230, %c0_231, %c0_232] : memref<1x4x128x128xf32, #tpu.memory_space<vmem>>, vector<1x1x128x128xf32>
    %244 = vector.shape_cast %243 : vector<1x1x128x128xf32> to vector<128x128xf32>
    %245 = vector.broadcast %242 : f32 to vector<128x128xf32>
    %246 = arith.mulf %245, %244 : vector<128x128xf32>
    %247 = arith.addf %241, %246 : vector<128x128xf32>
    %c7_233 = arith.constant 7 : index
    %c3_234 = arith.constant 3 : index
    %248 = memref.load %arg2[%c7_233, %c3_234] : memref<16x5xf32, #tpu.memory_space<smem>>
    %c0_235 = arith.constant 0 : index
    %c3_236 = arith.constant 3 : index
    %c0_237 = arith.constant 0 : index
    %c0_238 = arith.constant 0 : index
    %249 = vector.load %arg1[%c0_235, %c3_236, %c0_237, %c0_238] : memref<1x4x128x128xf32, #tpu.memory_space<vmem>>, vector<1x1x128x128xf32>
    %250 = vector.shape_cast %249 : vector<1x1x128x128xf32> to vector<128x128xf32>
    %251 = vector.broadcast %248 : f32 to vector<128x128xf32>
    %252 = arith.mulf %251, %250 : vector<128x128xf32>
    %253 = arith.addf %247, %252 : vector<128x128xf32>
    %c7_239 = arith.constant 7 : index
    %c4_240 = arith.constant 4 : index
    %254 = memref.load %arg2[%c7_239, %c4_240] : memref<16x5xf32, #tpu.memory_space<smem>>
    %255 = vector.broadcast %254 : f32 to vector<128x128xf32>
    %256 = arith.addf %253, %255 : vector<128x128xf32>
    %257 = math.tanh %256 : vector<128x128xf32>
    %cst_241 = arith.constant dense<0.000000e+00> : vector<128xf32>
    %258 = vector.multi_reduction <add>, %257, %cst_241 [0] : vector<128x128xf32> to vector<128xf32>
    %259 = vector.shape_cast %258 : vector<128xf32> to vector<1x128xf32>
    %c7_242 = arith.constant 7 : index
    %c0_243 = arith.constant 0 : index
    %260 = vector.load %arg7[%c7_242, %c0_243] : memref<16x128xf32, #tpu.memory_space<vmem>>, vector<1x128xf32>
    tpu.vector_store %arg7[%c7_242, %c0_243], %259 {strides = array<i32>} : memref<16x128xf32, #tpu.memory_space<vmem>>, vector<1x128xf32>,
    %cst_244 = arith.constant dense<0xFF800000> : vector<128xf32>
    %261 = vector.multi_reduction <maximumf>, %257, %cst_244 [0] : vector<128x128xf32> to vector<128xf32>
    %262 = vector.shape_cast %261 : vector<128xf32> to vector<1x128xf32>
    %c7_245 = arith.constant 7 : index
    %c0_246 = arith.constant 0 : index
    %263 = vector.load %arg8[%c7_245, %c0_246] : memref<16x128xf32, #tpu.memory_space<vmem>>, vector<1x128xf32>
    tpu.vector_store %arg8[%c7_245, %c0_246], %262 {strides = array<i32>} : memref<16x128xf32, #tpu.memory_space<vmem>>, vector<1x128xf32>,
    %c8 = arith.constant 8 : index
    %c0_247 = arith.constant 0 : index
    %264 = memref.load %arg2[%c8, %c0_247] : memref<16x5xf32, #tpu.memory_space<smem>>
    %c0_248 = arith.constant 0 : index
    %c0_249 = arith.constant 0 : index
    %c0_250 = arith.constant 0 : index
    %c0_251 = arith.constant 0 : index
    %265 = vector.load %arg1[%c0_248, %c0_249, %c0_250, %c0_251] : memref<1x4x128x128xf32, #tpu.memory_space<vmem>>, vector<1x1x128x128xf32>
    %266 = vector.shape_cast %265 : vector<1x1x128x128xf32> to vector<128x128xf32>
    %267 = vector.broadcast %264 : f32 to vector<128x128xf32>
    %268 = arith.mulf %267, %266 : vector<128x128xf32>
    %c8_252 = arith.constant 8 : index
    %c1_253 = arith.constant 1 : index
    %269 = memref.load %arg2[%c8_252, %c1_253] : memref<16x5xf32, #tpu.memory_space<smem>>
    %c0_254 = arith.constant 0 : index
    %c1_255 = arith.constant 1 : index
    %c0_256 = arith.constant 0 : index
    %c0_257 = arith.constant 0 : index
    %270 = vector.load %arg1[%c0_254, %c1_255, %c0_256, %c0_257] : memref<1x4x128x128xf32, #tpu.memory_space<vmem>>, vector<1x1x128x128xf32>
    %271 = vector.shape_cast %270 : vector<1x1x128x128xf32> to vector<128x128xf32>
    %272 = vector.broadcast %269 : f32 to vector<128x128xf32>
    %273 = arith.mulf %272, %271 : vector<128x128xf32>
    %274 = arith.addf %268, %273 : vector<128x128xf32>
    %c8_258 = arith.constant 8 : index
    %c2_259 = arith.constant 2 : index
    %275 = memref.load %arg2[%c8_258, %c2_259] : memref<16x5xf32, #tpu.memory_space<smem>>
    %c0_260 = arith.constant 0 : index
    %c2_261 = arith.constant 2 : index
    %c0_262 = arith.constant 0 : index
    %c0_263 = arith.constant 0 : index
    %276 = vector.load %arg1[%c0_260, %c2_261, %c0_262, %c0_263] : memref<1x4x128x128xf32, #tpu.memory_space<vmem>>, vector<1x1x128x128xf32>
    %277 = vector.shape_cast %276 : vector<1x1x128x128xf32> to vector<128x128xf32>
    %278 = vector.broadcast %275 : f32 to vector<128x128xf32>
    %279 = arith.mulf %278, %277 : vector<128x128xf32>
    %280 = arith.addf %274, %279 : vector<128x128xf32>
    %c8_264 = arith.constant 8 : index
    %c3_265 = arith.constant 3 : index
    %281 = memref.load %arg2[%c8_264, %c3_265] : memref<16x5xf32, #tpu.memory_space<smem>>
    %c0_266 = arith.constant 0 : index
    %c3_267 = arith.constant 3 : index
    %c0_268 = arith.constant 0 : index
    %c0_269 = arith.constant 0 : index
    %282 = vector.load %arg1[%c0_266, %c3_267, %c0_268, %c0_269] : memref<1x4x128x128xf32, #tpu.memory_space<vmem>>, vector<1x1x128x128xf32>
    %283 = vector.shape_cast %282 : vector<1x1x128x128xf32> to vector<128x128xf32>
    %284 = vector.broadcast %281 : f32 to vector<128x128xf32>
    %285 = arith.mulf %284, %283 : vector<128x128xf32>
    %286 = arith.addf %280, %285 : vector<128x128xf32>
    %c8_270 = arith.constant 8 : index
    %c4_271 = arith.constant 4 : index
    %287 = memref.load %arg2[%c8_270, %c4_271] : memref<16x5xf32, #tpu.memory_space<smem>>
    %288 = vector.broadcast %287 : f32 to vector<128x128xf32>
    %289 = arith.addf %286, %288 : vector<128x128xf32>
    %290 = math.tanh %289 : vector<128x128xf32>
    %cst_272 = arith.constant dense<0.000000e+00> : vector<128xf32>
    %291 = vector.multi_reduction <add>, %290, %cst_272 [0] : vector<128x128xf32> to vector<128xf32>
    %292 = vector.shape_cast %291 : vector<128xf32> to vector<1x128xf32>
    %c8_273 = arith.constant 8 : index
    %c0_274 = arith.constant 0 : index
    %293 = vector.load %arg7[%c8_273, %c0_274] : memref<16x128xf32, #tpu.memory_space<vmem>>, vector<1x128xf32>
    tpu.vector_store %arg7[%c8_273, %c0_274], %292 {strides = array<i32>} : memref<16x128xf32, #tpu.memory_space<vmem>>, vector<1x128xf32>,
    %cst_275 = arith.constant dense<0xFF800000> : vector<128xf32>
    %294 = vector.multi_reduction <maximumf>, %290, %cst_275 [0] : vector<128x128xf32> to vector<128xf32>
    %295 = vector.shape_cast %294 : vector<128xf32> to vector<1x128xf32>
    %c8_276 = arith.constant 8 : index
    %c0_277 = arith.constant 0 : index
    %296 = vector.load %arg8[%c8_276, %c0_277] : memref<16x128xf32, #tpu.memory_space<vmem>>, vector<1x128xf32>
    tpu.vector_store %arg8[%c8_276, %c0_277], %295 {strides = array<i32>} : memref<16x128xf32, #tpu.memory_space<vmem>>, vector<1x128xf32>,
    %c9 = arith.constant 9 : index
    %c0_278 = arith.constant 0 : index
    %297 = memref.load %arg2[%c9, %c0_278] : memref<16x5xf32, #tpu.memory_space<smem>>
    %c0_279 = arith.constant 0 : index
    %c0_280 = arith.constant 0 : index
    %c0_281 = arith.constant 0 : index
    %c0_282 = arith.constant 0 : index
    %298 = vector.load %arg1[%c0_279, %c0_280, %c0_281, %c0_282] : memref<1x4x128x128xf32, #tpu.memory_space<vmem>>, vector<1x1x128x128xf32>
    %299 = vector.shape_cast %298 : vector<1x1x128x128xf32> to vector<128x128xf32>
    %300 = vector.broadcast %297 : f32 to vector<128x128xf32>
    %301 = arith.mulf %300, %299 : vector<128x128xf32>
    %c9_283 = arith.constant 9 : index
    %c1_284 = arith.constant 1 : index
    %302 = memref.load %arg2[%c9_283, %c1_284] : memref<16x5xf32, #tpu.memory_space<smem>>
    %c0_285 = arith.constant 0 : index
    %c1_286 = arith.constant 1 : index
    %c0_287 = arith.constant 0 : index
    %c0_288 = arith.constant 0 : index
    %303 = vector.load %arg1[%c0_285, %c1_286, %c0_287, %c0_288] : memref<1x4x128x128xf32, #tpu.memory_space<vmem>>, vector<1x1x128x128xf32>
    %304 = vector.shape_cast %303 : vector<1x1x128x128xf32> to vector<128x128xf32>
    %305 = vector.broadcast %302 : f32 to vector<128x128xf32>
    %306 = arith.mulf %305, %304 : vector<128x128xf32>
    %307 = arith.addf %301, %306 : vector<128x128xf32>
    %c9_289 = arith.constant 9 : index
    %c2_290 = arith.constant 2 : index
    %308 = memref.load %arg2[%c9_289, %c2_290] : memref<16x5xf32, #tpu.memory_space<smem>>
    %c0_291 = arith.constant 0 : index
    %c2_292 = arith.constant 2 : index
    %c0_293 = arith.constant 0 : index
    %c0_294 = arith.constant 0 : index
    %309 = vector.load %arg1[%c0_291, %c2_292, %c0_293, %c0_294] : memref<1x4x128x128xf32, #tpu.memory_space<vmem>>, vector<1x1x128x128xf32>
    %310 = vector.shape_cast %309 : vector<1x1x128x128xf32> to vector<128x128xf32>
    %311 = vector.broadcast %308 : f32 to vector<128x128xf32>
    %312 = arith.mulf %311, %310 : vector<128x128xf32>
    %313 = arith.addf %307, %312 : vector<128x128xf32>
    %c9_295 = arith.constant 9 : index
    %c3_296 = arith.constant 3 : index
    %314 = memref.load %arg2[%c9_295, %c3_296] : memref<16x5xf32, #tpu.memory_space<smem>>
    %c0_297 = arith.constant 0 : index
    %c3_298 = arith.constant 3 : index
    %c0_299 = arith.constant 0 : index
    %c0_300 = arith.constant 0 : index
    %315 = vector.load %arg1[%c0_297, %c3_298, %c0_299, %c0_300] : memref<1x4x128x128xf32, #tpu.memory_space<vmem>>, vector<1x1x128x128xf32>
    %316 = vector.shape_cast %315 : vector<1x1x128x128xf32> to vector<128x128xf32>
    %317 = vector.broadcast %314 : f32 to vector<128x128xf32>
    %318 = arith.mulf %317, %316 : vector<128x128xf32>
    %319 = arith.addf %313, %318 : vector<128x128xf32>
    %c9_301 = arith.constant 9 : index
    %c4_302 = arith.constant 4 : index
    %320 = memref.load %arg2[%c9_301, %c4_302] : memref<16x5xf32, #tpu.memory_space<smem>>
    %321 = vector.broadcast %320 : f32 to vector<128x128xf32>
    %322 = arith.addf %319, %321 : vector<128x128xf32>
    %323 = math.tanh %322 : vector<128x128xf32>
    %cst_303 = arith.constant dense<0.000000e+00> : vector<128xf32>
    %324 = vector.multi_reduction <add>, %323, %cst_303 [0] : vector<128x128xf32> to vector<128xf32>
    %325 = vector.shape_cast %324 : vector<128xf32> to vector<1x128xf32>
    %c9_304 = arith.constant 9 : index
    %c0_305 = arith.constant 0 : index
    %326 = vector.load %arg7[%c9_304, %c0_305] : memref<16x128xf32, #tpu.memory_space<vmem>>, vector<1x128xf32>
    tpu.vector_store %arg7[%c9_304, %c0_305], %325 {strides = array<i32>} : memref<16x128xf32, #tpu.memory_space<vmem>>, vector<1x128xf32>,
    %cst_306 = arith.constant dense<0xFF800000> : vector<128xf32>
    %327 = vector.multi_reduction <maximumf>, %323, %cst_306 [0] : vector<128x128xf32> to vector<128xf32>
    %328 = vector.shape_cast %327 : vector<128xf32> to vector<1x128xf32>
    %c9_307 = arith.constant 9 : index
    %c0_308 = arith.constant 0 : index
    %329 = vector.load %arg8[%c9_307, %c0_308] : memref<16x128xf32, #tpu.memory_space<vmem>>, vector<1x128xf32>
    tpu.vector_store %arg8[%c9_307, %c0_308], %328 {strides = array<i32>} : memref<16x128xf32, #tpu.memory_space<vmem>>, vector<1x128xf32>,
    %c10 = arith.constant 10 : index
    %c0_309 = arith.constant 0 : index
    %330 = memref.load %arg2[%c10, %c0_309] : memref<16x5xf32, #tpu.memory_space<smem>>
    %c0_310 = arith.constant 0 : index
    %c0_311 = arith.constant 0 : index
    %c0_312 = arith.constant 0 : index
    %c0_313 = arith.constant 0 : index
    %331 = vector.load %arg1[%c0_310, %c0_311, %c0_312, %c0_313] : memref<1x4x128x128xf32, #tpu.memory_space<vmem>>, vector<1x1x128x128xf32>
    %332 = vector.shape_cast %331 : vector<1x1x128x128xf32> to vector<128x128xf32>
    %333 = vector.broadcast %330 : f32 to vector<128x128xf32>
    %334 = arith.mulf %333, %332 : vector<128x128xf32>
    %c10_314 = arith.constant 10 : index
    %c1_315 = arith.constant 1 : index
    %335 = memref.load %arg2[%c10_314, %c1_315] : memref<16x5xf32, #tpu.memory_space<smem>>
    %c0_316 = arith.constant 0 : index
    %c1_317 = arith.constant 1 : index
    %c0_318 = arith.constant 0 : index
    %c0_319 = arith.constant 0 : index
    %336 = vector.load %arg1[%c0_316, %c1_317, %c0_318, %c0_319] : memref<1x4x128x128xf32, #tpu.memory_space<vmem>>, vector<1x1x128x128xf32>
    %337 = vector.shape_cast %336 : vector<1x1x128x128xf32> to vector<128x128xf32>
    %338 = vector.broadcast %335 : f32 to vector<128x128xf32>
    %339 = arith.mulf %338, %337 : vector<128x128xf32>
    %340 = arith.addf %334, %339 : vector<128x128xf32>
    %c10_320 = arith.constant 10 : index
    %c2_321 = arith.constant 2 : index
    %341 = memref.load %arg2[%c10_320, %c2_321] : memref<16x5xf32, #tpu.memory_space<smem>>
    %c0_322 = arith.constant 0 : index
    %c2_323 = arith.constant 2 : index
    %c0_324 = arith.constant 0 : index
    %c0_325 = arith.constant 0 : index
    %342 = vector.load %arg1[%c0_322, %c2_323, %c0_324, %c0_325] : memref<1x4x128x128xf32, #tpu.memory_space<vmem>>, vector<1x1x128x128xf32>
    %343 = vector.shape_cast %342 : vector<1x1x128x128xf32> to vector<128x128xf32>
    %344 = vector.broadcast %341 : f32 to vector<128x128xf32>
    %345 = arith.mulf %344, %343 : vector<128x128xf32>
    %346 = arith.addf %340, %345 : vector<128x128xf32>
    %c10_326 = arith.constant 10 : index
    %c3_327 = arith.constant 3 : index
    %347 = memref.load %arg2[%c10_326, %c3_327] : memref<16x5xf32, #tpu.memory_space<smem>>
    %c0_328 = arith.constant 0 : index
    %c3_329 = arith.constant 3 : index
    %c0_330 = arith.constant 0 : index
    %c0_331 = arith.constant 0 : index
    %348 = vector.load %arg1[%c0_328, %c3_329, %c0_330, %c0_331] : memref<1x4x128x128xf32, #tpu.memory_space<vmem>>, vector<1x1x128x128xf32>
    %349 = vector.shape_cast %348 : vector<1x1x128x128xf32> to vector<128x128xf32>
    %350 = vector.broadcast %347 : f32 to vector<128x128xf32>
    %351 = arith.mulf %350, %349 : vector<128x128xf32>
    %352 = arith.addf %346, %351 : vector<128x128xf32>
    %c10_332 = arith.constant 10 : index
    %c4_333 = arith.constant 4 : index
    %353 = memref.load %arg2[%c10_332, %c4_333] : memref<16x5xf32, #tpu.memory_space<smem>>
    %354 = vector.broadcast %353 : f32 to vector<128x128xf32>
    %355 = arith.addf %352, %354 : vector<128x128xf32>
    %356 = math.tanh %355 : vector<128x128xf32>
    %cst_334 = arith.constant dense<0.000000e+00> : vector<128xf32>
    %357 = vector.multi_reduction <add>, %356, %cst_334 [0] : vector<128x128xf32> to vector<128xf32>
    %358 = vector.shape_cast %357 : vector<128xf32> to vector<1x128xf32>
    %c10_335 = arith.constant 10 : index
    %c0_336 = arith.constant 0 : index
    %359 = vector.load %arg7[%c10_335, %c0_336] : memref<16x128xf32, #tpu.memory_space<vmem>>, vector<1x128xf32>
    tpu.vector_store %arg7[%c10_335, %c0_336], %358 {strides = array<i32>} : memref<16x128xf32, #tpu.memory_space<vmem>>, vector<1x128xf32>,
    %cst_337 = arith.constant dense<0xFF800000> : vector<128xf32>
    %360 = vector.multi_reduction <maximumf>, %356, %cst_337 [0] : vector<128x128xf32> to vector<128xf32>
    %361 = vector.shape_cast %360 : vector<128xf32> to vector<1x128xf32>
    %c10_338 = arith.constant 10 : index
    %c0_339 = arith.constant 0 : index
    %362 = vector.load %arg8[%c10_338, %c0_339] : memref<16x128xf32, #tpu.memory_space<vmem>>, vector<1x128xf32>
    tpu.vector_store %arg8[%c10_338, %c0_339], %361 {strides = array<i32>} : memref<16x128xf32, #tpu.memory_space<vmem>>, vector<1x128xf32>,
    %c11 = arith.constant 11 : index
    %c0_340 = arith.constant 0 : index
    %363 = memref.load %arg2[%c11, %c0_340] : memref<16x5xf32, #tpu.memory_space<smem>>
    %c0_341 = arith.constant 0 : index
    %c0_342 = arith.constant 0 : index
    %c0_343 = arith.constant 0 : index
    %c0_344 = arith.constant 0 : index
    %364 = vector.load %arg1[%c0_341, %c0_342, %c0_343, %c0_344] : memref<1x4x128x128xf32, #tpu.memory_space<vmem>>, vector<1x1x128x128xf32>
    %365 = vector.shape_cast %364 : vector<1x1x128x128xf32> to vector<128x128xf32>
    %366 = vector.broadcast %363 : f32 to vector<128x128xf32>
    %367 = arith.mulf %366, %365 : vector<128x128xf32>
    %c11_345 = arith.constant 11 : index
    %c1_346 = arith.constant 1 : index
    %368 = memref.load %arg2[%c11_345, %c1_346] : memref<16x5xf32, #tpu.memory_space<smem>>
    %c0_347 = arith.constant 0 : index
    %c1_348 = arith.constant 1 : index
    %c0_349 = arith.constant 0 : index
    %c0_350 = arith.constant 0 : index
    %369 = vector.load %arg1[%c0_347, %c1_348, %c0_349, %c0_350] : memref<1x4x128x128xf32, #tpu.memory_space<vmem>>, vector<1x1x128x128xf32>
    %370 = vector.shape_cast %369 : vector<1x1x128x128xf32> to vector<128x128xf32>
    %371 = vector.broadcast %368 : f32 to vector<128x128xf32>
    %372 = arith.mulf %371, %370 : vector<128x128xf32>
    %373 = arith.addf %367, %372 : vector<128x128xf32>
    %c11_351 = arith.constant 11 : index
    %c2_352 = arith.constant 2 : index
    %374 = memref.load %arg2[%c11_351, %c2_352] : memref<16x5xf32, #tpu.memory_space<smem>>
    %c0_353 = arith.constant 0 : index
    %c2_354 = arith.constant 2 : index
    %c0_355 = arith.constant 0 : index
    %c0_356 = arith.constant 0 : index
    %375 = vector.load %arg1[%c0_353, %c2_354, %c0_355, %c0_356] : memref<1x4x128x128xf32, #tpu.memory_space<vmem>>, vector<1x1x128x128xf32>
    %376 = vector.shape_cast %375 : vector<1x1x128x128xf32> to vector<128x128xf32>
    %377 = vector.broadcast %374 : f32 to vector<128x128xf32>
    %378 = arith.mulf %377, %376 : vector<128x128xf32>
    %379 = arith.addf %373, %378 : vector<128x128xf32>
    %c11_357 = arith.constant 11 : index
    %c3_358 = arith.constant 3 : index
    %380 = memref.load %arg2[%c11_357, %c3_358] : memref<16x5xf32, #tpu.memory_space<smem>>
    %c0_359 = arith.constant 0 : index
    %c3_360 = arith.constant 3 : index
    %c0_361 = arith.constant 0 : index
    %c0_362 = arith.constant 0 : index
    %381 = vector.load %arg1[%c0_359, %c3_360, %c0_361, %c0_362] : memref<1x4x128x128xf32, #tpu.memory_space<vmem>>, vector<1x1x128x128xf32>
    %382 = vector.shape_cast %381 : vector<1x1x128x128xf32> to vector<128x128xf32>
    %383 = vector.broadcast %380 : f32 to vector<128x128xf32>
    %384 = arith.mulf %383, %382 : vector<128x128xf32>
    %385 = arith.addf %379, %384 : vector<128x128xf32>
    %c11_363 = arith.constant 11 : index
    %c4_364 = arith.constant 4 : index
    %386 = memref.load %arg2[%c11_363, %c4_364] : memref<16x5xf32, #tpu.memory_space<smem>>
    %387 = vector.broadcast %386 : f32 to vector<128x128xf32>
    %388 = arith.addf %385, %387 : vector<128x128xf32>
    %389 = math.tanh %388 : vector<128x128xf32>
    %cst_365 = arith.constant dense<0.000000e+00> : vector<128xf32>
    %390 = vector.multi_reduction <add>, %389, %cst_365 [0] : vector<128x128xf32> to vector<128xf32>
    %391 = vector.shape_cast %390 : vector<128xf32> to vector<1x128xf32>
    %c11_366 = arith.constant 11 : index
    %c0_367 = arith.constant 0 : index
    %392 = vector.load %arg7[%c11_366, %c0_367] : memref<16x128xf32, #tpu.memory_space<vmem>>, vector<1x128xf32>
    tpu.vector_store %arg7[%c11_366, %c0_367], %391 {strides = array<i32>} : memref<16x128xf32, #tpu.memory_space<vmem>>, vector<1x128xf32>,
    %cst_368 = arith.constant dense<0xFF800000> : vector<128xf32>
    %393 = vector.multi_reduction <maximumf>, %389, %cst_368 [0] : vector<128x128xf32> to vector<128xf32>
    %394 = vector.shape_cast %393 : vector<128xf32> to vector<1x128xf32>
    %c11_369 = arith.constant 11 : index
    %c0_370 = arith.constant 0 : index
    %395 = vector.load %arg8[%c11_369, %c0_370] : memref<16x128xf32, #tpu.memory_space<vmem>>, vector<1x128xf32>
    tpu.vector_store %arg8[%c11_369, %c0_370], %394 {strides = array<i32>} : memref<16x128xf32, #tpu.memory_space<vmem>>, vector<1x128xf32>,
    %c12 = arith.constant 12 : index
    %c0_371 = arith.constant 0 : index
    %396 = memref.load %arg2[%c12, %c0_371] : memref<16x5xf32, #tpu.memory_space<smem>>
    %c0_372 = arith.constant 0 : index
    %c0_373 = arith.constant 0 : index
    %c0_374 = arith.constant 0 : index
    %c0_375 = arith.constant 0 : index
    %397 = vector.load %arg1[%c0_372, %c0_373, %c0_374, %c0_375] : memref<1x4x128x128xf32, #tpu.memory_space<vmem>>, vector<1x1x128x128xf32>
    %398 = vector.shape_cast %397 : vector<1x1x128x128xf32> to vector<128x128xf32>
    %399 = vector.broadcast %396 : f32 to vector<128x128xf32>
    %400 = arith.mulf %399, %398 : vector<128x128xf32>
    %c12_376 = arith.constant 12 : index
    %c1_377 = arith.constant 1 : index
    %401 = memref.load %arg2[%c12_376, %c1_377] : memref<16x5xf32, #tpu.memory_space<smem>>
    %c0_378 = arith.constant 0 : index
    %c1_379 = arith.constant 1 : index
    %c0_380 = arith.constant 0 : index
    %c0_381 = arith.constant 0 : index
    %402 = vector.load %arg1[%c0_378, %c1_379, %c0_380, %c0_381] : memref<1x4x128x128xf32, #tpu.memory_space<vmem>>, vector<1x1x128x128xf32>
    %403 = vector.shape_cast %402 : vector<1x1x128x128xf32> to vector<128x128xf32>
    %404 = vector.broadcast %401 : f32 to vector<128x128xf32>
    %405 = arith.mulf %404, %403 : vector<128x128xf32>
    %406 = arith.addf %400, %405 : vector<128x128xf32>
    %c12_382 = arith.constant 12 : index
    %c2_383 = arith.constant 2 : index
    %407 = memref.load %arg2[%c12_382, %c2_383] : memref<16x5xf32, #tpu.memory_space<smem>>
    %c0_384 = arith.constant 0 : index
    %c2_385 = arith.constant 2 : index
    %c0_386 = arith.constant 0 : index
    %c0_387 = arith.constant 0 : index
    %408 = vector.load %arg1[%c0_384, %c2_385, %c0_386, %c0_387] : memref<1x4x128x128xf32, #tpu.memory_space<vmem>>, vector<1x1x128x128xf32>
    %409 = vector.shape_cast %408 : vector<1x1x128x128xf32> to vector<128x128xf32>
    %410 = vector.broadcast %407 : f32 to vector<128x128xf32>
    %411 = arith.mulf %410, %409 : vector<128x128xf32>
    %412 = arith.addf %406, %411 : vector<128x128xf32>
    %c12_388 = arith.constant 12 : index
    %c3_389 = arith.constant 3 : index
    %413 = memref.load %arg2[%c12_388, %c3_389] : memref<16x5xf32, #tpu.memory_space<smem>>
    %c0_390 = arith.constant 0 : index
    %c3_391 = arith.constant 3 : index
    %c0_392 = arith.constant 0 : index
    %c0_393 = arith.constant 0 : index
    %414 = vector.load %arg1[%c0_390, %c3_391, %c0_392, %c0_393] : memref<1x4x128x128xf32, #tpu.memory_space<vmem>>, vector<1x1x128x128xf32>
    %415 = vector.shape_cast %414 : vector<1x1x128x128xf32> to vector<128x128xf32>
    %416 = vector.broadcast %413 : f32 to vector<128x128xf32>
    %417 = arith.mulf %416, %415 : vector<128x128xf32>
    %418 = arith.addf %412, %417 : vector<128x128xf32>
    %c12_394 = arith.constant 12 : index
    %c4_395 = arith.constant 4 : index
    %419 = memref.load %arg2[%c12_394, %c4_395] : memref<16x5xf32, #tpu.memory_space<smem>>
    %420 = vector.broadcast %419 : f32 to vector<128x128xf32>
    %421 = arith.addf %418, %420 : vector<128x128xf32>
    %422 = math.tanh %421 : vector<128x128xf32>
    %cst_396 = arith.constant dense<0.000000e+00> : vector<128xf32>
    %423 = vector.multi_reduction <add>, %422, %cst_396 [0] : vector<128x128xf32> to vector<128xf32>
    %424 = vector.shape_cast %423 : vector<128xf32> to vector<1x128xf32>
    %c12_397 = arith.constant 12 : index
    %c0_398 = arith.constant 0 : index
    %425 = vector.load %arg7[%c12_397, %c0_398] : memref<16x128xf32, #tpu.memory_space<vmem>>, vector<1x128xf32>
    tpu.vector_store %arg7[%c12_397, %c0_398], %424 {strides = array<i32>} : memref<16x128xf32, #tpu.memory_space<vmem>>, vector<1x128xf32>,
    %cst_399 = arith.constant dense<0xFF800000> : vector<128xf32>
    %426 = vector.multi_reduction <maximumf>, %422, %cst_399 [0] : vector<128x128xf32> to vector<128xf32>
    %427 = vector.shape_cast %426 : vector<128xf32> to vector<1x128xf32>
    %c12_400 = arith.constant 12 : index
    %c0_401 = arith.constant 0 : index
    %428 = vector.load %arg8[%c12_400, %c0_401] : memref<16x128xf32, #tpu.memory_space<vmem>>, vector<1x128xf32>
    tpu.vector_store %arg8[%c12_400, %c0_401], %427 {strides = array<i32>} : memref<16x128xf32, #tpu.memory_space<vmem>>, vector<1x128xf32>,
    %c13 = arith.constant 13 : index
    %c0_402 = arith.constant 0 : index
    %429 = memref.load %arg2[%c13, %c0_402] : memref<16x5xf32, #tpu.memory_space<smem>>
    %c0_403 = arith.constant 0 : index
    %c0_404 = arith.constant 0 : index
    %c0_405 = arith.constant 0 : index
    %c0_406 = arith.constant 0 : index
    %430 = vector.load %arg1[%c0_403, %c0_404, %c0_405, %c0_406] : memref<1x4x128x128xf32, #tpu.memory_space<vmem>>, vector<1x1x128x128xf32>
    %431 = vector.shape_cast %430 : vector<1x1x128x128xf32> to vector<128x128xf32>
    %432 = vector.broadcast %429 : f32 to vector<128x128xf32>
    %433 = arith.mulf %432, %431 : vector<128x128xf32>
    %c13_407 = arith.constant 13 : index
    %c1_408 = arith.constant 1 : index
    %434 = memref.load %arg2[%c13_407, %c1_408] : memref<16x5xf32, #tpu.memory_space<smem>>
    %c0_409 = arith.constant 0 : index
    %c1_410 = arith.constant 1 : index
    %c0_411 = arith.constant 0 : index
    %c0_412 = arith.constant 0 : index
    %435 = vector.load %arg1[%c0_409, %c1_410, %c0_411, %c0_412] : memref<1x4x128x128xf32, #tpu.memory_space<vmem>>, vector<1x1x128x128xf32>
    %436 = vector.shape_cast %435 : vector<1x1x128x128xf32> to vector<128x128xf32>
    %437 = vector.broadcast %434 : f32 to vector<128x128xf32>
    %438 = arith.mulf %437, %436 : vector<128x128xf32>
    %439 = arith.addf %433, %438 : vector<128x128xf32>
    %c13_413 = arith.constant 13 : index
    %c2_414 = arith.constant 2 : index
    %440 = memref.load %arg2[%c13_413, %c2_414] : memref<16x5xf32, #tpu.memory_space<smem>>
    %c0_415 = arith.constant 0 : index
    %c2_416 = arith.constant 2 : index
    %c0_417 = arith.constant 0 : index
    %c0_418 = arith.constant 0 : index
    %441 = vector.load %arg1[%c0_415, %c2_416, %c0_417, %c0_418] : memref<1x4x128x128xf32, #tpu.memory_space<vmem>>, vector<1x1x128x128xf32>
    %442 = vector.shape_cast %441 : vector<1x1x128x128xf32> to vector<128x128xf32>
    %443 = vector.broadcast %440 : f32 to vector<128x128xf32>
    %444 = arith.mulf %443, %442 : vector<128x128xf32>
    %445 = arith.addf %439, %444 : vector<128x128xf32>
    %c13_419 = arith.constant 13 : index
    %c3_420 = arith.constant 3 : index
    %446 = memref.load %arg2[%c13_419, %c3_420] : memref<16x5xf32, #tpu.memory_space<smem>>
    %c0_421 = arith.constant 0 : index
    %c3_422 = arith.constant 3 : index
    %c0_423 = arith.constant 0 : index
    %c0_424 = arith.constant 0 : index
    %447 = vector.load %arg1[%c0_421, %c3_422, %c0_423, %c0_424] : memref<1x4x128x128xf32, #tpu.memory_space<vmem>>, vector<1x1x128x128xf32>
    %448 = vector.shape_cast %447 : vector<1x1x128x128xf32> to vector<128x128xf32>
    %449 = vector.broadcast %446 : f32 to vector<128x128xf32>
    %450 = arith.mulf %449, %448 : vector<128x128xf32>
    %451 = arith.addf %445, %450 : vector<128x128xf32>
    %c13_425 = arith.constant 13 : index
    %c4_426 = arith.constant 4 : index
    %452 = memref.load %arg2[%c13_425, %c4_426] : memref<16x5xf32, #tpu.memory_space<smem>>
    %453 = vector.broadcast %452 : f32 to vector<128x128xf32>
    %454 = arith.addf %451, %453 : vector<128x128xf32>
    %455 = math.tanh %454 : vector<128x128xf32>
    %cst_427 = arith.constant dense<0.000000e+00> : vector<128xf32>
    %456 = vector.multi_reduction <add>, %455, %cst_427 [0] : vector<128x128xf32> to vector<128xf32>
    %457 = vector.shape_cast %456 : vector<128xf32> to vector<1x128xf32>
    %c13_428 = arith.constant 13 : index
    %c0_429 = arith.constant 0 : index
    %458 = vector.load %arg7[%c13_428, %c0_429] : memref<16x128xf32, #tpu.memory_space<vmem>>, vector<1x128xf32>
    tpu.vector_store %arg7[%c13_428, %c0_429], %457 {strides = array<i32>} : memref<16x128xf32, #tpu.memory_space<vmem>>, vector<1x128xf32>,
    %cst_430 = arith.constant dense<0xFF800000> : vector<128xf32>
    %459 = vector.multi_reduction <maximumf>, %455, %cst_430 [0] : vector<128x128xf32> to vector<128xf32>
    %460 = vector.shape_cast %459 : vector<128xf32> to vector<1x128xf32>
    %c13_431 = arith.constant 13 : index
    %c0_432 = arith.constant 0 : index
    %461 = vector.load %arg8[%c13_431, %c0_432] : memref<16x128xf32, #tpu.memory_space<vmem>>, vector<1x128xf32>
    tpu.vector_store %arg8[%c13_431, %c0_432], %460 {strides = array<i32>} : memref<16x128xf32, #tpu.memory_space<vmem>>, vector<1x128xf32>,
    %c14 = arith.constant 14 : index
    %c0_433 = arith.constant 0 : index
    %462 = memref.load %arg2[%c14, %c0_433] : memref<16x5xf32, #tpu.memory_space<smem>>
    %c0_434 = arith.constant 0 : index
    %c0_435 = arith.constant 0 : index
    %c0_436 = arith.constant 0 : index
    %c0_437 = arith.constant 0 : index
    %463 = vector.load %arg1[%c0_434, %c0_435, %c0_436, %c0_437] : memref<1x4x128x128xf32, #tpu.memory_space<vmem>>, vector<1x1x128x128xf32>
    %464 = vector.shape_cast %463 : vector<1x1x128x128xf32> to vector<128x128xf32>
    %465 = vector.broadcast %462 : f32 to vector<128x128xf32>
    %466 = arith.mulf %465, %464 : vector<128x128xf32>
    %c14_438 = arith.constant 14 : index
    %c1_439 = arith.constant 1 : index
    %467 = memref.load %arg2[%c14_438, %c1_439] : memref<16x5xf32, #tpu.memory_space<smem>>
    %c0_440 = arith.constant 0 : index
    %c1_441 = arith.constant 1 : index
    %c0_442 = arith.constant 0 : index
    %c0_443 = arith.constant 0 : index
    %468 = vector.load %arg1[%c0_440, %c1_441, %c0_442, %c0_443] : memref<1x4x128x128xf32, #tpu.memory_space<vmem>>, vector<1x1x128x128xf32>
    %469 = vector.shape_cast %468 : vector<1x1x128x128xf32> to vector<128x128xf32>
    %470 = vector.broadcast %467 : f32 to vector<128x128xf32>
    %471 = arith.mulf %470, %469 : vector<128x128xf32>
    %472 = arith.addf %466, %471 : vector<128x128xf32>
    %c14_444 = arith.constant 14 : index
    %c2_445 = arith.constant 2 : index
    %473 = memref.load %arg2[%c14_444, %c2_445] : memref<16x5xf32, #tpu.memory_space<smem>>
    %c0_446 = arith.constant 0 : index
    %c2_447 = arith.constant 2 : index
    %c0_448 = arith.constant 0 : index
    %c0_449 = arith.constant 0 : index
    %474 = vector.load %arg1[%c0_446, %c2_447, %c0_448, %c0_449] : memref<1x4x128x128xf32, #tpu.memory_space<vmem>>, vector<1x1x128x128xf32>
    %475 = vector.shape_cast %474 : vector<1x1x128x128xf32> to vector<128x128xf32>
    %476 = vector.broadcast %473 : f32 to vector<128x128xf32>
    %477 = arith.mulf %476, %475 : vector<128x128xf32>
    %478 = arith.addf %472, %477 : vector<128x128xf32>
    %c14_450 = arith.constant 14 : index
    %c3_451 = arith.constant 3 : index
    %479 = memref.load %arg2[%c14_450, %c3_451] : memref<16x5xf32, #tpu.memory_space<smem>>
    %c0_452 = arith.constant 0 : index
    %c3_453 = arith.constant 3 : index
    %c0_454 = arith.constant 0 : index
    %c0_455 = arith.constant 0 : index
    %480 = vector.load %arg1[%c0_452, %c3_453, %c0_454, %c0_455] : memref<1x4x128x128xf32, #tpu.memory_space<vmem>>, vector<1x1x128x128xf32>
    %481 = vector.shape_cast %480 : vector<1x1x128x128xf32> to vector<128x128xf32>
    %482 = vector.broadcast %479 : f32 to vector<128x128xf32>
    %483 = arith.mulf %482, %481 : vector<128x128xf32>
    %484 = arith.addf %478, %483 : vector<128x128xf32>
    %c14_456 = arith.constant 14 : index
    %c4_457 = arith.constant 4 : index
    %485 = memref.load %arg2[%c14_456, %c4_457] : memref<16x5xf32, #tpu.memory_space<smem>>
    %486 = vector.broadcast %485 : f32 to vector<128x128xf32>
    %487 = arith.addf %484, %486 : vector<128x128xf32>
    %488 = math.tanh %487 : vector<128x128xf32>
    %cst_458 = arith.constant dense<0.000000e+00> : vector<128xf32>
    %489 = vector.multi_reduction <add>, %488, %cst_458 [0] : vector<128x128xf32> to vector<128xf32>
    %490 = vector.shape_cast %489 : vector<128xf32> to vector<1x128xf32>
    %c14_459 = arith.constant 14 : index
    %c0_460 = arith.constant 0 : index
    %491 = vector.load %arg7[%c14_459, %c0_460] : memref<16x128xf32, #tpu.memory_space<vmem>>, vector<1x128xf32>
    tpu.vector_store %arg7[%c14_459, %c0_460], %490 {strides = array<i32>} : memref<16x128xf32, #tpu.memory_space<vmem>>, vector<1x128xf32>,
    %cst_461 = arith.constant dense<0xFF800000> : vector<128xf32>
    %492 = vector.multi_reduction <maximumf>, %488, %cst_461 [0] : vector<128x128xf32> to vector<128xf32>
    %493 = vector.shape_cast %492 : vector<128xf32> to vector<1x128xf32>
    %c14_462 = arith.constant 14 : index
    %c0_463 = arith.constant 0 : index
    %494 = vector.load %arg8[%c14_462, %c0_463] : memref<16x128xf32, #tpu.memory_space<vmem>>, vector<1x128xf32>
    tpu.vector_store %arg8[%c14_462, %c0_463], %493 {strides = array<i32>} : memref<16x128xf32, #tpu.memory_space<vmem>>, vector<1x128xf32>,
    %c15 = arith.constant 15 : index
    %c0_464 = arith.constant 0 : index
    %495 = memref.load %arg2[%c15, %c0_464] : memref<16x5xf32, #tpu.memory_space<smem>>
    %c0_465 = arith.constant 0 : index
    %c0_466 = arith.constant 0 : index
    %c0_467 = arith.constant 0 : index
    %c0_468 = arith.constant 0 : index
    %496 = vector.load %arg1[%c0_465, %c0_466, %c0_467, %c0_468] : memref<1x4x128x128xf32, #tpu.memory_space<vmem>>, vector<1x1x128x128xf32>
    %497 = vector.shape_cast %496 : vector<1x1x128x128xf32> to vector<128x128xf32>
    %498 = vector.broadcast %495 : f32 to vector<128x128xf32>
    %499 = arith.mulf %498, %497 : vector<128x128xf32>
    %c15_469 = arith.constant 15 : index
    %c1_470 = arith.constant 1 : index
    %500 = memref.load %arg2[%c15_469, %c1_470] : memref<16x5xf32, #tpu.memory_space<smem>>
    %c0_471 = arith.constant 0 : index
    %c1_472 = arith.constant 1 : index
    %c0_473 = arith.constant 0 : index
    %c0_474 = arith.constant 0 : index
    %501 = vector.load %arg1[%c0_471, %c1_472, %c0_473, %c0_474] : memref<1x4x128x128xf32, #tpu.memory_space<vmem>>, vector<1x1x128x128xf32>
    %502 = vector.shape_cast %501 : vector<1x1x128x128xf32> to vector<128x128xf32>
    %503 = vector.broadcast %500 : f32 to vector<128x128xf32>
    %504 = arith.mulf %503, %502 : vector<128x128xf32>
    %505 = arith.addf %499, %504 : vector<128x128xf32>
    %c15_475 = arith.constant 15 : index
    %c2_476 = arith.constant 2 : index
    %506 = memref.load %arg2[%c15_475, %c2_476] : memref<16x5xf32, #tpu.memory_space<smem>>
    %c0_477 = arith.constant 0 : index
    %c2_478 = arith.constant 2 : index
    %c0_479 = arith.constant 0 : index
    %c0_480 = arith.constant 0 : index
    %507 = vector.load %arg1[%c0_477, %c2_478, %c0_479, %c0_480] : memref<1x4x128x128xf32, #tpu.memory_space<vmem>>, vector<1x1x128x128xf32>
    %508 = vector.shape_cast %507 : vector<1x1x128x128xf32> to vector<128x128xf32>
    %509 = vector.broadcast %506 : f32 to vector<128x128xf32>
    %510 = arith.mulf %509, %508 : vector<128x128xf32>
    %511 = arith.addf %505, %510 : vector<128x128xf32>
    %c15_481 = arith.constant 15 : index
    %c3_482 = arith.constant 3 : index
    %512 = memref.load %arg2[%c15_481, %c3_482] : memref<16x5xf32, #tpu.memory_space<smem>>
    %c0_483 = arith.constant 0 : index
    %c3_484 = arith.constant 3 : index
    %c0_485 = arith.constant 0 : index
    %c0_486 = arith.constant 0 : index
    %513 = vector.load %arg1[%c0_483, %c3_484, %c0_485, %c0_486] : memref<1x4x128x128xf32, #tpu.memory_space<vmem>>, vector<1x1x128x128xf32>
    %514 = vector.shape_cast %513 : vector<1x1x128x128xf32> to vector<128x128xf32>
    %515 = vector.broadcast %512 : f32 to vector<128x128xf32>
    %516 = arith.mulf %515, %514 : vector<128x128xf32>
    %517 = arith.addf %511, %516 : vector<128x128xf32>
    %c15_487 = arith.constant 15 : index
    %c4_488 = arith.constant 4 : index
    %518 = memref.load %arg2[%c15_487, %c4_488] : memref<16x5xf32, #tpu.memory_space<smem>>
    %519 = vector.broadcast %518 : f32 to vector<128x128xf32>
    %520 = arith.addf %517, %519 : vector<128x128xf32>
    %521 = math.tanh %520 : vector<128x128xf32>
    %cst_489 = arith.constant dense<0.000000e+00> : vector<128xf32>
    %522 = vector.multi_reduction <add>, %521, %cst_489 [0] : vector<128x128xf32> to vector<128xf32>
    %523 = vector.shape_cast %522 : vector<128xf32> to vector<1x128xf32>
    %c15_490 = arith.constant 15 : index
    %c0_491 = arith.constant 0 : index
    %524 = vector.load %arg7[%c15_490, %c0_491] : memref<16x128xf32, #tpu.memory_space<vmem>>, vector<1x128xf32>
    tpu.vector_store %arg7[%c15_490, %c0_491], %523 {strides = array<i32>} : memref<16x128xf32, #tpu.memory_space<vmem>>, vector<1x128xf32>,
    %cst_492 = arith.constant dense<0xFF800000> : vector<128xf32>
    %525 = vector.multi_reduction <maximumf>, %521, %cst_492 [0] : vector<128x128xf32> to vector<128xf32>
    %526 = vector.shape_cast %525 : vector<128xf32> to vector<1x128xf32>
    %c15_493 = arith.constant 15 : index
    %c0_494 = arith.constant 0 : index
    %527 = vector.load %arg8[%c15_493, %c0_494] : memref<16x128xf32, #tpu.memory_space<vmem>>, vector<1x128xf32>
    tpu.vector_store %arg8[%c15_493, %c0_494], %526 {strides = array<i32>} : memref<16x128xf32, #tpu.memory_space<vmem>>, vector<1x128xf32>,
    %c0_495 = arith.constant 0 : index
    %c0_496 = arith.constant 0 : index
    %528 = vector.load %arg7[%c0_495, %c0_496] : memref<16x128xf32, #tpu.memory_space<vmem>>, vector<16x128xf32>
    %c0_497 = arith.constant 0 : index
    %c0_498 = arith.constant 0 : index
    %529 = vector.load %arg8[%c0_497, %c0_498] : memref<16x128xf32, #tpu.memory_space<vmem>>, vector<16x128xf32>
    %c0_499 = arith.constant 0 : index
    %c0_500 = arith.constant 0 : index
    %530 = vector.load %arg5[%c0_499, %c0_500] : memref<152x1xf32, #tpu.memory_space<vmem>>, vector<16x1xf32>
    %c0_501 = arith.constant 0 : index
    %c0_502 = arith.constant 0 : index
    %531 = vector.load %arg3[%c0_501, %c0_502] : memref<16x16xf32, #tpu.memory_space<vmem>>, vector<16x16xf32>
    %cst_503 = arith.constant dense<0.000000e+00> : vector<16x128xf32>
    %532 = tpu.matmul %531, %528, %cst_503 {dimension_numbers = #tpu.dot_dimension_numbers<[1], [0], [0], [1], [0, 0, 1, 1], [], []>} : vector<16x16xf32>, vector<16x128xf32>, vector<16x128xf32> -> vector<16x128xf32>
    %533 = vector.broadcast %530 : vector<16x1xf32> to vector<16x128xf32>
    %534 = arith.addf %532, %533 : vector<16x128xf32>
    %cst_504 = arith.constant dense<0xFF800000> : vector<128xf32>
    %535 = vector.multi_reduction <maximumf>, %534, %cst_504 [0] : vector<16x128xf32> to vector<128xf32>
    %536 = vector.shape_cast %535 : vector<128xf32> to vector<1x128xf32>
    %537 = vector.broadcast %536 : vector<1x128xf32> to vector<16x128xf32>
    %538 = arith.subf %534, %537 : vector<16x128xf32>
    %539 = math.exp %538 : vector<16x128xf32>
    %cst_505 = arith.constant dense<0.000000e+00> : vector<128xf32>
    %540 = vector.multi_reduction <add>, %539, %cst_505 [0] : vector<16x128xf32> to vector<128xf32>
    %541 = vector.shape_cast %540 : vector<128xf32> to vector<1x128xf32>
    %542 = tpu.reciprocal %541 {approx = true} : vector<1x128xf32> -> vector<1x128xf32>
    %543 = vector.broadcast %542 : vector<1x128xf32> to vector<16x128xf32>
    %544 = arith.mulf %539, %543 : vector<16x128xf32>
    %cst_506 = arith.constant 1.000000e+00 : f32
    %545 = vector.broadcast %cst_506 : f32 to vector<16x128xf32>
    %546 = arith.addf %529, %545 : vector<16x128xf32>
    %547 = arith.mulf %544, %546 : vector<16x128xf32>
    %c16 = arith.constant 16 : index
    %c0_507 = arith.constant 0 : index
    %548 = vector.load %arg5[%c16, %c0_507] : memref<152x1xf32, #tpu.memory_space<vmem>>, vector<96x1xf32>
    %c0_508 = arith.constant 0 : index
    %c0_509 = arith.constant 0 : index
    %549 = vector.load %arg4[%c0_508, %c0_509] : memref<96x16xf32, #tpu.memory_space<vmem>>, vector<96x16xf32>
    %cst_510 = arith.constant dense<0.000000e+00> : vector<96x128xf32>
    %550 = tpu.matmul %549, %547, %cst_510 {dimension_numbers = #tpu.dot_dimension_numbers<[1], [0], [0], [1], [0, 0, 1, 1], [], []>} : vector<96x16xf32>, vector<16x128xf32>, vector<96x128xf32> -> vector<96x128xf32>
    %551 = vector.broadcast %548 : vector<96x1xf32> to vector<96x128xf32>
    %552 = arith.addf %550, %551 : vector<96x128xf32>
    %553 = vector.extract_strided_slice %552 {offsets = [0, 0], sizes = [32, 128], strides = [1, 1]} : vector<96x128xf32> to vector<32x128xf32>
    %cst_511 = arith.constant 5.000000e-01 : f32
    %554 = vector.broadcast %cst_511 : f32 to vector<32x128xf32>
    %555 = arith.mulf %554, %553 : vector<32x128xf32>
    %556 = math.tanh %555 : vector<32x128xf32>
    %cst_512 = arith.constant 5.000000e-01 : f32
    %557 = vector.broadcast %cst_512 : f32 to vector<32x128xf32>
    %558 = arith.mulf %557, %556 : vector<32x128xf32>
    %cst_513 = arith.constant 5.000000e-01 : f32
    %559 = vector.broadcast %cst_513 : f32 to vector<32x128xf32>
    %560 = arith.addf %558, %559 : vector<32x128xf32>
    %561 = vector.extract_strided_slice %552 {offsets = [32, 0], sizes = [32, 128], strides = [1, 1]} : vector<96x128xf32> to vector<32x128xf32>
    %562 = math.tanh %561 : vector<32x128xf32>
    %563 = vector.extract_strided_slice %552 {offsets = [64, 0], sizes = [32, 128], strides = [1, 1]} : vector<96x128xf32> to vector<32x128xf32>
    %cst_514 = arith.constant 5.000000e-01 : f32
    %564 = vector.broadcast %cst_514 : f32 to vector<32x128xf32>
    %565 = arith.mulf %564, %563 : vector<32x128xf32>
    %566 = math.tanh %565 : vector<32x128xf32>
    %cst_515 = arith.constant 5.000000e-01 : f32
    %567 = vector.broadcast %cst_515 : f32 to vector<32x128xf32>
    %568 = arith.mulf %567, %566 : vector<32x128xf32>
    %cst_516 = arith.constant 5.000000e-01 : f32
    %569 = vector.broadcast %cst_516 : f32 to vector<32x128xf32>
    %570 = arith.addf %568, %569 : vector<32x128xf32>
    %571 = arith.mulf %560, %562 : vector<32x128xf32>
    %572 = math.tanh %571 : vector<32x128xf32>
    %573 = arith.mulf %570, %572 : vector<32x128xf32>
    %574 = math.tanh %573 : vector<32x128xf32>
    %c112 = arith.constant 112 : index
    %c0_517 = arith.constant 0 : index
    %575 = vector.load %arg5[%c112, %c0_517] : memref<152x1xf32, #tpu.memory_space<vmem>>, vector<32x1xf32>
    %c144 = arith.constant 144 : index
    %c0_518 = arith.constant 0 : index
    %576 = vector.load %arg5[%c144, %c0_518] : memref<152x1xf32, #tpu.memory_space<vmem>>, vector<1x1xf32>
    %577 = vector.broadcast %575 : vector<32x1xf32> to vector<32x128xf32>
    %578 = arith.mulf %577, %574 : vector<32x128xf32>
    %cst_519 = arith.constant dense<0.000000e+00> : vector<128xf32>
    %579 = vector.multi_reduction <add>, %578, %cst_519 [0] : vector<32x128xf32> to vector<128xf32>
    %580 = vector.shape_cast %579 : vector<128xf32> to vector<1x128xf32>
    %581 = vector.broadcast %576 : vector<1x1xf32> to vector<1x128xf32>
    %582 = arith.addf %580, %581 : vector<1x128xf32>
    %583 = math.tanh %582 : vector<1x128xf32>
    %c0_520 = arith.constant 0 : index
    %c0_521 = arith.constant 0 : index
    %584 = vector.load %arg6[%c0_520, %c0_521] : memref<1x128xf32, #tpu.memory_space<vmem>>, vector<1x128xf32>
    tpu.vector_store %arg6[%c0_520, %c0_521], %583 {strides = array<i32>} : memref<1x128xf32, #tpu.memory_space<vmem>>, vector<1x128xf32>,
    return
  }
  func.func @transform_0(%arg0: i32) -> (i32, i32, i32, i32) {
    %c0_i32 = arith.constant 0 : i32
    %c0_i32_0 = arith.constant 0 : i32
    %c0_i32_1 = arith.constant 0 : i32
    %c0_i32_2 = arith.constant 0 : i32
    return %arg0, %c0_i32, %c0_i32_0, %c0_i32_1 : i32, i32, i32, i32
  }
  func.func @transform_1(%arg0: i32) -> (i32, i32) {
    %c0_i32 = arith.constant 0 : i32
    %c0_i32_0 = arith.constant 0 : i32
    %c0_i32_1 = arith.constant 0 : i32
    return %c0_i32, %c0_i32_0 : i32, i32
  }
  func.func @transform_2(%arg0: i32) -> (i32, i32) {
    %c0_i32 = arith.constant 0 : i32
    %c0_i32_0 = arith.constant 0 : i32
    %c0_i32_1 = arith.constant 0 : i32
    return %c0_i32, %c0_i32_0 : i32, i32
  }
  func.func @transform_3(%arg0: i32) -> (i32, i32) {
    %c0_i32 = arith.constant 0 : i32
    %c0_i32_0 = arith.constant 0 : i32
    %c0_i32_1 = arith.constant 0 : i32
    return %c0_i32, %c0_i32_0 : i32, i32
  }
  func.func @transform_4(%arg0: i32) -> (i32, i32) {
    %c0_i32 = arith.constant 0 : i32
    %c0_i32_0 = arith.constant 0 : i32
    %c0_i32_1 = arith.constant 0 : i32
    return %c0_i32, %c0_i32_0 : i32, i32
  }
  func.func @transform_5(%arg0: i32) -> (i32, i32) {
    %c0_i32 = arith.constant 0 : i32
    %c0_i32_0 = arith.constant 0 : i32
    return %c0_i32, %arg0 : i32, i32
  }
}

</mosaic_0001>

<llo_original>
// kernel: cnn_lstm_forward.1
$region0: #{cnn_lstm_forward.1}
  #allocation0 [shape = 'u32[]', space=smem, size = 0x4, offset = 0x4, fixed_abs, tag = 'smem constant byte address 0x4 - core index']
  #allocation1 [shape = 'u32[72,128]{1,0:T(1,128)}', space=vmem, size = 0x9000, scoped, tag = 'internal scratch']
  #allocation2 [shape = 'f32[16,128]{1,0:T(8,128)}', space=vmem, size = 0x2000, scoped, tag = 'scratch operand']
  #allocation3 [shape = 'f32[16,128]{1,0:T(8,128)}', space=vmem, size = 0x2000, scoped, tag = 'scratch operand']
  %s0 = inlined_call_operand.vmem [shape: f32[1,4,128,128], index: 0, kind: input, shape index: {}]
  %s1 = inlined_call_operand.vmem [shape: f32[16,5], index: 1, kind: input, shape index: {}]
  %s2 = inlined_call_operand.vmem [shape: f32[16,16], index: 2, kind: input, shape index: {}]
  %s3 = inlined_call_operand.vmem [shape: f32[96,16], index: 3, kind: input, shape index: {}]
  %s4 = inlined_call_operand.vmem [shape: f32[152,1], index: 4, kind: input, shape index: {}]
  %s5 = inlined_call_operand.vmem [shape: f32[1,128], index: 5, kind: output, shape index: {}]
  %s6 = sld [smem:[#allocation0]]
  $region34: #{cnn_lstm_forward.1} parent=0
    _
  %s8 = ssub.s32 1, %s6
  %s9 = scalar_select 0, %s8, %s6
  $region1: #{cnn_lstm_forward.1} parent=0
    #allocation4 [shape = 'u8[8192]{0}', space=smem, size = 0x2000, scoped, tag = 'input window, operand 1, single buffered']
    #allocation5 [shape = 's32[1]{0}', space=sflag, size = 0x4, scoped, tag = 'scoped memory for cnn_lstm_forward.1']
    %10 = vsyncpa [#allocation5], 0
    // Predicated region
    $region2: #{cnn_lstm_forward.1} parent=1 // pred_check
      _
    $region3: #{cnn_lstm_forward.1} parent=1 // pred_check_branch
      %12 = sbr.rel (0) target = $region5
    $region4: #{cnn_lstm_forward.1} parent=1 // pred_region
      _
    $region5: #{cnn_lstm_forward.1} parent=1 // pred_fallthru
      _
    // Predicated region
    $region6: #{cnn_lstm_forward.1} parent=1 // pred_check
      _
    $region7: #{cnn_lstm_forward.1} parent=1 // pred_check_branch
      %14 = sbr.rel (0) target = $region9
    $region8: #{cnn_lstm_forward.1} parent=1 // pred_region
      %16 = vsyncadd [#allocation5], 0
      %s17 = sshll.u32 %s1, 4
      %s18 = int_to_ptr.vmem [resolvable:$true] %s17
      %23 = dma.vmem_to_smem %s18, 256, [#allocation4], [#allocation5], 128, 128, 8
    $region9: #{cnn_lstm_forward.1} parent=1 // pred_fallthru
      _
    // Predicated region
    $region10: #{cnn_lstm_forward.1} parent=1 // pred_check
      _
    $region11: #{cnn_lstm_forward.1} parent=1 // pred_check_branch
      %25 = sbr.rel (0) target = $region13
    $region12: #{cnn_lstm_forward.1} parent=1 // pred_region
      _
    $region13: #{cnn_lstm_forward.1} parent=1 // pred_fallthru
      _
    // Predicated region
    $region14: #{cnn_lstm_forward.1} parent=1 // pred_check
      _
    $region15: #{cnn_lstm_forward.1} parent=1 // pred_check_branch
      %27 = sbr.rel (0) target = $region17
    $region16: #{cnn_lstm_forward.1} parent=1 // pred_region
      _
    $region17: #{cnn_lstm_forward.1} parent=1 // pred_fallthru
      _
    // Predicated region
    $region18: #{cnn_lstm_forward.1} parent=1 // pred_check
      _
    $region19: #{cnn_lstm_forward.1} parent=1 // pred_check_branch
      %29 = sbr.rel (0) target = $region21
    $region20: #{cnn_lstm_forward.1} parent=1 // pred_region
      _
    $region21: #{cnn_lstm_forward.1} parent=1 // pred_fallthru
      _
    // Predicated region
    $region22: #{cnn_lstm_forward.1} parent=1 // pred_check
      _
    $region23: #{cnn_lstm_forward.1} parent=1 // pred_check_branch
      %31 = sbr.rel (0) target = $region25
    $region24: #{cnn_lstm_forward.1} parent=1 // pred_region
      %33 = dma.done [#allocation5], 256
    $region25: #{cnn_lstm_forward.1} parent=1 // pred_fallthru
      _
    %34 = sfence
    %s35 = sld [smem:[#allocation4]]
    %v36 = vld [vmem:[%s0] sm:$0xff]
    %v37 = vld [vmem:[%s0 + $0x8] sm:$0xff]
    %v38 = vld [vmem:[%s0 + $0x10] sm:$0xff]
    %v39 = vld [vmem:[%s0 + $0x18] sm:$0xff]
    %v40 = vld [vmem:[%s0 + $0x20] sm:$0xff]
    %v41 = vld [vmem:[%s0 + $0x28] sm:$0xff]
    %v42 = vld [vmem:[%s0 + $0x30] sm:$0xff]
    %v43 = vld [vmem:[%s0 + $0x38] sm:$0xff]
    %v44 = vld [vmem:[%s0 + $0x40] sm:$0xff]
    %v45 = vld [vmem:[%s0 + $0x48] sm:$0xff]
    %v46 = vld [vmem:[%s0 + $0x50] sm:$0xff]
    %v47 = vld [vmem:[%s0 + $0x58] sm:$0xff]
    %v48 = vld [vmem:[%s0 + $0x60] sm:$0xff]
    %v49 = vld [vmem:[%s0 + $0x68] sm:$0xff]
    %v50 = vld [vmem:[%s0 + $0x70] sm:$0xff]
    %v51 = vld [vmem:[%s0 + $0x78] sm:$0xff]
    %v52 = vstv %s35
    %v53 = vmul.f32 %v52, %v36
    %v54 = vmul.f32 %v52, %v37
    %v55 = vmul.f32 %v52, %v38
    %v56 = vmul.f32 %v52, %v39
    %v57 = vmul.f32 %v52, %v40
    %v58 = vmul.f32 %v52, %v41
    %v59 = vmul.f32 %v52, %v42
    %v60 = vmul.f32 %v52, %v43
    %v61 = vmul.f32 %v52, %v44
    %v62 = vmul.f32 %v52, %v45
    %v63 = vmul.f32 %v52, %v46
    %v64 = vmul.f32 %v52, %v47
    %v65 = vmul.f32 %v52, %v48
    %v66 = vmul.f32 %v52, %v49
    %v67 = vmul.f32 %v52, %v50
    %v68 = vmul.f32 %v52, %v51
    %s69 = sld [smem:[#allocation4 + $0x1]]
    %s70 = scalar_lea.vmem %s0, 128
    %v71 = vld [vmem:[%s70] sm:$0xff]
    %v72 = vld [vmem:[%s70 + $0x8] sm:$0xff]
    %v73 = vld [vmem:[%s70 + $0x10] sm:$0xff]
    %v74 = vld [vmem:[%s70 + $0x18] sm:$0xff]
    %v75 = vld [vmem:[%s70 + $0x20] sm:$0xff]
    %v76 = vld [vmem:[%s70 + $0x28] sm:$0xff]
    %v77 = vld [vmem:[%s70 + $0x30] sm:$0xff]
    %v78 = vld [vmem:[%s70 + $0x38] sm:$0xff]
    %v79 = vld [vmem:[%s70 + $0x40] sm:$0xff]
    %v80 = vld [vmem:[%s70 + $0x48] sm:$0xff]
    %v81 = vld [vmem:[%s70 + $0x50] sm:$0xff]
    %v82 = vld [vmem:[%s70 + $0x58] sm:$0xff]
    %v83 = vld [vmem:[%s70 + $0x60] sm:$0xff]
    %v84 = vld [vmem:[%s70 + $0x68] sm:$0xff]
    %v85 = vld [vmem:[%s70 + $0x70] sm:$0xff]
    %v86 = vld [vmem:[%s70 + $0x78] sm:$0xff]
    %v87 = vstv %s69
    %v88 = vmul.f32 %v87, %v71
    %v89 = vmul.f32 %v87, %v72
    %v90 = vmul.f32 %v87, %v73
    %v91 = vmul.f32 %v87, %v74
    %v92 = vmul.f32 %v87, %v75
    %v93 = vmul.f32 %v87, %v76
    %v94 = vmul.f32 %v87, %v77
    %v95 = vmul.f32 %v87, %v78
    %v96 = vmul.f32 %v87, %v79
    %v97 = vmul.f32 %v87, %v80
    %v98 = vmul.f32 %v87, %v81
    %v99 = vmul.f32 %v87, %v82
    %v100 = vmul.f32 %v87, %v83
    %v101 = vmul.f32 %v87, %v84
    %v102 = vmul.f32 %v87, %v85
    %v103 = vmul.f32 %v87, %v86
    %v104 = vadd.f32 %v53, %v88
    %v105 = vadd.f32 %v54, %v89
    %v106 = vadd.f32 %v55, %v90
    %v107 = vadd.f32 %v56, %v91
    %v108 = vadd.f32 %v57, %v92
    %v109 = vadd.f32 %v58, %v93
    %v110 = vadd.f32 %v59, %v94
    %v111 = vadd.f32 %v60, %v95
    %v112 = vadd.f32 %v61, %v96
    %v113 = vadd.f32 %v62, %v97
    %v114 = vadd.f32 %v63, %v98
    %v115 = vadd.f32 %v64, %v99
    %v116 = vadd.f32 %v65, %v100
    %v117 = vadd.f32 %v66, %v101
    %v118 = vadd.f32 %v67, %v102
    %v119 = vadd.f32 %v68, %v103
    %s120 = sld [smem:[#allocation4 + $0x2]]
    %s121 = scalar_lea.vmem %s0, 256
    %v122 = vld [vmem:[%s121] sm:$0xff]
    %v123 = vld [vmem:[%s121 + $0x8] sm:$0xff]
    %v124 = vld [vmem:[%s121 + $0x10] sm:$0xff]
    %v125 = vld [vmem:[%s121 + $0x18] sm:$0xff]
    %v126 = vld [vmem:[%s121 + $0x20] sm:$0xff]
    %v127 = vld [vmem:[%s121 + $0x28] sm:$0xff]
    %v128 = vld [vmem:[%s121 + $0x30] sm:$0xff]
    %v129 = vld [vmem:[%s121 + $0x38] sm:$0xff]
    %v130 = vld [vmem:[%s121 + $0x40] sm:$0xff]
    %v131 = vld [vmem:[%s121 + $0x48] sm:$0xff]
    %v132 = vld [vmem:[%s121 + $0x50] sm:$0xff]
    %v133 = vld [vmem:[%s121 + $0x58] sm:$0xff]
    %v134 = vld [vmem:[%s121 + $0x60] sm:$0xff]
    %v135 = vld [vmem:[%s121 + $0x68] sm:$0xff]
    %v136 = vld [vmem:[%s121 + $0x70] sm:$0xff]
    %v137 = vld [vmem:[%s121 + $0x78] sm:$0xff]
    %v138 = vstv %s120
    %v139 = vmul.f32 %v138, %v122
    %v140 = vmul.f32 %v138, %v123
    %v141 = vmul.f32 %v138, %v124
    %v142 = vmul.f32 %v138, %v125
    %v143 = vmul.f32 %v138, %v126
    %v144 = vmul.f32 %v138, %v127
    %v145 = vmul.f32 %v138, %v128
    %v146 = vmul.f32 %v138, %v129
    %v147 = vmul.f32 %v138, %v130
    %v148 = vmul.f32 %v138, %v131
    %v149 = vmul.f32 %v138, %v132
    %v150 = vmul.f32 %v138, %v133
    %v151 = vmul.f32 %v138, %v134
    %v152 = vmul.f32 %v138, %v135
    %v153 = vmul.f32 %v138, %v136
    %v154 = vmul.f32 %v138, %v137
    %v155 = vadd.f32 %v104, %v139
    %v156 = vadd.f32 %v105, %v140
    %v157 = vadd.f32 %v106, %v141
    %v158 = vadd.f32 %v107, %v142
    %v159 = vadd.f32 %v108, %v143
    %v160 = vadd.f32 %v109, %v144
    %v161 = vadd.f32 %v110, %v145
    %v162 = vadd.f32 %v111, %v146
    %v163 = vadd.f32 %v112, %v147
    %v164 = vadd.f32 %v113, %v148
    %v165 = vadd.f32 %v114, %v149
    %v166 = vadd.f32 %v115, %v150
    %v167 = vadd.f32 %v116, %v151
    %v168 = vadd.f32 %v117, %v152
    %v169 = vadd.f32 %v118, %v153
    %v170 = vadd.f32 %v119, %v154
    %s171 = sld [smem:[#allocation4 + $0x3]]
    %s172 = scalar_lea.vmem %s0, 384
    %v173 = vld [vmem:[%s172] sm:$0xff]
    %v174 = vld [vmem:[%s172 + $0x8] sm:$0xff]
    %v175 = vld [vmem:[%s172 + $0x10] sm:$0xff]
    %v176 = vld [vmem:[%s172 + $0x18] sm:$0xff]
    %v177 = vld [vmem:[%s172 + $0x20] sm:$0xff]
    %v178 = vld [vmem:[%s172 + $0x28] sm:$0xff]
    %v179 = vld [vmem:[%s172 + $0x30] sm:$0xff]
    %v180 = vld [vmem:[%s172 + $0x38] sm:$0xff]
    %v181 = vld [vmem:[%s172 + $0x40] sm:$0xff]
    %v182 = vld [vmem:[%s172 + $0x48] sm:$0xff]
    %v183 = vld [vmem:[%s172 + $0x50] sm:$0xff]
    %v184 = vld [vmem:[%s172 + $0x58] sm:$0xff]
    %v185 = vld [vmem:[%s172 + $0x60] sm:$0xff]
    %v186 = vld [vmem:[%s172 + $0x68] sm:$0xff]
    %v187 = vld [vmem:[%s172 + $0x70] sm:$0xff]
    %v188 = vld [vmem:[%s172 + $0x78] sm:$0xff]
    %v189 = vstv %s171
    %v190 = vmul.f32 %v189, %v173
    %v191 = vmul.f32 %v189, %v174
    %v192 = vmul.f32 %v189, %v175
    %v193 = vmul.f32 %v189, %v176
    %v194 = vmul.f32 %v189, %v177
    %v195 = vmul.f32 %v189, %v178
    %v196 = vmul.f32 %v189, %v179
    %v197 = vmul.f32 %v189, %v180
    %v198 = vmul.f32 %v189, %v181
    %v199 = vmul.f32 %v189, %v182
    %v200 = vmul.f32 %v189, %v183
    %v201 = vmul.f32 %v189, %v184
    %v202 = vmul.f32 %v189, %v185
    %v203 = vmul.f32 %v189, %v186
    %v204 = vmul.f32 %v189, %v187
    %v205 = vmul.f32 %v189, %v188
    %v206 = vadd.f32 %v155, %v190
    %v207 = vadd.f32 %v156, %v191
    %v208 = vadd.f32 %v157, %v192
    %v209 = vadd.f32 %v158, %v193
    %v210 = vadd.f32 %v159, %v194
    %v211 = vadd.f32 %v160, %v195
    %v212 = vadd.f32 %v161, %v196
    %v213 = vadd.f32 %v162, %v197
    %v214 = vadd.f32 %v163, %v198
    %v215 = vadd.f32 %v164, %v199
    %v216 = vadd.f32 %v165, %v200
    %v217 = vadd.f32 %v166, %v201
    %v218 = vadd.f32 %v167, %v202
    %v219 = vadd.f32 %v168, %v203
    %v220 = vadd.f32 %v169, %v204
    %v221 = vadd.f32 %v170, %v205
    %s222 = sld [smem:[#allocation4 + $0x4]]
    %v223 = vstv %s222
    %v224 = vadd.f32 %v206, %v223
    %v225 = vadd.f32 %v207, %v223
    %v226 = vadd.f32 %v208, %v223
    %v227 = vadd.f32 %v209, %v223
    %v228 = vadd.f32 %v210, %v223
    %v229 = vadd.f32 %v211, %v223
    %v230 = vadd.f32 %v212, %v223
    %v231 = vadd.f32 %v213, %v223
    %v232 = vadd.f32 %v214, %v223
    %v233 = vadd.f32 %v215, %v223
    %v234 = vadd.f32 %v216, %v223
    %v235 = vadd.f32 %v217, %v223
    %v236 = vadd.f32 %v218, %v223
    %v237 = vadd.f32 %v219, %v223
    %v238 = vadd.f32 %v220, %v223
    %v239 = vadd.f32 %v221, %v223
    %v240 = vtanh.pop %v224
    %v241 = vtanh.pop %v225
    %v242 = vtanh.pop %v226
    %v243 = vtanh.pop %v227
    %v244 = vtanh.pop %v228
    %v245 = vtanh.pop %v229
    %v246 = vtanh.pop %v230
    %v247 = vtanh.pop %v231
    %v248 = vtanh.pop %v232
    %v249 = vtanh.pop %v233
    %v250 = vtanh.pop %v234
    %v251 = vtanh.pop %v235
    %v252 = vtanh.pop %v236
    %v253 = vtanh.pop %v237
    %v254 = vtanh.pop %v238
    %v255 = vtanh.pop %v239
    %v256 = vadd.f32 %v240, %v241
    %v257 = vadd.f32 %v256, %v242
    %v258 = vadd.f32 %v257, %v243
    %v259 = vadd.f32 %v258, %v244
    %v260 = vadd.f32 %v259, %v245
    %v261 = vadd.f32 %v260, %v246
    %v262 = vadd.f32 %v261, %v247
    %v263 = vadd.f32 %v262, %v248
    %v264 = vadd.f32 %v263, %v249
    %v265 = vadd.f32 %v264, %v250
    %v266 = vadd.f32 %v265, %v251
    %v267 = vadd.f32 %v266, %v252
    %v268 = vadd.f32 %v267, %v253
    %v269 = vadd.f32 %v268, %v254
    %v270 = vadd.f32 %v269, %v255
    %v271 = vrot.slane %v270, 4
    %v272 = vadd.f32 %v270, %v271
    %v273 = vrot.slane %v272, 2
    %v274 = vadd.f32 %v272, %v273
    %v275 = vrot.slane %v274, 1
    %v276 = vadd.f32 %v274, %v275
    %277 = vst [vmem:[#allocation2] sm:$0x1] %v276
    %v278 = vmax.f32 %v240, %v244
    %v279 = vmax.f32 %v241, %v245
    %v280 = vmax.f32 %v242, %v246
    %v281 = vmax.f32 %v243, %v247
    %v282 = vmax.f32 %v278, %v248
    %v283 = vmax.f32 %v279, %v249
    %v284 = vmax.f32 %v280, %v250
    %v285 = vmax.f32 %v281, %v251
    %v286 = vmax.f32 %v282, %v252
    %v287 = vmax.f32 %v283, %v253
    %v288 = vmax.f32 %v284, %v254
    %v289 = vmax.f32 %v285, %v255
    %v290 = vmax.f32 %v286, %v287
    %v291 = vmax.f32 %v288, %v289
    %v292 = vmax.f32 %v290, %v291
    %v293 = vrot.slane %v292, 4
    %v294 = vmax.f32 %v292, %v293
    %v295 = vrot.slane %v294, 2
    %v296 = vmax.f32 %v294, %v295
    %v297 = vrot.slane %v296, 1
    %v298 = vmax.f32 %v296, %v297
    %299 = vst [vmem:[#allocation3] sm:$0x1] %v298
    %s300 = sld [smem:[#allocation4 + $0x80]]
    %v301 = vld [vmem:[%s0] sm:$0xff]
    %v302 = vld [vmem:[%s0 + $0x8] sm:$0xff]
    %v303 = vld [vmem:[%s0 + $0x10] sm:$0xff]
    %v304 = vld [vmem:[%s0 + $0x18] sm:$0xff]
    %v305 = vld [vmem:[%s0 + $0x20] sm:$0xff]
    %v306 = vld [vmem:[%s0 + $0x28] sm:$0xff]
    %v307 = vld [vmem:[%s0 + $0x30] sm:$0xff]
    %v308 = vld [vmem:[%s0 + $0x38] sm:$0xff]
    %v309 = vld [vmem:[%s0 + $0x40] sm:$0xff]
    %v310 = vld [vmem:[%s0 + $0x48] sm:$0xff]
    %v311 = vld [vmem:[%s0 + $0x50] sm:$0xff]
    %v312 = vld [vmem:[%s0 + $0x58] sm:$0xff]
    %v313 = vld [vmem:[%s0 + $0x60] sm:$0xff]
    %v314 = vld [vmem:[%s0 + $0x68] sm:$0xff]
    %v315 = vld [vmem:[%s0 + $0x70] sm:$0xff]
    %v316 = vld [vmem:[%s0 + $0x78] sm:$0xff]
    %v317 = vstv %s300
    %v318 = vmul.f32 %v317, %v301
    %v319 = vmul.f32 %v317, %v302
    %v320 = vmul.f32 %v317, %v303
    %v321 = vmul.f32 %v317, %v304
    %v322 = vmul.f32 %v317, %v305
    %v323 = vmul.f32 %v317, %v306
    %v324 = vmul.f32 %v317, %v307
    %v325 = vmul.f32 %v317, %v308
    %v326 = vmul.f32 %v317, %v309
    %v327 = vmul.f32 %v317, %v310
    %v328 = vmul.f32 %v317, %v311
    %v329 = vmul.f32 %v317, %v312
    %v330 = vmul.f32 %v317, %v313
    %v331 = vmul.f32 %v317, %v314
    %v332 = vmul.f32 %v317, %v315
    %v333 = vmul.f32 %v317, %v316
    %s334 = sld [smem:[#allocation4 + $0x81]]
    %v335 = vld [vmem:[%s70] sm:$0xff]
    %v336 = vld [vmem:[%s70 + $0x8] sm:$0xff]
    %v337 = vld [vmem:[%s70 + $0x10] sm:$0xff]
    %v338 = vld [vmem:[%s70 + $0x18] sm:$0xff]
    %v339 = vld [vmem:[%s70 + $0x20] sm:$0xff]
    %v340 = vld [vmem:[%s70 + $0x28] sm:$0xff]
    %v341 = vld [vmem:[%s70 + $0x30] sm:$0xff]
    %v342 = vld [vmem:[%s70 + $0x38] sm:$0xff]
    %v343 = vld [vmem:[%s70 + $0x40] sm:$0xff]
    %v344 = vld [vmem:[%s70 + $0x48] sm:$0xff]
    %v345 = vld [vmem:[%s70 + $0x50] sm:$0xff]
    %v346 = vld [vmem:[%s70 + $0x58] sm:$0xff]
    %v347 = vld [vmem:[%s70 + $0x60] sm:$0xff]
    %v348 = vld [vmem:[%s70 + $0x68] sm:$0xff]
    %v349 = vld [vmem:[%s70 + $0x70] sm:$0xff]
    %v350 = vld [vmem:[%s70 + $0x78] sm:$0xff]
    %v351 = vstv %s334
    %v352 = vmul.f32 %v351, %v335
    %v353 = vmul.f32 %v351, %v336
    %v354 = vmul.f32 %v351, %v337
    %v355 = vmul.f32 %v351, %v338
    %v356 = vmul.f32 %v351, %v339
    %v357 = vmul.f32 %v351, %v340
    %v358 = vmul.f32 %v351, %v341
    %v359 = vmul.f32 %v351, %v342
    %v360 = vmul.f32 %v351, %v343
    %v361 = vmul.f32 %v351, %v344
    %v362 = vmul.f32 %v351, %v345
    %v363 = vmul.f32 %v351, %v346
    %v364 = vmul.f32 %v351, %v347
    %v365 = vmul.f32 %v351, %v348
    %v366 = vmul.f32 %v351, %v349
    %v367 = vmul.f32 %v351, %v350
    %v368 = vadd.f32 %v318, %v352
    %v369 = vadd.f32 %v319, %v353
    %v370 = vadd.f32 %v320, %v354
    %v371 = vadd.f32 %v321, %v355
    %v372 = vadd.f32 %v322, %v356
    %v373 = vadd.f32 %v323, %v357
    %v374 = vadd.f32 %v324, %v358
    %v375 = vadd.f32 %v325, %v359
    %v376 = vadd.f32 %v326, %v360
    %v377 = vadd.f32 %v327, %v361
    %v378 = vadd.f32 %v328, %v362
    %v379 = vadd.f32 %v329, %v363
    %v380 = vadd.f32 %v330, %v364
    %v381 = vadd.f32 %v331, %v365
    %v382 = vadd.f32 %v332, %v366
    %v383 = vadd.f32 %v333, %v367
    %s384 = sld [smem:[#allocation4 + $0x82]]
    %v385 = vld [vmem:[%s121] sm:$0xff]
    %v386 = vld [vmem:[%s121 + $0x8] sm:$0xff]
    %v387 = vld [vmem:[%s121 + $0x10] sm:$0xff]
    %v388 = vld [vmem:[%s121 + $0x18] sm:$0xff]
    %v389 = vld [vmem:[%s121 + $0x20] sm:$0xff]
    %v390 = vld [vmem:[%s121 + $0x28] sm:$0xff]
    %v391 = vld [vmem:[%s121 + $0x30] sm:$0xff]
    %v392 = vld [vmem:[%s121 + $0x38] sm:$0xff]
    %v393 = vld [vmem:[%s121 + $0x40] sm:$0xff]
    %v394 = vld [vmem:[%s121 + $0x48] sm:$0xff]
    %v395 = vld [vmem:[%s121 + $0x50] sm:$0xff]
    %v396 = vld [vmem:[%s121 + $0x58] sm:$0xff]
    %v397 = vld [vmem:[%s121 + $0x60] sm:$0xff]
    %v398 = vld [vmem:[%s121 + $0x68] sm:$0xff]
    %v399 = vld [vmem:[%s121 + $0x70] sm:$0xff]
    %v400 = vld [vmem:[%s121 + $0x78] sm:$0xff]
    %v401 = vstv %s384
    %v402 = vmul.f32 %v401, %v385
    %v403 = vmul.f32 %v401, %v386
    %v404 = vmul.f32 %v401, %v387
    %v405 = vmul.f32 %v401, %v388
    %v406 = vmul.f32 %v401, %v389
    %v407 = vmul.f32 %v401, %v390
    %v408 = vmul.f32 %v401, %v391
    %v409 = vmul.f32 %v401, %v392
    %v410 = vmul.f32 %v401, %v393
    %v411 = vmul.f32 %v401, %v394
    %v412 = vmul.f32 %v401, %v395
    %v413 = vmul.f32 %v401, %v396
    %v414 = vmul.f32 %v401, %v397
    %v415 = vmul.f32 %v401, %v398
    %v416 = vmul.f32 %v401, %v399
    %v417 = vmul.f32 %v401, %v400
    %v418 = vadd.f32 %v368, %v402
    %v419 = vadd.f32 %v369, %v403
    %v420 = vadd.f32 %v370, %v404
    %v421 = vadd.f32 %v371, %v405
    %v422 = vadd.f32 %v372, %v406
    %v423 = vadd.f32 %v373, %v407
    %v424 = vadd.f32 %v374, %v408
    %v425 = vadd.f32 %v375, %v409
    %v426 = vadd.f32 %v376, %v410
    %v427 = vadd.f32 %v377, %v411
    %v428 = vadd.f32 %v378, %v412
    %v429 = vadd.f32 %v379, %v413
    %v430 = vadd.f32 %v380, %v414
    %v431 = vadd.f32 %v381, %v415
    %v432 = vadd.f32 %v382, %v416
    %v433 = vadd.f32 %v383, %v417
    %s434 = sld [smem:[#allocation4 + $0x83]]
    %v435 = vld [vmem:[%s172] sm:$0xff]
    %v436 = vld [vmem:[%s172 + $0x8] sm:$0xff]
    %v437 = vld [vmem:[%s172 + $0x10] sm:$0xff]
    %v438 = vld [vmem:[%s172 + $0x18] sm:$0xff]
    %v439 = vld [vmem:[%s172 + $0x20] sm:$0xff]
    %v440 = vld [vmem:[%s172 + $0x28] sm:$0xff]
    %v441 = vld [vmem:[%s172 + $0x30] sm:$0xff]
    %v442 = vld [vmem:[%s172 + $0x38] sm:$0xff]
    %v443 = vld [vmem:[%s172 + $0x40] sm:$0xff]
    %v444 = vld [vmem:[%s172 + $0x48] sm:$0xff]
    %v445 = vld [vmem:[%s172 + $0x50] sm:$0xff]
    %v446 = vld [vmem:[%s172 + $0x58] sm:$0xff]
    %v447 = vld [vmem:[%s172 + $0x60] sm:$0xff]
    %v448 = vld [vmem:[%s172 + $0x68] sm:$0xff]
    %v449 = vld [vmem:[%s172 + $0x70] sm:$0xff]
    %v450 = vld [vmem:[%s172 + $0x78] sm:$0xff]
    %v451 = vstv %s434
    %v452 = vmul.f32 %v451, %v435
    %v453 = vmul.f32 %v451, %v436
    %v454 = vmul.f32 %v451, %v437
    %v455 = vmul.f32 %v451, %v438
    %v456 = vmul.f32 %v451, %v439
    %v457 = vmul.f32 %v451, %v440
    %v458 = vmul.f32 %v451, %v441
    %v459 = vmul.f32 %v451, %v442
    %v460 = vmul.f32 %v451, %v443
    %v461 = vmul.f32 %v451, %v444
    %v462 = vmul.f32 %v451, %v445
    %v463 = vmul.f32 %v451, %v446
    %v464 = vmul.f32 %v451, %v447
    %v465 = vmul.f32 %v451, %v448
    %v466 = vmul.f32 %v451, %v449
    %v467 = vmul.f32 %v451, %v450
    %v468 = vadd.f32 %v418, %v452
    %v469 = vadd.f32 %v419, %v453
    %v470 = vadd.f32 %v420, %v454
    %v471 = vadd.f32 %v421, %v455
    %v472 = vadd.f32 %v422, %v456
    %v473 = vadd.f32 %v423, %v457
    %v474 = vadd.f32 %v424, %v458
    %v475 = vadd.f32 %v425, %v459
    %v476 = vadd.f32 %v426, %v460
    %v477 = vadd.f32 %v427, %v461
    %v478 = vadd.f32 %v428, %v462
    %v479 = vadd.f32 %v429, %v463
    %v480 = vadd.f32 %v430, %v464
    %v481 = vadd.f32 %v431, %v465
    %v482 = vadd.f32 %v432, %v466
    %v483 = vadd.f32 %v433, %v467
    %s484 = sld [smem:[#allocation4 + $0x84]]
    %v485 = vstv %s484
    %v486 = vadd.f32 %v468, %v485
    %v487 = vadd.f32 %v469, %v485
    %v488 = vadd.f32 %v470, %v485
    %v489 = vadd.f32 %v471, %v485
    %v490 = vadd.f32 %v472, %v485
    %v491 = vadd.f32 %v473, %v485
    %v492 = vadd.f32 %v474, %v485
    %v493 = vadd.f32 %v475, %v485
    %v494 = vadd.f32 %v476, %v485
    %v495 = vadd.f32 %v477, %v485
    %v496 = vadd.f32 %v478, %v485
    %v497 = vadd.f32 %v479, %v485
    %v498 = vadd.f32 %v480, %v485
    %v499 = vadd.f32 %v481, %v485
    %v500 = vadd.f32 %v482, %v485
    %v501 = vadd.f32 %v483, %v485
    %v502 = vtanh.pop %v486
    %v503 = vtanh.pop %v487
    %v504 = vtanh.pop %v488
    %v505 = vtanh.pop %v489
    %v506 = vtanh.pop %v490
    %v507 = vtanh.pop %v491
    %v508 = vtanh.pop %v492
    %v509 = vtanh.pop %v493
    %v510 = vtanh.pop %v494
    %v511 = vtanh.pop %v495
    %v512 = vtanh.pop %v496
    %v513 = vtanh.pop %v497
    %v514 = vtanh.pop %v498
    %v515 = vtanh.pop %v499
    %v516 = vtanh.pop %v500
    %v517 = vtanh.pop %v501
    %v518 = vadd.f32 %v502, %v503
    %v519 = vadd.f32 %v518, %v504
    %v520 = vadd.f32 %v519, %v505
    %v521 = vadd.f32 %v520, %v506
    %v522 = vadd.f32 %v521, %v507
    %v523 = vadd.f32 %v522, %v508
    %v524 = vadd.f32 %v523, %v509
    %v525 = vadd.f32 %v524, %v510
    %v526 = vadd.f32 %v525, %v511
    %v527 = vadd.f32 %v526, %v512
    %v528 = vadd.f32 %v527, %v513
    %v529 = vadd.f32 %v528, %v514
    %v530 = vadd.f32 %v529, %v515
    %v531 = vadd.f32 %v530, %v516
    %v532 = vadd.f32 %v531, %v517
    %v533 = vrot.slane %v532, 4
    %v534 = vadd.f32 %v532, %v533
    %v535 = vrot.slane %v534, 2
    %v536 = vadd.f32 %v534, %v535
    %v537 = vrot.slane %v536, 1
    %v538 = vadd.f32 %v536, %v537
    %539 = vst [vmem:[#allocation2 + $0x1] sm:$0x1] %v538
    %v540 = vmax.f32 %v502, %v506
    %v541 = vmax.f32 %v503, %v507
    %v542 = vmax.f32 %v504, %v508
    %v543 = vmax.f32 %v505, %v509
    %v544 = vmax.f32 %v540, %v510
    %v545 = vmax.f32 %v541, %v511
    %v546 = vmax.f32 %v542, %v512
    %v547 = vmax.f32 %v543, %v513
    %v548 = vmax.f32 %v544, %v514
    %v549 = vmax.f32 %v545, %v515
    %v550 = vmax.f32 %v546, %v516
    %v551 = vmax.f32 %v547, %v517
    %v552 = vmax.f32 %v548, %v549
    %v553 = vmax.f32 %v550, %v551
    %v554 = vmax.f32 %v552, %v553
    %v555 = vrot.slane %v554, 4
    %v556 = vmax.f32 %v554, %v555
    %v557 = vrot.slane %v556, 2
    %v558 = vmax.f32 %v556, %v557
    %v559 = vrot.slane %v558, 1
    %v560 = vmax.f32 %v558, %v559
    %561 = vst [vmem:[#allocation3 + $0x1] sm:$0x1] %v560
    %s562 = sld [smem:[#allocation4 + $0x100]]
    %v563 = vld [vmem:[%s0] sm:$0xff]
    %v564 = vld [vmem:[%s0 + $0x8] sm:$0xff]
    %v565 = vld [vmem:[%s0 + $0x10] sm:$0xff]
    %v566 = vld [vmem:[%s0 + $0x18] sm:$0xff]
    %v567 = vld [vmem:[%s0 + $0x20] sm:$0xff]
    %v568 = vld [vmem:[%s0 + $0x28] sm:$0xff]
    %v569 = vld [vmem:[%s0 + $0x30] sm:$0xff]
    %v570 = vld [vmem:[%s0 + $0x38] sm:$0xff]
    %v571 = vld [vmem:[%s0 + $0x40] sm:$0xff]
    %v572 = vld [vmem:[%s0 + $0x48] sm:$0xff]
    %v573 = vld [vmem:[%s0 + $0x50] sm:$0xff]
    %v574 = vld [vmem:[%s0 + $0x58] sm:$0xff]
    %v575 = vld [vmem:[%s0 + $0x60] sm:$0xff]
    %v576 = vld [vmem:[%s0 + $0x68] sm:$0xff]
    %v577 = vld [vmem:[%s0 + $0x70] sm:$0xff]
    %v578 = vld [vmem:[%s0 + $0x78] sm:$0xff]
    %v579 = vstv %s562
    %v580 = vmul.f32 %v579, %v563
    %v581 = vmul.f32 %v579, %v564
    %v582 = vmul.f32 %v579, %v565
    %v583 = vmul.f32 %v579, %v566
    %v584 = vmul.f32 %v579, %v567
    %v585 = vmul.f32 %v579, %v568
    %v586 = vmul.f32 %v579, %v569
    %v587 = vmul.f32 %v579, %v570
    %v588 = vmul.f32 %v579, %v571
    %v589 = vmul.f32 %v579, %v572
    %v590 = vmul.f32 %v579, %v573
    %v591 = vmul.f32 %v579, %v574
    %v592 = vmul.f32 %v579, %v575
    %v593 = vmul.f32 %v579, %v576
    %v594 = vmul.f32 %v579, %v577
    %v595 = vmul.f32 %v579, %v578
    %s596 = sld [smem:[#allocation4 + $0x101]]
    %v597 = vld [vmem:[%s70] sm:$0xff]
    %v598 = vld [vmem:[%s70 + $0x8] sm:$0xff]
    %v599 = vld [vmem:[%s70 + $0x10] sm:$0xff]
    %v600 = vld [vmem:[%s70 + $0x18] sm:$0xff]
    %v601 = vld [vmem:[%s70 + $0x20] sm:$0xff]
    %v602 = vld [vmem:[%s70 + $0x28] sm:$0xff]
    %v603 = vld [vmem:[%s70 + $0x30] sm:$0xff]
    %v604 = vld [vmem:[%s70 + $0x38] sm:$0xff]
    %v605 = vld [vmem:[%s70 + $0x40] sm:$0xff]
    %v606 = vld [vmem:[%s70 + $0x48] sm:$0xff]
    %v607 = vld [vmem:[%s70 + $0x50] sm:$0xff]
    %v608 = vld [vmem:[%s70 + $0x58] sm:$0xff]
    %v609 = vld [vmem:[%s70 + $0x60] sm:$0xff]
    %v610 = vld [vmem:[%s70 + $0x68] sm:$0xff]
    %v611 = vld [vmem:[%s70 + $0x70] sm:$0xff]
    %v612 = vld [vmem:[%s70 + $0x78] sm:$0xff]
    %v613 = vstv %s596
    %v614 = vmul.f32 %v613, %v597
    %v615 = vmul.f32 %v613, %v598
    %v616 = vmul.f32 %v613, %v599
    %v617 = vmul.f32 %v613, %v600
    %v618 = vmul.f32 %v613, %v601
    %v619 = vmul.f32 %v613, %v602
    %v620 = vmul.f32 %v613, %v603
    %v621 = vmul.f32 %v613, %v604
    %v622 = vmul.f32 %v613, %v605
    %v623 = vmul.f32 %v613, %v606
    %v624 = vmul.f32 %v613, %v607
    %v625 = vmul.f32 %v613, %v608
    %v626 = vmul.f32 %v613, %v609
    %v627 = vmul.f32 %v613, %v610
    %v628 = vmul.f32 %v613, %v611
    %v629 = vmul.f32 %v613, %v612
    %v630 = vadd.f32 %v580, %v614
    %v631 = vadd.f32 %v581, %v615
    %v632 = vadd.f32 %v582, %v616
    %v633 = vadd.f32 %v583, %v617
    %v634 = vadd.f32 %v584, %v618
    %v635 = vadd.f32 %v585, %v619
    %v636 = vadd.f32 %v586, %v620
    %v637 = vadd.f32 %v587, %v621
    %v638 = vadd.f32 %v588, %v622
    %v639 = vadd.f32 %v589, %v623
    %v640 = vadd.f32 %v590, %v624
    %v641 = vadd.f32 %v591, %v625
    %v642 = vadd.f32 %v592, %v626
    %v643 = vadd.f32 %v593, %v627
    %v644 = vadd.f32 %v594, %v628
    %v645 = vadd.f32 %v595, %v629
    %s646 = sld [smem:[#allocation4 + $0x102]]
    %v647 = vld [vmem:[%s121] sm:$0xff]
    %v648 = vld [vmem:[%s121 + $0x8] sm:$0xff]
    %v649 = vld [vmem:[%s121 + $0x10] sm:$0xff]
    %v650 = vld [vmem:[%s121 + $0x18] sm:$0xff]
    %v651 = vld [vmem:[%s121 + $0x20] sm:$0xff]
    %v652 = vld [vmem:[%s121 + $0x28] sm:$0xff]
    %v653 = vld [vmem:[%s121 + $0x30] sm:$0xff]
    %v654 = vld [vmem:[%s121 + $0x38] sm:$0xff]
    %v655 = vld [vmem:[%s121 + $0x40] sm:$0xff]
    %v656 = vld [vmem:[%s121 + $0x48] sm:$0xff]
    %v657 = vld [vmem:[%s121 + $0x50] sm:$0xff]
    %v658 = vld [vmem:[%s121 + $0x58] sm:$0xff]
    %v659 = vld [vmem:[%s121 + $0x60] sm:$0xff]
    %v660 = vld [vmem:[%s121 + $0x68] sm:$0xff]
    %v661 = vld [vmem:[%s121 + $0x70] sm:$0xff]
    %v662 = vld [vmem:[%s121 + $0x78] sm:$0xff]
    %v663 = vstv %s646
    %v664 = vmul.f32 %v663, %v647
    %v665 = vmul.f32 %v663, %v648
    %v666 = vmul.f32 %v663, %v649
    %v667 = vmul.f32 %v663, %v650
    %v668 = vmul.f32 %v663, %v651
    %v669 = vmul.f32 %v663, %v652
    %v670 = vmul.f32 %v663, %v653
    %v671 = vmul.f32 %v663, %v654
    %v672 = vmul.f32 %v663, %v655
    %v673 = vmul.f32 %v663, %v656
    %v674 = vmul.f32 %v663, %v657
    %v675 = vmul.f32 %v663, %v658
    %v676 = vmul.f32 %v663, %v659
    %v677 = vmul.f32 %v663, %v660
    %v678 = vmul.f32 %v663, %v661
    %v679 = vmul.f32 %v663, %v662
    %v680 = vadd.f32 %v630, %v664
    %v681 = vadd.f32 %v631, %v665
    %v682 = vadd.f32 %v632, %v666
    %v683 = vadd.f32 %v633, %v667
    %v684 = vadd.f32 %v634, %v668
    %v685 = vadd.f32 %v635, %v669
    %v686 = vadd.f32 %v636, %v670
    %v687 = vadd.f32 %v637, %v671
    %v688 = vadd.f32 %v638, %v672
    %v689 = vadd.f32 %v639, %v673
    %v690 = vadd.f32 %v640, %v674
    %v691 = vadd.f32 %v641, %v675
    %v692 = vadd.f32 %v642, %v676
    %v693 = vadd.f32 %v643, %v677
    %v694 = vadd.f32 %v644, %v678
    %v695 = vadd.f32 %v645, %v679
    %s696 = sld [smem:[#allocation4 + $0x103]]
    %v697 = vld [vmem:[%s172] sm:$0xff]
    %v698 = vld [vmem:[%s172 + $0x8] sm:$0xff]
    %v699 = vld [vmem:[%s172 + $0x10] sm:$0xff]
    %v700 = vld [vmem:[%s172 + $0x18] sm:$0xff]
    %v701 = vld [vmem:[%s172 + $0x20] sm:$0xff]
    %v702 = vld [vmem:[%s172 + $0x28] sm:$0xff]
    %v703 = vld [vmem:[%s172 + $0x30] sm:$0xff]
    %v704 = vld [vmem:[%s172 + $0x38] sm:$0xff]
    %v705 = vld [vmem:[%s172 + $0x40] sm:$0xff]
    %v706 = vld [vmem:[%s172 + $0x48] sm:$0xff]
    %v707 = vld [vmem:[%s172 + $0x50] sm:$0xff]
    %v708 = vld [vmem:[%s172 + $0x58] sm:$0xff]
    %v709 = vld [vmem:[%s172 + $0x60] sm:$0xff]
    %v710 = vld [vmem:[%s172 + $0x68] sm:$0xff]
    %v711 = vld [vmem:[%s172 + $0x70] sm:$0xff]
    %v712 = vld [vmem:[%s172 + $0x78] sm:$0xff]
    %v713 = vstv %s696
    %v714 = vmul.f32 %v713, %v697
    %v715 = vmul.f32 %v713, %v698
    %v716 = vmul.f32 %v713, %v699
    %v717 = vmul.f32 %v713, %v700
    %v718 = vmul.f32 %v713, %v701
    %v719 = vmul.f32 %v713, %v702
    %v720 = vmul.f32 %v713, %v703
    %v721 = vmul.f32 %v713, %v704
    %v722 = vmul.f32 %v713, %v705
    %v723 = vmul.f32 %v713, %v706
    %v724 = vmul.f32 %v713, %v707
    %v725 = vmul.f32 %v713, %v708
    %v726 = vmul.f32 %v713, %v709
    %v727 = vmul.f32 %v713, %v710
    %v728 = vmul.f32 %v713, %v711
    %v729 = vmul.f32 %v713, %v712
    %v730 = vadd.f32 %v680, %v714
    %v731 = vadd.f32 %v681, %v715
    %v732 = vadd.f32 %v682, %v716
    %v733 = vadd.f32 %v683, %v717
    %v734 = vadd.f32 %v684, %v718
    %v735 = vadd.f32 %v685, %v719
    %v736 = vadd.f32 %v686, %v720
    %v737 = vadd.f32 %v687, %v721
    %v738 = vadd.f32 %v688, %v722
    %v739 = vadd.f32 %v689, %v723
    %v740 = vadd.f32 %v690, %v724
    %v741 = vadd.f32 %v691, %v725
    %v742 = vadd.f32 %v692, %v726
    %v743 = vadd.f32 %v693, %v727
    %v744 = vadd.f32 %v694, %v728
    %v745 = vadd.f32 %v695, %v729
    %s746 = sld [smem:[#allocation4 + $0x104]]
    %v747 = vstv %s746
    %v748 = vadd.f32 %v730, %v747
    %v749 = vadd.f32 %v731, %v747
    %v750 = vadd.f32 %v732, %v747
    %v751 = vadd.f32 %v733, %v747
    %v752 = vadd.f32 %v734, %v747
    %v753 = vadd.f32 %v735, %v747
    %v754 = vadd.f32 %v736, %v747
    %v755 = vadd.f32 %v737, %v747
    %v756 = vadd.f32 %v738, %v747
    %v757 = vadd.f32 %v739, %v747
    %v758 = vadd.f32 %v740, %v747
    %v759 = vadd.f32 %v741, %v747
    %v760 = vadd.f32 %v742, %v747
    %v761 = vadd.f32 %v743, %v747
    %v762 = vadd.f32 %v744, %v747
    %v763 = vadd.f32 %v745, %v747
    %v764 = vtanh.pop %v748
    %v765 = vtanh.pop %v749
    %v766 = vtanh.pop %v750
    %v767 = vtanh.pop %v751
    %v768 = vtanh.pop %v752
    %v769 = vtanh.pop %v753
    %v770 = vtanh.pop %v754
    %v771 = vtanh.pop %v755
    %v772 = vtanh.pop %v756
    %v773 = vtanh.pop %v757
    %v774 = vtanh.pop %v758
    %v775 = vtanh.pop %v759
    %v776 = vtanh.pop %v760
    %v777 = vtanh.pop %v761
    %v778 = vtanh.pop %v762
    %v779 = vtanh.pop %v763
    %v780 = vadd.f32 %v764, %v765
    %v781 = vadd.f32 %v780, %v766
    %v782 = vadd.f32 %v781, %v767
    %v783 = vadd.f32 %v782, %v768
    %v784 = vadd.f32 %v783, %v769
    %v785 = vadd.f32 %v784, %v770
    %v786 = vadd.f32 %v785, %v771
    %v787 = vadd.f32 %v786, %v772
    %v788 = vadd.f32 %v787, %v773
    %v789 = vadd.f32 %v788, %v774
    %v790 = vadd.f32 %v789, %v775
    %v791 = vadd.f32 %v790, %v776
    %v792 = vadd.f32 %v791, %v777
    %v793 = vadd.f32 %v792, %v778
    %v794 = vadd.f32 %v793, %v779
    %v795 = vrot.slane %v794, 4
    %v796 = vadd.f32 %v794, %v795
    %v797 = vrot.slane %v796, 2
    %v798 = vadd.f32 %v796, %v797
    %v799 = vrot.slane %v798, 1
    %v800 = vadd.f32 %v798, %v799
    %801 = vst [vmem:[#allocation2 + $0x2] sm:$0x1] %v800
    %v802 = vmax.f32 %v764, %v768
    %v803 = vmax.f32 %v765, %v769
    %v804 = vmax.f32 %v766, %v770
    %v805 = vmax.f32 %v767, %v771
    %v806 = vmax.f32 %v802, %v772
    %v807 = vmax.f32 %v803, %v773
    %v808 = vmax.f32 %v804, %v774
    %v809 = vmax.f32 %v805, %v775
    %v810 = vmax.f32 %v806, %v776
    %v811 = vmax.f32 %v807, %v777
    %v812 = vmax.f32 %v808, %v778
    %v813 = vmax.f32 %v809, %v779
    %v814 = vmax.f32 %v810, %v811
    %v815 = vmax.f32 %v812, %v813
    %v816 = vmax.f32 %v814, %v815
    %v817 = vrot.slane %v816, 4
    %v818 = vmax.f32 %v816, %v817
    %v819 = vrot.slane %v818, 2
    %v820 = vmax.f32 %v818, %v819
    %v821 = vrot.slane %v820, 1
    %v822 = vmax.f32 %v820, %v821
    %823 = vst [vmem:[#allocation3 + $0x2] sm:$0x1] %v822
    %s824 = sld [smem:[#allocation4 + $0x180]]
    %v825 = vld [vmem:[%s0] sm:$0xff]
    %v826 = vld [vmem:[%s0 + $0x8] sm:$0xff]
    %v827 = vld [vmem:[%s0 + $0x10] sm:$0xff]
    %v828 = vld [vmem:[%s0 + $0x18] sm:$0xff]
    %v829 = vld [vmem:[%s0 + $0x20] sm:$0xff]
    %v830 = vld [vmem:[%s0 + $0x28] sm:$0xff]
    %v831 = vld [vmem:[%s0 + $0x30] sm:$0xff]
    %v832 = vld [vmem:[%s0 + $0x38] sm:$0xff]
    %v833 = vld [vmem:[%s0 + $0x40] sm:$0xff]
    %v834 = vld [vmem:[%s0 + $0x48] sm:$0xff]
    %v835 = vld [vmem:[%s0 + $0x50] sm:$0xff]
    %v836 = vld [vmem:[%s0 + $0x58] sm:$0xff]
    %v837 = vld [vmem:[%s0 + $0x60] sm:$0xff]
    %v838 = vld [vmem:[%s0 + $0x68] sm:$0xff]
    %v839 = vld [vmem:[%s0 + $0x70] sm:$0xff]
    %v840 = vld [vmem:[%s0 + $0x78] sm:$0xff]
    %v841 = vstv %s824
    %v842 = vmul.f32 %v841, %v825
    %v843 = vmul.f32 %v841, %v826
    %v844 = vmul.f32 %v841, %v827
    %v845 = vmul.f32 %v841, %v828
    %v846 = vmul.f32 %v841, %v829
    %v847 = vmul.f32 %v841, %v830
    %v848 = vmul.f32 %v841, %v831
    %v849 = vmul.f32 %v841, %v832
    %v850 = vmul.f32 %v841, %v833
    %v851 = vmul.f32 %v841, %v834
    %v852 = vmul.f32 %v841, %v835
    %v853 = vmul.f32 %v841, %v836
    %v854 = vmul.f32 %v841, %v837
    %v855 = vmul.f32 %v841, %v838
    %v856 = vmul.f32 %v841, %v839
    %v857 = vmul.f32 %v841, %v840
    %s858 = sld [smem:[#allocation4 + $0x181]]
    %v859 = vld [vmem:[%s70] sm:$0xff]
    %v860 = vld [vmem:[%s70 + $0x8] sm:$0xff]
    %v861 = vld [vmem:[%s70 + $0x10] sm:$0xff]
    %v862 = vld [vmem:[%s70 + $0x18] sm:$0xff]
    %v863 = vld [vmem:[%s70 + $0x20] sm:$0xff]
    %v864 = vld [vmem:[%s70 + $0x28] sm:$0xff]
    %v865 = vld [vmem:[%s70 + $0x30] sm:$0xff]
    %v866 = vld [vmem:[%s70 + $0x38] sm:$0xff]
    %v867 = vld [vmem:[%s70 + $0x40] sm:$0xff]
    %v868 = vld [vmem:[%s70 + $0x48] sm:$0xff]
    %v869 = vld [vmem:[%s70 + $0x50] sm:$0xff]
    %v870 = vld [vmem:[%s70 + $0x58] sm:$0xff]
    %v871 = vld [vmem:[%s70 + $0x60] sm:$0xff]
    %v872 = vld [vmem:[%s70 + $0x68] sm:$0xff]
    %v873 = vld [vmem:[%s70 + $0x70] sm:$0xff]
    %v874 = vld [vmem:[%s70 + $0x78] sm:$0xff]
    %v875 = vstv %s858
    %v876 = vmul.f32 %v875, %v859
    %v877 = vmul.f32 %v875, %v860
    %v878 = vmul.f32 %v875, %v861
    %v879 = vmul.f32 %v875, %v862
    %v880 = vmul.f32 %v875, %v863
    %v881 = vmul.f32 %v875, %v864
    %v882 = vmul.f32 %v875, %v865
    %v883 = vmul.f32 %v875, %v866
    %v884 = vmul.f32 %v875, %v867
    %v885 = vmul.f32 %v875, %v868
    %v886 = vmul.f32 %v875, %v869
    %v887 = vmul.f32 %v875, %v870
    %v888 = vmul.f32 %v875, %v871
    %v889 = vmul.f32 %v875, %v872
    %v890 = vmul.f32 %v875, %v873
    %v891 = vmul.f32 %v875, %v874
    %v892 = vadd.f32 %v842, %v876
    %v893 = vadd.f32 %v843, %v877
    %v894 = vadd.f32 %v844, %v878
    %v895 = vadd.f32 %v845, %v879
    %v896 = vadd.f32 %v846, %v880
    %v897 = vadd.f32 %v847, %v881
    %v898 = vadd.f32 %v848, %v882
    %v899 = vadd.f32 %v849, %v883
    %v900 = vadd.f32 %v850, %v884
    %v901 = vadd.f32 %v851, %v885
    %v902 = vadd.f32 %v852, %v886
    %v903 = vadd.f32 %v853, %v887
    %v904 = vadd.f32 %v854, %v888
    %v905 = vadd.f32 %v855, %v889
    %v906 = vadd.f32 %v856, %v890
    %v907 = vadd.f32 %v857, %v891
    %s908 = sld [smem:[#allocation4 + $0x182]]
    %v909 = vld [vmem:[%s121] sm:$0xff]
    %v910 = vld [vmem:[%s121 + $0x8] sm:$0xff]
    %v911 = vld [vmem:[%s121 + $0x10] sm:$0xff]
    %v912 = vld [vmem:[%s121 + $0x18] sm:$0xff]
    %v913 = vld [vmem:[%s121 + $0x20] sm:$0xff]
    %v914 = vld [vmem:[%s121 + $0x28] sm:$0xff]
    %v915 = vld [vmem:[%s121 + $0x30] sm:$0xff]
    %v916 = vld [vmem:[%s121 + $0x38] sm:$0xff]
    %v917 = vld [vmem:[%s121 + $0x40] sm:$0xff]
    %v918 = vld [vmem:[%s121 + $0x48] sm:$0xff]
    %v919 = vld [vmem:[%s121 + $0x50] sm:$0xff]
    %v920 = vld [vmem:[%s121 + $0x58] sm:$0xff]
    %v921 = vld [vmem:[%s121 + $0x60] sm:$0xff]
    %v922 = vld [vmem:[%s121 + $0x68] sm:$0xff]
    %v923 = vld [vmem:[%s121 + $0x70] sm:$0xff]
    %v924 = vld [vmem:[%s121 + $0x78] sm:$0xff]
    %v925 = vstv %s908
    %v926 = vmul.f32 %v925, %v909
    %v927 = vmul.f32 %v925, %v910
    %v928 = vmul.f32 %v925, %v911
    %v929 = vmul.f32 %v925, %v912
    %v930 = vmul.f32 %v925, %v913
    %v931 = vmul.f32 %v925, %v914
    %v932 = vmul.f32 %v925, %v915
    %v933 = vmul.f32 %v925, %v916
    %v934 = vmul.f32 %v925, %v917
    %v935 = vmul.f32 %v925, %v918
    %v936 = vmul.f32 %v925, %v919
    %v937 = vmul.f32 %v925, %v920
    %v938 = vmul.f32 %v925, %v921
    %v939 = vmul.f32 %v925, %v922
    %v940 = vmul.f32 %v925, %v923
    %v941 = vmul.f32 %v925, %v924
    %v942 = vadd.f32 %v892, %v926
    %v943 = vadd.f32 %v893, %v927
    %v944 = vadd.f32 %v894, %v928
    %v945 = vadd.f32 %v895, %v929
    %v946 = vadd.f32 %v896, %v930
    %v947 = vadd.f32 %v897, %v931
    %v948 = vadd.f32 %v898, %v932
    %v949 = vadd.f32 %v899, %v933
    %v950 = vadd.f32 %v900, %v934
    %v951 = vadd.f32 %v901, %v935
    %v952 = vadd.f32 %v902, %v936
    %v953 = vadd.f32 %v903, %v937
    %v954 = vadd.f32 %v904, %v938
    %v955 = vadd.f32 %v905, %v939
    %v956 = vadd.f32 %v906, %v940
    %v957 = vadd.f32 %v907, %v941
    %s958 = sld [smem:[#allocation4 + $0x183]]
    %v959 = vld [vmem:[%s172] sm:$0xff]
    %v960 = vld [vmem:[%s172 + $0x8] sm:$0xff]
    %v961 = vld [vmem:[%s172 + $0x10] sm:$0xff]
    %v962 = vld [vmem:[%s172 + $0x18] sm:$0xff]
    %v963 = vld [vmem:[%s172 + $0x20] sm:$0xff]
    %v964 = vld [vmem:[%s172 + $0x28] sm:$0xff]
    %v965 = vld [vmem:[%s172 + $0x30] sm:$0xff]
    %v966 = vld [vmem:[%s172 + $0x38] sm:$0xff]
    %v967 = vld [vmem:[%s172 + $0x40] sm:$0xff]
    %v968 = vld [vmem:[%s172 + $0x48] sm:$0xff]
    %v969 = vld [vmem:[%s172 + $0x50] sm:$0xff]
    %v970 = vld [vmem:[%s172 + $0x58] sm:$0xff]
    %v971 = vld [vmem:[%s172 + $0x60] sm:$0xff]
    %v972 = vld [vmem:[%s172 + $0x68] sm:$0xff]
    %v973 = vld [vmem:[%s172 + $0x70] sm:$0xff]
    %v974 = vld [vmem:[%s172 + $0x78] sm:$0xff]
    %v975 = vstv %s958
    %v976 = vmul.f32 %v975, %v959
    %v977 = vmul.f32 %v975, %v960
    %v978 = vmul.f32 %v975, %v961
    %v979 = vmul.f32 %v975, %v962
    %v980 = vmul.f32 %v975, %v963
    %v981 = vmul.f32 %v975, %v964
    %v982 = vmul.f32 %v975, %v965
    %v983 = vmul.f32 %v975, %v966
    %v984 = vmul.f32 %v975, %v967
    %v985 = vmul.f32 %v975, %v968
    %v986 = vmul.f32 %v975, %v969
    %v987 = vmul.f32 %v975, %v970
    %v988 = vmul.f32 %v975, %v971
    %v989 = vmul.f32 %v975, %v972
    %v990 = vmul.f32 %v975, %v973
    %v991 = vmul.f32 %v975, %v974
    %v992 = vadd.f32 %v942, %v976
    %v993 = vadd.f32 %v943, %v977
    %v994 = vadd.f32 %v944, %v978
    %v995 = vadd.f32 %v945, %v979
    %v996 = vadd.f32 %v946, %v980
    %v997 = vadd.f32 %v947, %v981
    %v998 = vadd.f32 %v948, %v982
    %v999 = vadd.f32 %v949, %v983
    %v1000 = vadd.f32 %v950, %v984
    %v1001 = vadd.f32 %v951, %v985
    %v1002 = vadd.f32 %v952, %v986
    %v1003 = vadd.f32 %v953, %v987
    %v1004 = vadd.f32 %v954, %v988
    %v1005 = vadd.f32 %v955, %v989
    %v1006 = vadd.f32 %v956, %v990
    %v1007 = vadd.f32 %v957, %v991
    %s1008 = sld [smem:[#allocation4 + $0x184]]
    %v1009 = vstv %s1008
    %v1010 = vadd.f32 %v992, %v1009
    %v1011 = vadd.f32 %v993, %v1009
    %v1012 = vadd.f32 %v994, %v1009
    %v1013 = vadd.f32 %v995, %v1009
    %v1014 = vadd.f32 %v996, %v1009
    %v1015 = vadd.f32 %v997, %v1009
    %v1016 = vadd.f32 %v998, %v1009
    %v1017 = vadd.f32 %v999, %v1009
    %v1018 = vadd.f32 %v1000, %v1009
    %v1019 = vadd.f32 %v1001, %v1009
    %v1020 = vadd.f32 %v1002, %v1009
    %v1021 = vadd.f32 %v1003, %v1009
    %v1022 = vadd.f32 %v1004, %v1009
    %v1023 = vadd.f32 %v1005, %v1009
    %v1024 = vadd.f32 %v1006, %v1009
    %v1025 = vadd.f32 %v1007, %v1009
    %v1026 = vtanh.pop %v1010
    %v1027 = vtanh.pop %v1011
    %v1028 = vtanh.pop %v1012
    %v1029 = vtanh.pop %v1013
    %v1030 = vtanh.pop %v1014
    %v1031 = vtanh.pop %v1015
    %v1032 = vtanh.pop %v1016
    %v1033 = vtanh.pop %v1017
    %v1034 = vtanh.pop %v1018
    %v1035 = vtanh.pop %v1019
    %v1036 = vtanh.pop %v1020
    %v1037 = vtanh.pop %v1021
    %v1038 = vtanh.pop %v1022
    %v1039 = vtanh.pop %v1023
    %v1040 = vtanh.pop %v1024
    %v1041 = vtanh.pop %v1025
    %v1042 = vadd.f32 %v1026, %v1027
    %v1043 = vadd.f32 %v1042, %v1028
    %v1044 = vadd.f32 %v1043, %v1029
    %v1045 = vadd.f32 %v1044, %v1030
    %v1046 = vadd.f32 %v1045, %v1031
    %v1047 = vadd.f32 %v1046, %v1032
    %v1048 = vadd.f32 %v1047, %v1033
    %v1049 = vadd.f32 %v1048, %v1034
    %v1050 = vadd.f32 %v1049, %v1035
    %v1051 = vadd.f32 %v1050, %v1036
    %v1052 = vadd.f32 %v1051, %v1037
    %v1053 = vadd.f32 %v1052, %v1038
    %v1054 = vadd.f32 %v1053, %v1039
    %v1055 = vadd.f32 %v1054, %v1040
    %v1056 = vadd.f32 %v1055, %v1041
    %v1057 = vrot.slane %v1056, 4
    %v1058 = vadd.f32 %v1056, %v1057
    %v1059 = vrot.slane %v1058, 2
    %v1060 = vadd.f32 %v1058, %v1059
    %v1061 = vrot.slane %v1060, 1
    %v1062 = vadd.f32 %v1060, %v1061
    %1063 = vst [vmem:[#allocation2 + $0x3] sm:$0x1] %v1062
    %v1064 = vmax.f32 %v1026, %v1030
    %v1065 = vmax.f32 %v1027, %v1031
    %v1066 = vmax.f32 %v1028, %v1032
    %v1067 = vmax.f32 %v1029, %v1033
    %v1068 = vmax.f32 %v1064, %v1034
    %v1069 = vmax.f32 %v1065, %v1035
    %v1070 = vmax.f32 %v1066, %v1036
    %v1071 = vmax.f32 %v1067, %v1037
    %v1072 = vmax.f32 %v1068, %v1038
    %v1073 = vmax.f32 %v1069, %v1039
    %v1074 = vmax.f32 %v1070, %v1040
    %v1075 = vmax.f32 %v1071, %v1041
    %v1076 = vmax.f32 %v1072, %v1073
    %v1077 = vmax.f32 %v1074, %v1075
    %v1078 = vmax.f32 %v1076, %v1077
    %v1079 = vrot.slane %v1078, 4
    %v1080 = vmax.f32 %v1078, %v1079
    %v1081 = vrot.slane %v1080, 2
    %v1082 = vmax.f32 %v1080, %v1081
    %v1083 = vrot.slane %v1082, 1
    %v1084 = vmax.f32 %v1082, %v1083
    %1085 = vst [vmem:[#allocation3 + $0x3] sm:$0x1] %v1084
    %s1086 = sld [smem:[#allocation4 + $0x200]]
    %v1087 = vld [vmem:[%s0] sm:$0xff]
    %v1088 = vld [vmem:[%s0 + $0x8] sm:$0xff]
    %v1089 = vld [vmem:[%s0 + $0x10] sm:$0xff]
    %v1090 = vld [vmem:[%s0 + $0x18] sm:$0xff]
    %v1091 = vld [vmem:[%s0 + $0x20] sm:$0xff]
    %v1092 = vld [vmem:[%s0 + $0x28] sm:$0xff]
    %v1093 = vld [vmem:[%s0 + $0x30] sm:$0xff]
    %v1094 = vld [vmem:[%s0 + $0x38] sm:$0xff]
    %v1095 = vld [vmem:[%s0 + $0x40] sm:$0xff]
    %v1096 = vld [vmem:[%s0 + $0x48] sm:$0xff]
    %v1097 = vld [vmem:[%s0 + $0x50] sm:$0xff]
    %v1098 = vld [vmem:[%s0 + $0x58] sm:$0xff]
    %v1099 = vld [vmem:[%s0 + $0x60] sm:$0xff]
    %v1100 = vld [vmem:[%s0 + $0x68] sm:$0xff]
    %v1101 = vld [vmem:[%s0 + $0x70] sm:$0xff]
    %v1102 = vld [vmem:[%s0 + $0x78] sm:$0xff]
    %v1103 = vstv %s1086
    %v1104 = vmul.f32 %v1103, %v1087
    %v1105 = vmul.f32 %v1103, %v1088
    %v1106 = vmul.f32 %v1103, %v1089
    %v1107 = vmul.f32 %v1103, %v1090
    %v1108 = vmul.f32 %v1103, %v1091
    %v1109 = vmul.f32 %v1103, %v1092
    %v1110 = vmul.f32 %v1103, %v1093
    %v1111 = vmul.f32 %v1103, %v1094
    %v1112 = vmul.f32 %v1103, %v1095
    %v1113 = vmul.f32 %v1103, %v1096
    %v1114 = vmul.f32 %v1103, %v1097
    %v1115 = vmul.f32 %v1103, %v1098
    %v1116 = vmul.f32 %v1103, %v1099
    %v1117 = vmul.f32 %v1103, %v1100
    %v1118 = vmul.f32 %v1103, %v1101
    %v1119 = vmul.f32 %v1103, %v1102
    %s1120 = sld [smem:[#allocation4 + $0x201]]
    %v1121 = vld [vmem:[%s70] sm:$0xff]
    %v1122 = vld [vmem:[%s70 + $0x8] sm:$0xff]
    %v1123 = vld [vmem:[%s70 + $0x10] sm:$0xff]
    %v1124 = vld [vmem:[%s70 + $0x18] sm:$0xff]
    %v1125 = vld [vmem:[%s70 + $0x20] sm:$0xff]
    %v1126 = vld [vmem:[%s70 + $0x28] sm:$0xff]
    %v1127 = vld [vmem:[%s70 + $0x30] sm:$0xff]
    %v1128 = vld [vmem:[%s70 + $0x38] sm:$0xff]
    %v1129 = vld [vmem:[%s70 + $0x40] sm:$0xff]
    %v1130 = vld [vmem:[%s70 + $0x48] sm:$0xff]
    %v1131 = vld [vmem:[%s70 + $0x50] sm:$0xff]
    %v1132 = vld [vmem:[%s70 + $0x58] sm:$0xff]
    %v1133 = vld [vmem:[%s70 + $0x60] sm:$0xff]
    %v1134 = vld [vmem:[%s70 + $0x68] sm:$0xff]
    %v1135 = vld [vmem:[%s70 + $0x70] sm:$0xff]
    %v1136 = vld [vmem:[%s70 + $0x78] sm:$0xff]
    %v1137 = vstv %s1120
    %v1138 = vmul.f32 %v1137, %v1121
    %v1139 = vmul.f32 %v1137, %v1122
    %v1140 = vmul.f32 %v1137, %v1123
    %v1141 = vmul.f32 %v1137, %v1124
    %v1142 = vmul.f32 %v1137, %v1125
    %v1143 = vmul.f32 %v1137, %v1126
    %v1144 = vmul.f32 %v1137, %v1127
    %v1145 = vmul.f32 %v1137, %v1128
    %v1146 = vmul.f32 %v1137, %v1129
    %v1147 = vmul.f32 %v1137, %v1130
    %v1148 = vmul.f32 %v1137, %v1131
    %v1149 = vmul.f32 %v1137, %v1132
    %v1150 = vmul.f32 %v1137, %v1133
    %v1151 = vmul.f32 %v1137, %v1134
    %v1152 = vmul.f32 %v1137, %v1135
    %v1153 = vmul.f32 %v1137, %v1136
    %v1154 = vadd.f32 %v1104, %v1138
    %v1155 = vadd.f32 %v1105, %v1139
    %v1156 = vadd.f32 %v1106, %v1140
    %v1157 = vadd.f32 %v1107, %v1141
    %v1158 = vadd.f32 %v1108, %v1142
    %v1159 = vadd.f32 %v1109, %v1143
    %v1160 = vadd.f32 %v1110, %v1144
    %v1161 = vadd.f32 %v1111, %v1145
    %v1162 = vadd.f32 %v1112, %v1146
    %v1163 = vadd.f32 %v1113, %v1147
    %v1164 = vadd.f32 %v1114, %v1148
    %v1165 = vadd.f32 %v1115, %v1149
    %v1166 = vadd.f32 %v1116, %v1150
    %v1167 = vadd.f32 %v1117, %v1151
    %v1168 = vadd.f32 %v1118, %v1152
    %v1169 = vadd.f32 %v1119, %v1153
    %s1170 = sld [smem:[#allocation4 + $0x202]]
    %v1171 = vld [vmem:[%s121] sm:$0xff]
    %v1172 = vld [vmem:[%s121 + $0x8] sm:$0xff]
    %v1173 = vld [vmem:[%s121 + $0x10] sm:$0xff]
    %v1174 = vld [vmem:[%s121 + $0x18] sm:$0xff]
    %v1175 = vld [vmem:[%s121 + $0x20] sm:$0xff]
    %v1176 = vld [vmem:[%s121 + $0x28] sm:$0xff]
    %v1177 = vld [vmem:[%s121 + $0x30] sm:$0xff]
    %v1178 = vld [vmem:[%s121 + $0x38] sm:$0xff]
    %v1179 = vld [vmem:[%s121 + $0x40] sm:$0xff]
    %v1180 = vld [vmem:[%s121 + $0x48] sm:$0xff]
    %v1181 = vld [vmem:[%s121 + $0x50] sm:$0xff]
    %v1182 = vld [vmem:[%s121 + $0x58] sm:$0xff]
    %v1183 = vld [vmem:[%s121 + $0x60] sm:$0xff]
    %v1184 = vld [vmem:[%s121 + $0x68] sm:$0xff]
    %v1185 = vld [vmem:[%s121 + $0x70] sm:$0xff]
    %v1186 = vld [vmem:[%s121 + $0x78] sm:$0xff]
    %v1187 = vstv %s1170
    %v1188 = vmul.f32 %v1187, %v1171
    %v1189 = vmul.f32 %v1187, %v1172
    %v1190 = vmul.f32 %v1187, %v1173
    %v1191 = vmul.f32 %v1187, %v1174
    %v1192 = vmul.f32 %v1187, %v1175
    %v1193 = vmul.f32 %v1187, %v1176
    %v1194 = vmul.f32 %v1187, %v1177
    %v1195 = vmul.f32 %v1187, %v1178
    %v1196 = vmul.f32 %v1187, %v1179
    %v1197 = vmul.f32 %v1187, %v1180
    %v1198 = vmul.f32 %v1187, %v1181
    %v1199 = vmul.f32 %v1187, %v1182
    %v1200 = vmul.f32 %v1187, %v1183
    %v1201 = vmul.f32 %v1187, %v1184
    %v1202 = vmul.f32 %v1187, %v1185
    %v1203 = vmul.f32 %v1187, %v1186
    %v1204 = vadd.f32 %v1154, %v1188
    %v1205 = vadd.f32 %v1155, %v1189
    %v1206 = vadd.f32 %v1156, %v1190
    %v1207 = vadd.f32 %v1157, %v1191
    %v1208 = vadd.f32 %v1158, %v1192
    %v1209 = vadd.f32 %v1159, %v1193
    %v1210 = vadd.f32 %v1160, %v1194
    %v1211 = vadd.f32 %v1161, %v1195
    %v1212 = vadd.f32 %v1162, %v1196
    %v1213 = vadd.f32 %v1163, %v1197
    %v1214 = vadd.f32 %v1164, %v1198
    %v1215 = vadd.f32 %v1165, %v1199
    %v1216 = vadd.f32 %v1166, %v1200
    %v1217 = vadd.f32 %v1167, %v1201
    %v1218 = vadd.f32 %v1168, %v1202
    %v1219 = vadd.f32 %v1169, %v1203
    %s1220 = sld [smem:[#allocation4 + $0x203]]
    %v1221 = vld [vmem:[%s172] sm:$0xff]
    %v1222 = vld [vmem:[%s172 + $0x8] sm:$0xff]
    %v1223 = vld [vmem:[%s172 + $0x10] sm:$0xff]
    %v1224 = vld [vmem:[%s172 + $0x18] sm:$0xff]
    %v1225 = vld [vmem:[%s172 + $0x20] sm:$0xff]
    %v1226 = vld [vmem:[%s172 + $0x28] sm:$0xff]
    %v1227 = vld [vmem:[%s172 + $0x30] sm:$0xff]
    %v1228 = vld [vmem:[%s172 + $0x38] sm:$0xff]
    %v1229 = vld [vmem:[%s172 + $0x40] sm:$0xff]
    %v1230 = vld [vmem:[%s172 + $0x48] sm:$0xff]
    %v1231 = vld [vmem:[%s172 + $0x50] sm:$0xff]
    %v1232 = vld [vmem:[%s172 + $0x58] sm:$0xff]
    %v1233 = vld [vmem:[%s172 + $0x60] sm:$0xff]
    %v1234 = vld [vmem:[%s172 + $0x68] sm:$0xff]
    %v1235 = vld [vmem:[%s172 + $0x70] sm:$0xff]
    %v1236 = vld [vmem:[%s172 + $0x78] sm:$0xff]
    %v1237 = vstv %s1220
    %v1238 = vmul.f32 %v1237, %v1221
    %v1239 = vmul.f32 %v1237, %v1222
    %v1240 = vmul.f32 %v1237, %v1223
    %v1241 = vmul.f32 %v1237, %v1224
    %v1242 = vmul.f32 %v1237, %v1225
    %v1243 = vmul.f32 %v1237, %v1226
    %v1244 = vmul.f32 %v1237, %v1227
    %v1245 = vmul.f32 %v1237, %v1228
    %v1246 = vmul.f32 %v1237, %v1229
    %v1247 = vmul.f32 %v1237, %v1230
    %v1248 = vmul.f32 %v1237, %v1231
    %v1249 = vmul.f32 %v1237, %v1232
    %v1250 = vmul.f32 %v1237, %v1233
    %v1251 = vmul.f32 %v1237, %v1234
    %v1252 = vmul.f32 %v1237, %v1235
    %v1253 = vmul.f32 %v1237, %v1236
    %v1254 = vadd.f32 %v1204, %v1238
    %v1255 = vadd.f32 %v1205, %v1239
    %v1256 = vadd.f32 %v1206, %v1240
    %v1257 = vadd.f32 %v1207, %v1241
    %v1258 = vadd.f32 %v1208, %v1242
    %v1259 = vadd.f32 %v1209, %v1243
    %v1260 = vadd.f32 %v1210, %v1244
    %v1261 = vadd.f32 %v1211, %v1245
    %v1262 = vadd.f32 %v1212, %v1246
    %v1263 = vadd.f32 %v1213, %v1247
    %v1264 = vadd.f32 %v1214, %v1248
    %v1265 = vadd.f32 %v1215, %v1249
    %v1266 = vadd.f32 %v1216, %v1250
    %v1267 = vadd.f32 %v1217, %v1251
    %v1268 = vadd.f32 %v1218, %v1252
    %v1269 = vadd.f32 %v1219, %v1253
    %s1270 = sld [smem:[#allocation4 + $0x204]]
    %v1271 = vstv %s1270
    %v1272 = vadd.f32 %v1254, %v1271
    %v1273 = vadd.f32 %v1255, %v1271
    %v1274 = vadd.f32 %v1256, %v1271
    %v1275 = vadd.f32 %v1257, %v1271
    %v1276 = vadd.f32 %v1258, %v1271
    %v1277 = vadd.f32 %v1259, %v1271
    %v1278 = vadd.f32 %v1260, %v1271
    %v1279 = vadd.f32 %v1261, %v1271
    %v1280 = vadd.f32 %v1262, %v1271
    %v1281 = vadd.f32 %v1263, %v1271
    %v1282 = vadd.f32 %v1264, %v1271
    %v1283 = vadd.f32 %v1265, %v1271
    %v1284 = vadd.f32 %v1266, %v1271
    %v1285 = vadd.f32 %v1267, %v1271
    %v1286 = vadd.f32 %v1268, %v1271
    %v1287 = vadd.f32 %v1269, %v1271
    %v1288 = vtanh.pop %v1272
    %v1289 = vtanh.pop %v1273
    %v1290 = vtanh.pop %v1274
    %v1291 = vtanh.pop %v1275
    %v1292 = vtanh.pop %v1276
    %v1293 = vtanh.pop %v1277
    %v1294 = vtanh.pop %v1278
    %v1295 = vtanh.pop %v1279
    %v1296 = vtanh.pop %v1280
    %v1297 = vtanh.pop %v1281
    %v1298 = vtanh.pop %v1282
    %v1299 = vtanh.pop %v1283
    %v1300 = vtanh.pop %v1284
    %v1301 = vtanh.pop %v1285
    %v1302 = vtanh.pop %v1286
    %v1303 = vtanh.pop %v1287
    %v1304 = vadd.f32 %v1288, %v1289
    %v1305 = vadd.f32 %v1304, %v1290
    %v1306 = vadd.f32 %v1305, %v1291
    %v1307 = vadd.f32 %v1306, %v1292
    %v1308 = vadd.f32 %v1307, %v1293
    %v1309 = vadd.f32 %v1308, %v1294
    %v1310 = vadd.f32 %v1309, %v1295
    %v1311 = vadd.f32 %v1310, %v1296
    %v1312 = vadd.f32 %v1311, %v1297
    %v1313 = vadd.f32 %v1312, %v1298
    %v1314 = vadd.f32 %v1313, %v1299
    %v1315 = vadd.f32 %v1314, %v1300
    %v1316 = vadd.f32 %v1315, %v1301
    %v1317 = vadd.f32 %v1316, %v1302
    %v1318 = vadd.f32 %v1317, %v1303
    %v1319 = vrot.slane %v1318, 4
    %v1320 = vadd.f32 %v1318, %v1319
    %v1321 = vrot.slane %v1320, 2
    %v1322 = vadd.f32 %v1320, %v1321
    %v1323 = vrot.slane %v1322, 1
    %v1324 = vadd.f32 %v1322, %v1323
    %1325 = vst [vmem:[#allocation2 + $0x4] sm:$0x1] %v1324
    %v1326 = vmax.f32 %v1288, %v1292
    %v1327 = vmax.f32 %v1289, %v1293
    %v1328 = vmax.f32 %v1290, %v1294
    %v1329 = vmax.f32 %v1291, %v1295
    %v1330 = vmax.f32 %v1326, %v1296
    %v1331 = vmax.f32 %v1327, %v1297
    %v1332 = vmax.f32 %v1328, %v1298
    %v1333 = vmax.f32 %v1329, %v1299
    %v1334 = vmax.f32 %v1330, %v1300
    %v1335 = vmax.f32 %v1331, %v1301
    %v1336 = vmax.f32 %v1332, %v1302
    %v1337 = vmax.f32 %v1333, %v1303
    %v1338 = vmax.f32 %v1334, %v1335
    %v1339 = vmax.f32 %v1336, %v1337
    %v1340 = vmax.f32 %v1338, %v1339
    %v1341 = vrot.slane %v1340, 4
    %v1342 = vmax.f32 %v1340, %v1341
    %v1343 = vrot.slane %v1342, 2
    %v1344 = vmax.f32 %v1342, %v1343
    %v1345 = vrot.slane %v1344, 1
    %v1346 = vmax.f32 %v1344, %v1345
    %1347 = vst [vmem:[#allocation3 + $0x4] sm:$0x1] %v1346
    %s1348 = sld [smem:[#allocation4 + $0x280]]
    %v1349 = vld [vmem:[%s0] sm:$0xff]
    %v1350 = vld [vmem:[%s0 + $0x8] sm:$0xff]
    %v1351 = vld [vmem:[%s0 + $0x10] sm:$0xff]
    %v1352 = vld [vmem:[%s0 + $0x18] sm:$0xff]
    %v1353 = vld [vmem:[%s0 + $0x20] sm:$0xff]
    %v1354 = vld [vmem:[%s0 + $0x28] sm:$0xff]
    %v1355 = vld [vmem:[%s0 + $0x30] sm:$0xff]
    %v1356 = vld [vmem:[%s0 + $0x38] sm:$0xff]
    %v1357 = vld [vmem:[%s0 + $0x40] sm:$0xff]
    %v1358 = vld [vmem:[%s0 + $0x48] sm:$0xff]
    %v1359 = vld [vmem:[%s0 + $0x50] sm:$0xff]
    %v1360 = vld [vmem:[%s0 + $0x58] sm:$0xff]
    %v1361 = vld [vmem:[%s0 + $0x60] sm:$0xff]
    %v1362 = vld [vmem:[%s0 + $0x68] sm:$0xff]
    %v1363 = vld [vmem:[%s0 + $0x70] sm:$0xff]
    %v1364 = vld [vmem:[%s0 + $0x78] sm:$0xff]
    %v1365 = vstv %s1348
    %v1366 = vmul.f32 %v1365, %v1349
    %v1367 = vmul.f32 %v1365, %v1350
    %v1368 = vmul.f32 %v1365, %v1351
    %v1369 = vmul.f32 %v1365, %v1352
    %v1370 = vmul.f32 %v1365, %v1353
    %v1371 = vmul.f32 %v1365, %v1354
    %v1372 = vmul.f32 %v1365, %v1355
    %v1373 = vmul.f32 %v1365, %v1356
    %v1374 = vmul.f32 %v1365, %v1357
    %v1375 = vmul.f32 %v1365, %v1358
    %v1376 = vmul.f32 %v1365, %v1359
    %v1377 = vmul.f32 %v1365, %v1360
    %v1378 = vmul.f32 %v1365, %v1361
    %v1379 = vmul.f32 %v1365, %v1362
    %v1380 = vmul.f32 %v1365, %v1363
    %v1381 = vmul.f32 %v1365, %v1364
    %s1382 = sld [smem:[#allocation4 + $0x281]]
    %v1383 = vld [vmem:[%s70] sm:$0xff]
    %v1384 = vld [vmem:[%s70 + $0x8] sm:$0xff]
    %v1385 = vld [vmem:[%s70 + $0x10] sm:$0xff]
    %v1386 = vld [vmem:[%s70 + $0x18] sm:$0xff]
    %v1387 = vld [vmem:[%s70 + $0x20] sm:$0xff]
    %v1388 = vld [vmem:[%s70 + $0x28] sm:$0xff]
    %v1389 = vld [vmem:[%s70 + $0x30] sm:$0xff]
    %v1390 = vld [vmem:[%s70 + $0x38] sm:$0xff]
    %v1391 = vld [vmem:[%s70 + $0x40] sm:$0xff]
    %v1392 = vld [vmem:[%s70 + $0x48] sm:$0xff]
    %v1393 = vld [vmem:[%s70 + $0x50] sm:$0xff]
    %v1394 = vld [vmem:[%s70 + $0x58] sm:$0xff]
    %v1395 = vld [vmem:[%s70 + $0x60] sm:$0xff]
    %v1396 = vld [vmem:[%s70 + $0x68] sm:$0xff]
    %v1397 = vld [vmem:[%s70 + $0x70] sm:$0xff]
    %v1398 = vld [vmem:[%s70 + $0x78] sm:$0xff]
    %v1399 = vstv %s1382
    %v1400 = vmul.f32 %v1399, %v1383
    %v1401 = vmul.f32 %v1399, %v1384
    %v1402 = vmul.f32 %v1399, %v1385
    %v1403 = vmul.f32 %v1399, %v1386
    %v1404 = vmul.f32 %v1399, %v1387
    %v1405 = vmul.f32 %v1399, %v1388
    %v1406 = vmul.f32 %v1399, %v1389
    %v1407 = vmul.f32 %v1399, %v1390
    %v1408 = vmul.f32 %v1399, %v1391
    %v1409 = vmul.f32 %v1399, %v1392
    %v1410 = vmul.f32 %v1399, %v1393
    %v1411 = vmul.f32 %v1399, %v1394
    %v1412 = vmul.f32 %v1399, %v1395
    %v1413 = vmul.f32 %v1399, %v1396
    %v1414 = vmul.f32 %v1399, %v1397
    %v1415 = vmul.f32 %v1399, %v1398
    %v1416 = vadd.f32 %v1366, %v1400
    %v1417 = vadd.f32 %v1367, %v1401
    %v1418 = vadd.f32 %v1368, %v1402
    %v1419 = vadd.f32 %v1369, %v1403
    %v1420 = vadd.f32 %v1370, %v1404
    %v1421 = vadd.f32 %v1371, %v1405
    %v1422 = vadd.f32 %v1372, %v1406
    %v1423 = vadd.f32 %v1373, %v1407
    %v1424 = vadd.f32 %v1374, %v1408
    %v1425 = vadd.f32 %v1375, %v1409
    %v1426 = vadd.f32 %v1376, %v1410
    %v1427 = vadd.f32 %v1377, %v1411
    %v1428 = vadd.f32 %v1378, %v1412
    %v1429 = vadd.f32 %v1379, %v1413
    %v1430 = vadd.f32 %v1380, %v1414
    %v1431 = vadd.f32 %v1381, %v1415
    %s1432 = sld [smem:[#allocation4 + $0x282]]
    %v1433 = vld [vmem:[%s121] sm:$0xff]
    %v1434 = vld [vmem:[%s121 + $0x8] sm:$0xff]
    %v1435 = vld [vmem:[%s121 + $0x10] sm:$0xff]
    %v1436 = vld [vmem:[%s121 + $0x18] sm:$0xff]
    %v1437 = vld [vmem:[%s121 + $0x20] sm:$0xff]
    %v1438 = vld [vmem:[%s121 + $0x28] sm:$0xff]
    %v1439 = vld [vmem:[%s121 + $0x30] sm:$0xff]
    %v1440 = vld [vmem:[%s121 + $0x38] sm:$0xff]
    %v1441 = vld [vmem:[%s121 + $0x40] sm:$0xff]
    %v1442 = vld [vmem:[%s121 + $0x48] sm:$0xff]
    %v1443 = vld [vmem:[%s121 + $0x50] sm:$0xff]
    %v1444 = vld [vmem:[%s121 + $0x58] sm:$0xff]
    %v1445 = vld [vmem:[%s121 + $0x60] sm:$0xff]
    %v1446 = vld [vmem:[%s121 + $0x68] sm:$0xff]
    %v1447 = vld [vmem:[%s121 + $0x70] sm:$0xff]
    %v1448 = vld [vmem:[%s121 + $0x78] sm:$0xff]
    %v1449 = vstv %s1432
    %v1450 = vmul.f32 %v1449, %v1433
    %v1451 = vmul.f32 %v1449, %v1434
    %v1452 = vmul.f32 %v1449, %v1435
    %v1453 = vmul.f32 %v1449, %v1436
    %v1454 = vmul.f32 %v1449, %v1437
    %v1455 = vmul.f32 %v1449, %v1438
    %v1456 = vmul.f32 %v1449, %v1439
    %v1457 = vmul.f32 %v1449, %v1440
    %v1458 = vmul.f32 %v1449, %v1441
    %v1459 = vmul.f32 %v1449, %v1442
    %v1460 = vmul.f32 %v1449, %v1443
    %v1461 = vmul.f32 %v1449, %v1444
    %v1462 = vmul.f32 %v1449, %v1445
    %v1463 = vmul.f32 %v1449, %v1446
    %v1464 = vmul.f32 %v1449, %v1447
    %v1465 = vmul.f32 %v1449, %v1448
    %v1466 = vadd.f32 %v1416, %v1450
    %v1467 = vadd.f32 %v1417, %v1451
    %v1468 = vadd.f32 %v1418, %v1452
    %v1469 = vadd.f32 %v1419, %v1453
    %v1470 = vadd.f32 %v1420, %v1454
    %v1471 = vadd.f32 %v1421, %v1455
    %v1472 = vadd.f32 %v1422, %v1456
    %v1473 = vadd.f32 %v1423, %v1457
    %v1474 = vadd.f32 %v1424, %v1458
    %v1475 = vadd.f32 %v1425, %v1459
    %v1476 = vadd.f32 %v1426, %v1460
    %v1477 = vadd.f32 %v1427, %v1461
    %v1478 = vadd.f32 %v1428, %v1462
    %v1479 = vadd.f32 %v1429, %v1463
    %v1480 = vadd.f32 %v1430, %v1464
    %v1481 = vadd.f32 %v1431, %v1465
    %s1482 = sld [smem:[#allocation4 + $0x283]]
    %v1483 = vld [vmem:[%s172] sm:$0xff]
    %v1484 = vld [vmem:[%s172 + $0x8] sm:$0xff]
    %v1485 = vld [vmem:[%s172 + $0x10] sm:$0xff]
    %v1486 = vld [vmem:[%s172 + $0x18] sm:$0xff]
    %v1487 = vld [vmem:[%s172 + $0x20] sm:$0xff]
    %v1488 = vld [vmem:[%s172 + $0x28] sm:$0xff]
    %v1489 = vld [vmem:[%s172 + $0x30] sm:$0xff]
    %v1490 = vld [vmem:[%s172 + $0x38] sm:$0xff]
    %v1491 = vld [vmem:[%s172 + $0x40] sm:$0xff]
    %v1492 = vld [vmem:[%s172 + $0x48] sm:$0xff]
    %v1493 = vld [vmem:[%s172 + $0x50] sm:$0xff]
    %v1494 = vld [vmem:[%s172 + $0x58] sm:$0xff]
    %v1495 = vld [vmem:[%s172 + $0x60] sm:$0xff]
    %v1496 = vld [vmem:[%s172 + $0x68] sm:$0xff]
    %v1497 = vld [vmem:[%s172 + $0x70] sm:$0xff]
    %v1498 = vld [vmem:[%s172 + $0x78] sm:$0xff]
    %v1499 = vstv %s1482
    %v1500 = vmul.f32 %v1499, %v1483
    %v1501 = vmul.f32 %v1499, %v1484
    %v1502 = vmul.f32 %v1499, %v1485
    %v1503 = vmul.f32 %v1499, %v1486
    %v1504 = vmul.f32 %v1499, %v1487
    %v1505 = vmul.f32 %v1499, %v1488
    %v1506 = vmul.f32 %v1499, %v1489
    %v1507 = vmul.f32 %v1499, %v1490
    %v1508 = vmul.f32 %v1499, %v1491
    %v1509 = vmul.f32 %v1499, %v1492
    %v1510 = vmul.f32 %v1499, %v1493
    %v1511 = vmul.f32 %v1499, %v1494
    %v1512 = vmul.f32 %v1499, %v1495
    %v1513 = vmul.f32 %v1499, %v1496
    %v1514 = vmul.f32 %v1499, %v1497
    %v1515 = vmul.f32 %v1499, %v1498
    %v1516 = vadd.f32 %v1466, %v1500
    %v1517 = vadd.f32 %v1467, %v1501
    %v1518 = vadd.f32 %v1468, %v1502
    %v1519 = vadd.f32 %v1469, %v1503
    %v1520 = vadd.f32 %v1470, %v1504
    %v1521 = vadd.f32 %v1471, %v1505
    %v1522 = vadd.f32 %v1472, %v1506
    %v1523 = vadd.f32 %v1473, %v1507
    %v1524 = vadd.f32 %v1474, %v1508
    %v1525 = vadd.f32 %v1475, %v1509
    %v1526 = vadd.f32 %v1476, %v1510
    %v1527 = vadd.f32 %v1477, %v1511
    %v1528 = vadd.f32 %v1478, %v1512
    %v1529 = vadd.f32 %v1479, %v1513
    %v1530 = vadd.f32 %v1480, %v1514
    %v1531 = vadd.f32 %v1481, %v1515
    %s1532 = sld [smem:[#allocation4 + $0x284]]
    %v1533 = vstv %s1532
    %v1534 = vadd.f32 %v1516, %v1533
    %v1535 = vadd.f32 %v1517, %v1533
    %v1536 = vadd.f32 %v1518, %v1533
    %v1537 = vadd.f32 %v1519, %v1533
    %v1538 = vadd.f32 %v1520, %v1533
    %v1539 = vadd.f32 %v1521, %v1533
    %v1540 = vadd.f32 %v1522, %v1533
    %v1541 = vadd.f32 %v1523, %v1533
    %v1542 = vadd.f32 %v1524, %v1533
    %v1543 = vadd.f32 %v1525, %v1533
    %v1544 = vadd.f32 %v1526, %v1533
    %v1545 = vadd.f32 %v1527, %v1533
    %v1546 = vadd.f32 %v1528, %v1533
    %v1547 = vadd.f32 %v1529, %v1533
    %v1548 = vadd.f32 %v1530, %v1533
    %v1549 = vadd.f32 %v1531, %v1533
    %v1550 = vtanh.pop %v1534
    %v1551 = vtanh.pop %v1535
    %v1552 = vtanh.pop %v1536
    %v1553 = vtanh.pop %v1537
    %v1554 = vtanh.pop %v1538
    %v1555 = vtanh.pop %v1539
    %v1556 = vtanh.pop %v1540
    %v1557 = vtanh.pop %v1541
    %v1558 = vtanh.pop %v1542
    %v1559 = vtanh.pop %v1543
    %v1560 = vtanh.pop %v1544
    %v1561 = vtanh.pop %v1545
    %v1562 = vtanh.pop %v1546
    %v1563 = vtanh.pop %v1547
    %v1564 = vtanh.pop %v1548
    %v1565 = vtanh.pop %v1549
    %v1566 = vadd.f32 %v1550, %v1551
    %v1567 = vadd.f32 %v1566, %v1552
    %v1568 = vadd.f32 %v1567, %v1553
    %v1569 = vadd.f32 %v1568, %v1554
    %v1570 = vadd.f32 %v1569, %v1555
    %v1571 = vadd.f32 %v1570, %v1556
    %v1572 = vadd.f32 %v1571, %v1557
    %v1573 = vadd.f32 %v1572, %v1558
    %v1574 = vadd.f32 %v1573, %v1559
    %v1575 = vadd.f32 %v1574, %v1560
    %v1576 = vadd.f32 %v1575, %v1561
    %v1577 = vadd.f32 %v1576, %v1562
    %v1578 = vadd.f32 %v1577, %v1563
    %v1579 = vadd.f32 %v1578, %v1564
    %v1580 = vadd.f32 %v1579, %v1565
    %v1581 = vrot.slane %v1580, 4
    %v1582 = vadd.f32 %v1580, %v1581
    %v1583 = vrot.slane %v1582, 2
    %v1584 = vadd.f32 %v1582, %v1583
    %v1585 = vrot.slane %v1584, 1
    %v1586 = vadd.f32 %v1584, %v1585
    %1587 = vst [vmem:[#allocation2 + $0x5] sm:$0x1] %v1586
    %v1588 = vmax.f32 %v1550, %v1554
    %v1589 = vmax.f32 %v1551, %v1555
    %v1590 = vmax.f32 %v1552, %v1556
    %v1591 = vmax.f32 %v1553, %v1557
    %v1592 = vmax.f32 %v1588, %v1558
    %v1593 = vmax.f32 %v1589, %v1559
    %v1594 = vmax.f32 %v1590, %v1560
    %v1595 = vmax.f32 %v1591, %v1561
    %v1596 = vmax.f32 %v1592, %v1562
    %v1597 = vmax.f32 %v1593, %v1563
    %v1598 = vmax.f32 %v1594, %v1564
    %v1599 = vmax.f32 %v1595, %v1565
    %v1600 = vmax.f32 %v1596, %v1597
    %v1601 = vmax.f32 %v1598, %v1599
    %v1602 = vmax.f32 %v1600, %v1601
    %v1603 = vrot.slane %v1602, 4
    %v1604 = vmax.f32 %v1602, %v1603
    %v1605 = vrot.slane %v1604, 2
    %v1606 = vmax.f32 %v1604, %v1605
    %v1607 = vrot.slane %v1606, 1
    %v1608 = vmax.f32 %v1606, %v1607
    %1609 = vst [vmem:[#allocation3 + $0x5] sm:$0x1] %v1608
    %s1610 = sld [smem:[#allocation4 + $0x300]]
    %v1611 = vld [vmem:[%s0] sm:$0xff]
    %v1612 = vld [vmem:[%s0 + $0x8] sm:$0xff]
    %v1613 = vld [vmem:[%s0 + $0x10] sm:$0xff]
    %v1614 = vld [vmem:[%s0 + $0x18] sm:$0xff]
    %v1615 = vld [vmem:[%s0 + $0x20] sm:$0xff]
    %v1616 = vld [vmem:[%s0 + $0x28] sm:$0xff]
    %v1617 = vld [vmem:[%s0 + $0x30] sm:$0xff]
    %v1618 = vld [vmem:[%s0 + $0x38] sm:$0xff]
    %v1619 = vld [vmem:[%s0 + $0x40] sm:$0xff]
    %v1620 = vld [vmem:[%s0 + $0x48] sm:$0xff]
    %v1621 = vld [vmem:[%s0 + $0x50] sm:$0xff]
    %v1622 = vld [vmem:[%s0 + $0x58] sm:$0xff]
    %v1623 = vld [vmem:[%s0 + $0x60] sm:$0xff]
    %v1624 = vld [vmem:[%s0 + $0x68] sm:$0xff]
    %v1625 = vld [vmem:[%s0 + $0x70] sm:$0xff]
    %v1626 = vld [vmem:[%s0 + $0x78] sm:$0xff]
    %v1627 = vstv %s1610
    %v1628 = vmul.f32 %v1627, %v1611
    %v1629 = vmul.f32 %v1627, %v1612
    %v1630 = vmul.f32 %v1627, %v1613
    %v1631 = vmul.f32 %v1627, %v1614
    %v1632 = vmul.f32 %v1627, %v1615
    %v1633 = vmul.f32 %v1627, %v1616
    %v1634 = vmul.f32 %v1627, %v1617
    %v1635 = vmul.f32 %v1627, %v1618
    %v1636 = vmul.f32 %v1627, %v1619
    %v1637 = vmul.f32 %v1627, %v1620
    %v1638 = vmul.f32 %v1627, %v1621
    %v1639 = vmul.f32 %v1627, %v1622
    %v1640 = vmul.f32 %v1627, %v1623
    %v1641 = vmul.f32 %v1627, %v1624
    %v1642 = vmul.f32 %v1627, %v1625
    %v1643 = vmul.f32 %v1627, %v1626
    %s1644 = sld [smem:[#allocation4 + $0x301]]
    %v1645 = vld [vmem:[%s70] sm:$0xff]
    %v1646 = vld [vmem:[%s70 + $0x8] sm:$0xff]
    %v1647 = vld [vmem:[%s70 + $0x10] sm:$0xff]
    %v1648 = vld [vmem:[%s70 + $0x18] sm:$0xff]
    %v1649 = vld [vmem:[%s70 + $0x20] sm:$0xff]
    %v1650 = vld [vmem:[%s70 + $0x28] sm:$0xff]
    %v1651 = vld [vmem:[%s70 + $0x30] sm:$0xff]
    %v1652 = vld [vmem:[%s70 + $0x38] sm:$0xff]
    %v1653 = vld [vmem:[%s70 + $0x40] sm:$0xff]
    %v1654 = vld [vmem:[%s70 + $0x48] sm:$0xff]
    %v1655 = vld [vmem:[%s70 + $0x50] sm:$0xff]
    %v1656 = vld [vmem:[%s70 + $0x58] sm:$0xff]
    %v1657 = vld [vmem:[%s70 + $0x60] sm:$0xff]
    %v1658 = vld [vmem:[%s70 + $0x68] sm:$0xff]
    %v1659 = vld [vmem:[%s70 + $0x70] sm:$0xff]
    %v1660 = vld [vmem:[%s70 + $0x78] sm:$0xff]
    %v1661 = vstv %s1644
    %v1662 = vmul.f32 %v1661, %v1645
    %v1663 = vmul.f32 %v1661, %v1646
    %v1664 = vmul.f32 %v1661, %v1647
    %v1665 = vmul.f32 %v1661, %v1648
    %v1666 = vmul.f32 %v1661, %v1649
    %v1667 = vmul.f32 %v1661, %v1650
    %v1668 = vmul.f32 %v1661, %v1651
    %v1669 = vmul.f32 %v1661, %v1652
    %v1670 = vmul.f32 %v1661, %v1653
    %v1671 = vmul.f32 %v1661, %v1654
    %v1672 = vmul.f32 %v1661, %v1655
    %v1673 = vmul.f32 %v1661, %v1656
    %v1674 = vmul.f32 %v1661, %v1657
    %v1675 = vmul.f32 %v1661, %v1658
    %v1676 = vmul.f32 %v1661, %v1659
    %v1677 = vmul.f32 %v1661, %v1660
    %v1678 = vadd.f32 %v1628, %v1662
    %v1679 = vadd.f32 %v1629, %v1663
    %v1680 = vadd.f32 %v1630, %v1664
    %v1681 = vadd.f32 %v1631, %v1665
    %v1682 = vadd.f32 %v1632, %v1666
    %v1683 = vadd.f32 %v1633, %v1667
    %v1684 = vadd.f32 %v1634, %v1668
    %v1685 = vadd.f32 %v1635, %v1669
    %v1686 = vadd.f32 %v1636, %v1670
    %v1687 = vadd.f32 %v1637, %v1671
    %v1688 = vadd.f32 %v1638, %v1672
    %v1689 = vadd.f32 %v1639, %v1673
    %v1690 = vadd.f32 %v1640, %v1674
    %v1691 = vadd.f32 %v1641, %v1675
    %v1692 = vadd.f32 %v1642, %v1676
    %v1693 = vadd.f32 %v1643, %v1677
    %s1694 = sld [smem:[#allocation4 + $0x302]]
    %v1695 = vld [vmem:[%s121] sm:$0xff]
    %v1696 = vld [vmem:[%s121 + $0x8] sm:$0xff]
    %v1697 = vld [vmem:[%s121 + $0x10] sm:$0xff]
    %v1698 = vld [vmem:[%s121 + $0x18] sm:$0xff]
    %v1699 = vld [vmem:[%s121 + $0x20] sm:$0xff]
    %v1700 = vld [vmem:[%s121 + $0x28] sm:$0xff]
    %v1701 = vld [vmem:[%s121 + $0x30] sm:$0xff]
    %v1702 = vld [vmem:[%s121 + $0x38] sm:$0xff]
    %v1703 = vld [vmem:[%s121 + $0x40] sm:$0xff]
    %v1704 = vld [vmem:[%s121 + $0x48] sm:$0xff]
    %v1705 = vld [vmem:[%s121 + $0x50] sm:$0xff]
    %v1706 = vld [vmem:[%s121 + $0x58] sm:$0xff]
    %v1707 = vld [vmem:[%s121 + $0x60] sm:$0xff]
    %v1708 = vld [vmem:[%s121 + $0x68] sm:$0xff]
    %v1709 = vld [vmem:[%s121 + $0x70] sm:$0xff]
    %v1710 = vld [vmem:[%s121 + $0x78] sm:$0xff]
    %v1711 = vstv %s1694
    %v1712 = vmul.f32 %v1711, %v1695
    %v1713 = vmul.f32 %v1711, %v1696
    %v1714 = vmul.f32 %v1711, %v1697
    %v1715 = vmul.f32 %v1711, %v1698
    %v1716 = vmul.f32 %v1711, %v1699
    %v1717 = vmul.f32 %v1711, %v1700
    %v1718 = vmul.f32 %v1711, %v1701
    %v1719 = vmul.f32 %v1711, %v1702
    %v1720 = vmul.f32 %v1711, %v1703
    %v1721 = vmul.f32 %v1711, %v1704
    %v1722 = vmul.f32 %v1711, %v1705
    %v1723 = vmul.f32 %v1711, %v1706
    %v1724 = vmul.f32 %v1711, %v1707
    %v1725 = vmul.f32 %v1711, %v1708
    %v1726 = vmul.f32 %v1711, %v1709
    %v1727 = vmul.f32 %v1711, %v1710
    %v1728 = vadd.f32 %v1678, %v1712
    %v1729 = vadd.f32 %v1679, %v1713
    %v1730 = vadd.f32 %v1680, %v1714
    %v1731 = vadd.f32 %v1681, %v1715
    %v1732 = vadd.f32 %v1682, %v1716
    %v1733 = vadd.f32 %v1683, %v1717
    %v1734 = vadd.f32 %v1684, %v1718
    %v1735 = vadd.f32 %v1685, %v1719
    %v1736 = vadd.f32 %v1686, %v1720
    %v1737 = vadd.f32 %v1687, %v1721
    %v1738 = vadd.f32 %v1688, %v1722
    %v1739 = vadd.f32 %v1689, %v1723
    %v1740 = vadd.f32 %v1690, %v1724
    %v1741 = vadd.f32 %v1691, %v1725
    %v1742 = vadd.f32 %v1692, %v1726
    %v1743 = vadd.f32 %v1693, %v1727
    %s1744 = sld [smem:[#allocation4 + $0x303]]
    %v1745 = vld [vmem:[%s172] sm:$0xff]
    %v1746 = vld [vmem:[%s172 + $0x8] sm:$0xff]
    %v1747 = vld [vmem:[%s172 + $0x10] sm:$0xff]
    %v1748 = vld [vmem:[%s172 + $0x18] sm:$0xff]
    %v1749 = vld [vmem:[%s172 + $0x20] sm:$0xff]
    %v1750 = vld [vmem:[%s172 + $0x28] sm:$0xff]
    %v1751 = vld [vmem:[%s172 + $0x30] sm:$0xff]
    %v1752 = vld [vmem:[%s172 + $0x38] sm:$0xff]
    %v1753 = vld [vmem:[%s172 + $0x40] sm:$0xff]
    %v1754 = vld [vmem:[%s172 + $0x48] sm:$0xff]
    %v1755 = vld [vmem:[%s172 + $0x50] sm:$0xff]
    %v1756 = vld [vmem:[%s172 + $0x58] sm:$0xff]
    %v1757 = vld [vmem:[%s172 + $0x60] sm:$0xff]
    %v1758 = vld [vmem:[%s172 + $0x68] sm:$0xff]
    %v1759 = vld [vmem:[%s172 + $0x70] sm:$0xff]
    %v1760 = vld [vmem:[%s172 + $0x78] sm:$0xff]
    %v1761 = vstv %s1744
    %v1762 = vmul.f32 %v1761, %v1745
    %v1763 = vmul.f32 %v1761, %v1746
    %v1764 = vmul.f32 %v1761, %v1747
    %v1765 = vmul.f32 %v1761, %v1748
    %v1766 = vmul.f32 %v1761, %v1749
    %v1767 = vmul.f32 %v1761, %v1750
    %v1768 = vmul.f32 %v1761, %v1751
    %v1769 = vmul.f32 %v1761, %v1752
    %v1770 = vmul.f32 %v1761, %v1753
    %v1771 = vmul.f32 %v1761, %v1754
    %v1772 = vmul.f32 %v1761, %v1755
    %v1773 = vmul.f32 %v1761, %v1756
    %v1774 = vmul.f32 %v1761, %v1757
    %v1775 = vmul.f32 %v1761, %v1758
    %v1776 = vmul.f32 %v1761, %v1759
    %v1777 = vmul.f32 %v1761, %v1760
    %v1778 = vadd.f32 %v1728, %v1762
    %v1779 = vadd.f32 %v1729, %v1763
    %v1780 = vadd.f32 %v1730, %v1764
    %v1781 = vadd.f32 %v1731, %v1765
    %v1782 = vadd.f32 %v1732, %v1766
    %v1783 = vadd.f32 %v1733, %v1767
    %v1784 = vadd.f32 %v1734, %v1768
    %v1785 = vadd.f32 %v1735, %v1769
    %v1786 = vadd.f32 %v1736, %v1770
    %v1787 = vadd.f32 %v1737, %v1771
    %v1788 = vadd.f32 %v1738, %v1772
    %v1789 = vadd.f32 %v1739, %v1773
    %v1790 = vadd.f32 %v1740, %v1774
    %v1791 = vadd.f32 %v1741, %v1775
    %v1792 = vadd.f32 %v1742, %v1776
    %v1793 = vadd.f32 %v1743, %v1777
    %s1794 = sld [smem:[#allocation4 + $0x304]]
    %v1795 = vstv %s1794
    %v1796 = vadd.f32 %v1778, %v1795
    %v1797 = vadd.f32 %v1779, %v1795
    %v1798 = vadd.f32 %v1780, %v1795
    %v1799 = vadd.f32 %v1781, %v1795
    %v1800 = vadd.f32 %v1782, %v1795
    %v1801 = vadd.f32 %v1783, %v1795
    %v1802 = vadd.f32 %v1784, %v1795
    %v1803 = vadd.f32 %v1785, %v1795
    %v1804 = vadd.f32 %v1786, %v1795
    %v1805 = vadd.f32 %v1787, %v1795
    %v1806 = vadd.f32 %v1788, %v1795
    %v1807 = vadd.f32 %v1789, %v1795
    %v1808 = vadd.f32 %v1790, %v1795
    %v1809 = vadd.f32 %v1791, %v1795
    %v1810 = vadd.f32 %v1792, %v1795
    %v1811 = vadd.f32 %v1793, %v1795
    %v1812 = vtanh.pop %v1796
    %v1813 = vtanh.pop %v1797
    %v1814 = vtanh.pop %v1798
    %v1815 = vtanh.pop %v1799
    %v1816 = vtanh.pop %v1800
    %v1817 = vtanh.pop %v1801
    %v1818 = vtanh.pop %v1802
    %v1819 = vtanh.pop %v1803
    %v1820 = vtanh.pop %v1804
    %v1821 = vtanh.pop %v1805
    %v1822 = vtanh.pop %v1806
    %v1823 = vtanh.pop %v1807
    %v1824 = vtanh.pop %v1808
    %v1825 = vtanh.pop %v1809
    %v1826 = vtanh.pop %v1810
    %v1827 = vtanh.pop %v1811
    %v1828 = vadd.f32 %v1812, %v1813
    %v1829 = vadd.f32 %v1828, %v1814
    %v1830 = vadd.f32 %v1829, %v1815
    %v1831 = vadd.f32 %v1830, %v1816
    %v1832 = vadd.f32 %v1831, %v1817
    %v1833 = vadd.f32 %v1832, %v1818
    %v1834 = vadd.f32 %v1833, %v1819
    %v1835 = vadd.f32 %v1834, %v1820
    %v1836 = vadd.f32 %v1835, %v1821
    %v1837 = vadd.f32 %v1836, %v1822
    %v1838 = vadd.f32 %v1837, %v1823
    %v1839 = vadd.f32 %v1838, %v1824
    %v1840 = vadd.f32 %v1839, %v1825
    %v1841 = vadd.f32 %v1840, %v1826
    %v1842 = vadd.f32 %v1841, %v1827
    %v1843 = vrot.slane %v1842, 4
    %v1844 = vadd.f32 %v1842, %v1843
    %v1845 = vrot.slane %v1844, 2
    %v1846 = vadd.f32 %v1844, %v1845
    %v1847 = vrot.slane %v1846, 1
    %v1848 = vadd.f32 %v1846, %v1847
    %1849 = vst [vmem:[#allocation2 + $0x6] sm:$0x1] %v1848
    %v1850 = vmax.f32 %v1812, %v1816
    %v1851 = vmax.f32 %v1813, %v1817
    %v1852 = vmax.f32 %v1814, %v1818
    %v1853 = vmax.f32 %v1815, %v1819
    %v1854 = vmax.f32 %v1850, %v1820
    %v1855 = vmax.f32 %v1851, %v1821
    %v1856 = vmax.f32 %v1852, %v1822
    %v1857 = vmax.f32 %v1853, %v1823
    %v1858 = vmax.f32 %v1854, %v1824
    %v1859 = vmax.f32 %v1855, %v1825
    %v1860 = vmax.f32 %v1856, %v1826
    %v1861 = vmax.f32 %v1857, %v1827
    %v1862 = vmax.f32 %v1858, %v1859
    %v1863 = vmax.f32 %v1860, %v1861
    %v1864 = vmax.f32 %v1862, %v1863
    %v1865 = vrot.slane %v1864, 4
    %v1866 = vmax.f32 %v1864, %v1865
    %v1867 = vrot.slane %v1866, 2
    %v1868 = vmax.f32 %v1866, %v1867
    %v1869 = vrot.slane %v1868, 1
    %v1870 = vmax.f32 %v1868, %v1869
    %1871 = vst [vmem:[#allocation3 + $0x6] sm:$0x1] %v1870
    %s1872 = sld [smem:[#allocation4 + $0x380]]
    %v1873 = vld [vmem:[%s0] sm:$0xff]
    %v1874 = vld [vmem:[%s0 + $0x8] sm:$0xff]
    %v1875 = vld [vmem:[%s0 + $0x10] sm:$0xff]
    %v1876 = vld [vmem:[%s0 + $0x18] sm:$0xff]
    %v1877 = vld [vmem:[%s0 + $0x20] sm:$0xff]
    %v1878 = vld [vmem:[%s0 + $0x28] sm:$0xff]
    %v1879 = vld [vmem:[%s0 + $0x30] sm:$0xff]
    %v1880 = vld [vmem:[%s0 + $0x38] sm:$0xff]
    %v1881 = vld [vmem:[%s0 + $0x40] sm:$0xff]
    %v1882 = vld [vmem:[%s0 + $0x48] sm:$0xff]
    %v1883 = vld [vmem:[%s0 + $0x50] sm:$0xff]
    %v1884 = vld [vmem:[%s0 + $0x58] sm:$0xff]
    %v1885 = vld [vmem:[%s0 + $0x60] sm:$0xff]
    %v1886 = vld [vmem:[%s0 + $0x68] sm:$0xff]
    %v1887 = vld [vmem:[%s0 + $0x70] sm:$0xff]
    %v1888 = vld [vmem:[%s0 + $0x78] sm:$0xff]
    %v1889 = vstv %s1872
    %v1890 = vmul.f32 %v1889, %v1873
    %v1891 = vmul.f32 %v1889, %v1874
    %v1892 = vmul.f32 %v1889, %v1875
    %v1893 = vmul.f32 %v1889, %v1876
    %v1894 = vmul.f32 %v1889, %v1877
    %v1895 = vmul.f32 %v1889, %v1878
    %v1896 = vmul.f32 %v1889, %v1879
    %v1897 = vmul.f32 %v1889, %v1880
    %v1898 = vmul.f32 %v1889, %v1881
    %v1899 = vmul.f32 %v1889, %v1882
    %v1900 = vmul.f32 %v1889, %v1883
    %v1901 = vmul.f32 %v1889, %v1884
    %v1902 = vmul.f32 %v1889, %v1885
    %v1903 = vmul.f32 %v1889, %v1886
    %v1904 = vmul.f32 %v1889, %v1887
    %v1905 = vmul.f32 %v1889, %v1888
    %s1906 = sld [smem:[#allocation4 + $0x381]]
    %v1907 = vld [vmem:[%s70] sm:$0xff]
    %v1908 = vld [vmem:[%s70 + $0x8] sm:$0xff]
    %v1909 = vld [vmem:[%s70 + $0x10] sm:$0xff]
    %v1910 = vld [vmem:[%s70 + $0x18] sm:$0xff]
    %v1911 = vld [vmem:[%s70 + $0x20] sm:$0xff]
    %v1912 = vld [vmem:[%s70 + $0x28] sm:$0xff]
    %v1913 = vld [vmem:[%s70 + $0x30] sm:$0xff]
    %v1914 = vld [vmem:[%s70 + $0x38] sm:$0xff]
    %v1915 = vld [vmem:[%s70 + $0x40] sm:$0xff]
    %v1916 = vld [vmem:[%s70 + $0x48] sm:$0xff]
    %v1917 = vld [vmem:[%s70 + $0x50] sm:$0xff]
    %v1918 = vld [vmem:[%s70 + $0x58] sm:$0xff]
    %v1919 = vld [vmem:[%s70 + $0x60] sm:$0xff]
    %v1920 = vld [vmem:[%s70 + $0x68] sm:$0xff]
    %v1921 = vld [vmem:[%s70 + $0x70] sm:$0xff]
    %v1922 = vld [vmem:[%s70 + $0x78] sm:$0xff]
    %v1923 = vstv %s1906
    %v1924 = vmul.f32 %v1923, %v1907
    %v1925 = vmul.f32 %v1923, %v1908
    %v1926 = vmul.f32 %v1923, %v1909
    %v1927 = vmul.f32 %v1923, %v1910
    %v1928 = vmul.f32 %v1923, %v1911
    %v1929 = vmul.f32 %v1923, %v1912
    %v1930 = vmul.f32 %v1923, %v1913
    %v1931 = vmul.f32 %v1923, %v1914
    %v1932 = vmul.f32 %v1923, %v1915
    %v1933 = vmul.f32 %v1923, %v1916
    %v1934 = vmul.f32 %v1923, %v1917
    %v1935 = vmul.f32 %v1923, %v1918
    %v1936 = vmul.f32 %v1923, %v1919
    %v1937 = vmul.f32 %v1923, %v1920
    %v1938 = vmul.f32 %v1923, %v1921
    %v1939 = vmul.f32 %v1923, %v1922
    %v1940 = vadd.f32 %v1890, %v1924
    %v1941 = vadd.f32 %v1891, %v1925
    %v1942 = vadd.f32 %v1892, %v1926
    %v1943 = vadd.f32 %v1893, %v1927
    %v1944 = vadd.f32 %v1894, %v1928
    %v1945 = vadd.f32 %v1895, %v1929
    %v1946 = vadd.f32 %v1896, %v1930
    %v1947 = vadd.f32 %v1897, %v1931
    %v1948 = vadd.f32 %v1898, %v1932
    %v1949 = vadd.f32 %v1899, %v1933
    %v1950 = vadd.f32 %v1900, %v1934
    %v1951 = vadd.f32 %v1901, %v1935
    %v1952 = vadd.f32 %v1902, %v1936
    %v1953 = vadd.f32 %v1903, %v1937
    %v1954 = vadd.f32 %v1904, %v1938
    %v1955 = vadd.f32 %v1905, %v1939
    %s1956 = sld [smem:[#allocation4 + $0x382]]
    %v1957 = vld [vmem:[%s121] sm:$0xff]
    %v1958 = vld [vmem:[%s121 + $0x8] sm:$0xff]
    %v1959 = vld [vmem:[%s121 + $0x10] sm:$0xff]
    %v1960 = vld [vmem:[%s121 + $0x18] sm:$0xff]
    %v1961 = vld [vmem:[%s121 + $0x20] sm:$0xff]
    %v1962 = vld [vmem:[%s121 + $0x28] sm:$0xff]
    %v1963 = vld [vmem:[%s121 + $0x30] sm:$0xff]
    %v1964 = vld [vmem:[%s121 + $0x38] sm:$0xff]
    %v1965 = vld [vmem:[%s121 + $0x40] sm:$0xff]
    %v1966 = vld [vmem:[%s121 + $0x48] sm:$0xff]
    %v1967 = vld [vmem:[%s121 + $0x50] sm:$0xff]
    %v1968 = vld [vmem:[%s121 + $0x58] sm:$0xff]
    %v1969 = vld [vmem:[%s121 + $0x60] sm:$0xff]
    %v1970 = vld [vmem:[%s121 + $0x68] sm:$0xff]
    %v1971 = vld [vmem:[%s121 + $0x70] sm:$0xff]
    %v1972 = vld [vmem:[%s121 + $0x78] sm:$0xff]
    %v1973 = vstv %s1956
    %v1974 = vmul.f32 %v1973, %v1957
    %v1975 = vmul.f32 %v1973, %v1958
    %v1976 = vmul.f32 %v1973, %v1959
    %v1977 = vmul.f32 %v1973, %v1960
    %v1978 = vmul.f32 %v1973, %v1961
    %v1979 = vmul.f32 %v1973, %v1962
    %v1980 = vmul.f32 %v1973, %v1963
    %v1981 = vmul.f32 %v1973, %v1964
    %v1982 = vmul.f32 %v1973, %v1965
    %v1983 = vmul.f32 %v1973, %v1966
    %v1984 = vmul.f32 %v1973, %v1967
    %v1985 = vmul.f32 %v1973, %v1968
    %v1986 = vmul.f32 %v1973, %v1969
    %v1987 = vmul.f32 %v1973, %v1970
    %v1988 = vmul.f32 %v1973, %v1971
    %v1989 = vmul.f32 %v1973, %v1972
    %v1990 = vadd.f32 %v1940, %v1974
    %v1991 = vadd.f32 %v1941, %v1975
    %v1992 = vadd.f32 %v1942, %v1976
    %v1993 = vadd.f32 %v1943, %v1977
    %v1994 = vadd.f32 %v1944, %v1978
    %v1995 = vadd.f32 %v1945, %v1979
    %v1996 = vadd.f32 %v1946, %v1980
    %v1997 = vadd.f32 %v1947, %v1981
    %v1998 = vadd.f32 %v1948, %v1982
    %v1999 = vadd.f32 %v1949, %v1983
    %v2000 = vadd.f32 %v1950, %v1984
    %v2001 = vadd.f32 %v1951, %v1985
    %v2002 = vadd.f32 %v1952, %v1986
    %v2003 = vadd.f32 %v1953, %v1987
    %v2004 = vadd.f32 %v1954, %v1988
    %v2005 = vadd.f32 %v1955, %v1989
    %s2006 = sld [smem:[#allocation4 + $0x383]]
    %v2007 = vld [vmem:[%s172] sm:$0xff]
    %v2008 = vld [vmem:[%s172 + $0x8] sm:$0xff]
    %v2009 = vld [vmem:[%s172 + $0x10] sm:$0xff]
    %v2010 = vld [vmem:[%s172 + $0x18] sm:$0xff]
    %v2011 = vld [vmem:[%s172 + $0x20] sm:$0xff]
    %v2012 = vld [vmem:[%s172 + $0x28] sm:$0xff]
    %v2013 = vld [vmem:[%s172 + $0x30] sm:$0xff]
    %v2014 = vld [vmem:[%s172 + $0x38] sm:$0xff]
    %v2015 = vld [vmem:[%s172 + $0x40] sm:$0xff]
    %v2016 = vld [vmem:[%s172 + $0x48] sm:$0xff]
    %v2017 = vld [vmem:[%s172 + $0x50] sm:$0xff]
    %v2018 = vld [vmem:[%s172 + $0x58] sm:$0xff]
    %v2019 = vld [vmem:[%s172 + $0x60] sm:$0xff]
    %v2020 = vld [vmem:[%s172 + $0x68] sm:$0xff]
    %v2021 = vld [vmem:[%s172 + $0x70] sm:$0xff]
    %v2022 = vld [vmem:[%s172 + $0x78] sm:$0xff]
    %v2023 = vstv %s2006
    %v2024 = vmul.f32 %v2023, %v2007
    %v2025 = vmul.f32 %v2023, %v2008
    %v2026 = vmul.f32 %v2023, %v2009
    %v2027 = vmul.f32 %v2023, %v2010
    %v2028 = vmul.f32 %v2023, %v2011
    %v2029 = vmul.f32 %v2023, %v2012
    %v2030 = vmul.f32 %v2023, %v2013
    %v2031 = vmul.f32 %v2023, %v2014
    %v2032 = vmul.f32 %v2023, %v2015
    %v2033 = vmul.f32 %v2023, %v2016
    %v2034 = vmul.f32 %v2023, %v2017
    %v2035 = vmul.f32 %v2023, %v2018
    %v2036 = vmul.f32 %v2023, %v2019
    %v2037 = vmul.f32 %v2023, %v2020
    %v2038 = vmul.f32 %v2023, %v2021
    %v2039 = vmul.f32 %v2023, %v2022
    %v2040 = vadd.f32 %v1990, %v2024
    %v2041 = vadd.f32 %v1991, %v2025
    %v2042 = vadd.f32 %v1992, %v2026
    %v2043 = vadd.f32 %v1993, %v2027
    %v2044 = vadd.f32 %v1994, %v2028
    %v2045 = vadd.f32 %v1995, %v2029
    %v2046 = vadd.f32 %v1996, %v2030
    %v2047 = vadd.f32 %v1997, %v2031
    %v2048 = vadd.f32 %v1998, %v2032
    %v2049 = vadd.f32 %v1999, %v2033
    %v2050 = vadd.f32 %v2000, %v2034
    %v2051 = vadd.f32 %v2001, %v2035
    %v2052 = vadd.f32 %v2002, %v2036
    %v2053 = vadd.f32 %v2003, %v2037
    %v2054 = vadd.f32 %v2004, %v2038
    %v2055 = vadd.f32 %v2005, %v2039
    %s2056 = sld [smem:[#allocation4 + $0x384]]
    %v2057 = vstv %s2056
    %v2058 = vadd.f32 %v2040, %v2057
    %v2059 = vadd.f32 %v2041, %v2057
    %v2060 = vadd.f32 %v2042, %v2057
    %v2061 = vadd.f32 %v2043, %v2057
    %v2062 = vadd.f32 %v2044, %v2057
    %v2063 = vadd.f32 %v2045, %v2057
    %v2064 = vadd.f32 %v2046, %v2057
    %v2065 = vadd.f32 %v2047, %v2057
    %v2066 = vadd.f32 %v2048, %v2057
    %v2067 = vadd.f32 %v2049, %v2057
    %v2068 = vadd.f32 %v2050, %v2057
    %v2069 = vadd.f32 %v2051, %v2057
    %v2070 = vadd.f32 %v2052, %v2057
    %v2071 = vadd.f32 %v2053, %v2057
    %v2072 = vadd.f32 %v2054, %v2057
    %v2073 = vadd.f32 %v2055, %v2057
    %v2074 = vtanh.pop %v2058
    %v2075 = vtanh.pop %v2059
    %v2076 = vtanh.pop %v2060
    %v2077 = vtanh.pop %v2061
    %v2078 = vtanh.pop %v2062
    %v2079 = vtanh.pop %v2063
    %v2080 = vtanh.pop %v2064
    %v2081 = vtanh.pop %v2065
    %v2082 = vtanh.pop %v2066
    %v2083 = vtanh.pop %v2067
    %v2084 = vtanh.pop %v2068
    %v2085 = vtanh.pop %v2069
    %v2086 = vtanh.pop %v2070
    %v2087 = vtanh.pop %v2071
    %v2088 = vtanh.pop %v2072
    %v2089 = vtanh.pop %v2073
    %v2090 = vadd.f32 %v2074, %v2075
    %v2091 = vadd.f32 %v2090, %v2076
    %v2092 = vadd.f32 %v2091, %v2077
    %v2093 = vadd.f32 %v2092, %v2078
    %v2094 = vadd.f32 %v2093, %v2079
    %v2095 = vadd.f32 %v2094, %v2080
    %v2096 = vadd.f32 %v2095, %v2081
    %v2097 = vadd.f32 %v2096, %v2082
    %v2098 = vadd.f32 %v2097, %v2083
    %v2099 = vadd.f32 %v2098, %v2084
    %v2100 = vadd.f32 %v2099, %v2085
    %v2101 = vadd.f32 %v2100, %v2086
    %v2102 = vadd.f32 %v2101, %v2087
    %v2103 = vadd.f32 %v2102, %v2088
    %v2104 = vadd.f32 %v2103, %v2089
    %v2105 = vrot.slane %v2104, 4
    %v2106 = vadd.f32 %v2104, %v2105
    %v2107 = vrot.slane %v2106, 2
    %v2108 = vadd.f32 %v2106, %v2107
    %v2109 = vrot.slane %v2108, 1
    %v2110 = vadd.f32 %v2108, %v2109
    %2111 = vst [vmem:[#allocation2 + $0x7] sm:$0x1] %v2110
    %v2112 = vmax.f32 %v2074, %v2078
    %v2113 = vmax.f32 %v2075, %v2079
    %v2114 = vmax.f32 %v2076, %v2080
    %v2115 = vmax.f32 %v2077, %v2081
    %v2116 = vmax.f32 %v2112, %v2082
    %v2117 = vmax.f32 %v2113, %v2083
    %v2118 = vmax.f32 %v2114, %v2084
    %v2119 = vmax.f32 %v2115, %v2085
    %v2120 = vmax.f32 %v2116, %v2086
    %v2121 = vmax.f32 %v2117, %v2087
    %v2122 = vmax.f32 %v2118, %v2088
    %v2123 = vmax.f32 %v2119, %v2089
    %v2124 = vmax.f32 %v2120, %v2121
    %v2125 = vmax.f32 %v2122, %v2123
    %v2126 = vmax.f32 %v2124, %v2125
    %v2127 = vrot.slane %v2126, 4
    %v2128 = vmax.f32 %v2126, %v2127
    %v2129 = vrot.slane %v2128, 2
    %v2130 = vmax.f32 %v2128, %v2129
    %v2131 = vrot.slane %v2130, 1
    %v2132 = vmax.f32 %v2130, %v2131
    %2133 = vst [vmem:[#allocation3 + $0x7] sm:$0x1] %v2132
    %s2134 = sld [smem:[#allocation4 + $0x400]]
    %v2135 = vld [vmem:[%s0] sm:$0xff]
    %v2136 = vld [vmem:[%s0 + $0x8] sm:$0xff]
    %v2137 = vld [vmem:[%s0 + $0x10] sm:$0xff]
    %v2138 = vld [vmem:[%s0 + $0x18] sm:$0xff]
    %v2139 = vld [vmem:[%s0 + $0x20] sm:$0xff]
    %v2140 = vld [vmem:[%s0 + $0x28] sm:$0xff]
    %v2141 = vld [vmem:[%s0 + $0x30] sm:$0xff]
    %v2142 = vld [vmem:[%s0 + $0x38] sm:$0xff]
    %v2143 = vld [vmem:[%s0 + $0x40] sm:$0xff]
    %v2144 = vld [vmem:[%s0 + $0x48] sm:$0xff]
    %v2145 = vld [vmem:[%s0 + $0x50] sm:$0xff]
    %v2146 = vld [vmem:[%s0 + $0x58] sm:$0xff]
    %v2147 = vld [vmem:[%s0 + $0x60] sm:$0xff]
    %v2148 = vld [vmem:[%s0 + $0x68] sm:$0xff]
    %v2149 = vld [vmem:[%s0 + $0x70] sm:$0xff]
    %v2150 = vld [vmem:[%s0 + $0x78] sm:$0xff]
    %v2151 = vstv %s2134
    %v2152 = vmul.f32 %v2151, %v2135
    %v2153 = vmul.f32 %v2151, %v2136
    %v2154 = vmul.f32 %v2151, %v2137
    %v2155 = vmul.f32 %v2151, %v2138
    %v2156 = vmul.f32 %v2151, %v2139
    %v2157 = vmul.f32 %v2151, %v2140
    %v2158 = vmul.f32 %v2151, %v2141
    %v2159 = vmul.f32 %v2151, %v2142
    %v2160 = vmul.f32 %v2151, %v2143
    %v2161 = vmul.f32 %v2151, %v2144
    %v2162 = vmul.f32 %v2151, %v2145
    %v2163 = vmul.f32 %v2151, %v2146
    %v2164 = vmul.f32 %v2151, %v2147
    %v2165 = vmul.f32 %v2151, %v2148
    %v2166 = vmul.f32 %v2151, %v2149
    %v2167 = vmul.f32 %v2151, %v2150
    %s2168 = sld [smem:[#allocation4 + $0x401]]
    %v2169 = vld [vmem:[%s70] sm:$0xff]
    %v2170 = vld [vmem:[%s70 + $0x8] sm:$0xff]
    %v2171 = vld [vmem:[%s70 + $0x10] sm:$0xff]
    %v2172 = vld [vmem:[%s70 + $0x18] sm:$0xff]
    %v2173 = vld [vmem:[%s70 + $0x20] sm:$0xff]
    %v2174 = vld [vmem:[%s70 + $0x28] sm:$0xff]
    %v2175 = vld [vmem:[%s70 + $0x30] sm:$0xff]
    %v2176 = vld [vmem:[%s70 + $0x38] sm:$0xff]
    %v2177 = vld [vmem:[%s70 + $0x40] sm:$0xff]
    %v2178 = vld [vmem:[%s70 + $0x48] sm:$0xff]
    %v2179 = vld [vmem:[%s70 + $0x50] sm:$0xff]
    %v2180 = vld [vmem:[%s70 + $0x58] sm:$0xff]
    %v2181 = vld [vmem:[%s70 + $0x60] sm:$0xff]
    %v2182 = vld [vmem:[%s70 + $0x68] sm:$0xff]
    %v2183 = vld [vmem:[%s70 + $0x70] sm:$0xff]
    %v2184 = vld [vmem:[%s70 + $0x78] sm:$0xff]
    %v2185 = vstv %s2168
    %v2186 = vmul.f32 %v2185, %v2169
    %v2187 = vmul.f32 %v2185, %v2170
    %v2188 = vmul.f32 %v2185, %v2171
    %v2189 = vmul.f32 %v2185, %v2172
    %v2190 = vmul.f32 %v2185, %v2173
    %v2191 = vmul.f32 %v2185, %v2174
    %v2192 = vmul.f32 %v2185, %v2175
    %v2193 = vmul.f32 %v2185, %v2176
    %v2194 = vmul.f32 %v2185, %v2177
    %v2195 = vmul.f32 %v2185, %v2178
    %v2196 = vmul.f32 %v2185, %v2179
    %v2197 = vmul.f32 %v2185, %v2180
    %v2198 = vmul.f32 %v2185, %v2181
    %v2199 = vmul.f32 %v2185, %v2182
    %v2200 = vmul.f32 %v2185, %v2183
    %v2201 = vmul.f32 %v2185, %v2184
    %v2202 = vadd.f32 %v2152, %v2186
    %v2203 = vadd.f32 %v2153, %v2187
    %v2204 = vadd.f32 %v2154, %v2188
    %v2205 = vadd.f32 %v2155, %v2189
    %v2206 = vadd.f32 %v2156, %v2190
    %v2207 = vadd.f32 %v2157, %v2191
    %v2208 = vadd.f32 %v2158, %v2192
    %v2209 = vadd.f32 %v2159, %v2193
    %v2210 = vadd.f32 %v2160, %v2194
    %v2211 = vadd.f32 %v2161, %v2195
    %v2212 = vadd.f32 %v2162, %v2196
    %v2213 = vadd.f32 %v2163, %v2197
    %v2214 = vadd.f32 %v2164, %v2198
    %v2215 = vadd.f32 %v2165, %v2199
    %v2216 = vadd.f32 %v2166, %v2200
    %v2217 = vadd.f32 %v2167, %v2201
    %s2218 = sld [smem:[#allocation4 + $0x402]]
    %v2219 = vld [vmem:[%s121] sm:$0xff]
    %v2220 = vld [vmem:[%s121 + $0x8] sm:$0xff]
    %v2221 = vld [vmem:[%s121 + $0x10] sm:$0xff]
    %v2222 = vld [vmem:[%s121 + $0x18] sm:$0xff]
    %v2223 = vld [vmem:[%s121 + $0x20] sm:$0xff]
    %v2224 = vld [vmem:[%s121 + $0x28] sm:$0xff]
    %v2225 = vld [vmem:[%s121 + $0x30] sm:$0xff]
    %v2226 = vld [vmem:[%s121 + $0x38] sm:$0xff]
    %v2227 = vld [vmem:[%s121 + $0x40] sm:$0xff]
    %v2228 = vld [vmem:[%s121 + $0x48] sm:$0xff]
    %v2229 = vld [vmem:[%s121 + $0x50] sm:$0xff]
    %v2230 = vld [vmem:[%s121 + $0x58] sm:$0xff]
    %v2231 = vld [vmem:[%s121 + $0x60] sm:$0xff]
    %v2232 = vld [vmem:[%s121 + $0x68] sm:$0xff]
    %v2233 = vld [vmem:[%s121 + $0x70] sm:$0xff]
    %v2234 = vld [vmem:[%s121 + $0x78] sm:$0xff]
    %v2235 = vstv %s2218
    %v2236 = vmul.f32 %v2235, %v2219
    %v2237 = vmul.f32 %v2235, %v2220
    %v2238 = vmul.f32 %v2235, %v2221
    %v2239 = vmul.f32 %v2235, %v2222
    %v2240 = vmul.f32 %v2235, %v2223
    %v2241 = vmul.f32 %v2235, %v2224
    %v2242 = vmul.f32 %v2235, %v2225
    %v2243 = vmul.f32 %v2235, %v2226
    %v2244 = vmul.f32 %v2235, %v2227
    %v2245 = vmul.f32 %v2235, %v2228
    %v2246 = vmul.f32 %v2235, %v2229
    %v2247 = vmul.f32 %v2235, %v2230
    %v2248 = vmul.f32 %v2235, %v2231
    %v2249 = vmul.f32 %v2235, %v2232
    %v2250 = vmul.f32 %v2235, %v2233
    %v2251 = vmul.f32 %v2235, %v2234
    %v2252 = vadd.f32 %v2202, %v2236
    %v2253 = vadd.f32 %v2203, %v2237
    %v2254 = vadd.f32 %v2204, %v2238
    %v2255 = vadd.f32 %v2205, %v2239
    %v2256 = vadd.f32 %v2206, %v2240
    %v2257 = vadd.f32 %v2207, %v2241
    %v2258 = vadd.f32 %v2208, %v2242
    %v2259 = vadd.f32 %v2209, %v2243
    %v2260 = vadd.f32 %v2210, %v2244
    %v2261 = vadd.f32 %v2211, %v2245
    %v2262 = vadd.f32 %v2212, %v2246
    %v2263 = vadd.f32 %v2213, %v2247
    %v2264 = vadd.f32 %v2214, %v2248
    %v2265 = vadd.f32 %v2215, %v2249
    %v2266 = vadd.f32 %v2216, %v2250
    %v2267 = vadd.f32 %v2217, %v2251
    %s2268 = sld [smem:[#allocation4 + $0x403]]
    %v2269 = vld [vmem:[%s172] sm:$0xff]
    %v2270 = vld [vmem:[%s172 + $0x8] sm:$0xff]
    %v2271 = vld [vmem:[%s172 + $0x10] sm:$0xff]
    %v2272 = vld [vmem:[%s172 + $0x18] sm:$0xff]
    %v2273 = vld [vmem:[%s172 + $0x20] sm:$0xff]
    %v2274 = vld [vmem:[%s172 + $0x28] sm:$0xff]
    %v2275 = vld [vmem:[%s172 + $0x30] sm:$0xff]
    %v2276 = vld [vmem:[%s172 + $0x38] sm:$0xff]
    %v2277 = vld [vmem:[%s172 + $0x40] sm:$0xff]
    %v2278 = vld [vmem:[%s172 + $0x48] sm:$0xff]
    %v2279 = vld [vmem:[%s172 + $0x50] sm:$0xff]
    %v2280 = vld [vmem:[%s172 + $0x58] sm:$0xff]
    %v2281 = vld [vmem:[%s172 + $0x60] sm:$0xff]
    %v2282 = vld [vmem:[%s172 + $0x68] sm:$0xff]
    %v2283 = vld [vmem:[%s172 + $0x70] sm:$0xff]
    %v2284 = vld [vmem:[%s172 + $0x78] sm:$0xff]
    %v2285 = vstv %s2268
    %v2286 = vmul.f32 %v2285, %v2269
    %v2287 = vmul.f32 %v2285, %v2270
    %v2288 = vmul.f32 %v2285, %v2271
    %v2289 = vmul.f32 %v2285, %v2272
    %v2290 = vmul.f32 %v2285, %v2273
    %v2291 = vmul.f32 %v2285, %v2274
    %v2292 = vmul.f32 %v2285, %v2275
    %v2293 = vmul.f32 %v2285, %v2276
    %v2294 = vmul.f32 %v2285, %v2277
    %v2295 = vmul.f32 %v2285, %v2278
    %v2296 = vmul.f32 %v2285, %v2279
    %v2297 = vmul.f32 %v2285, %v2280
    %v2298 = vmul.f32 %v2285, %v2281
    %v2299 = vmul.f32 %v2285, %v2282
    %v2300 = vmul.f32 %v2285, %v2283
    %v2301 = vmul.f32 %v2285, %v2284
    %v2302 = vadd.f32 %v2252, %v2286
    %v2303 = vadd.f32 %v2253, %v2287
    %v2304 = vadd.f32 %v2254, %v2288
    %v2305 = vadd.f32 %v2255, %v2289
    %v2306 = vadd.f32 %v2256, %v2290
    %v2307 = vadd.f32 %v2257, %v2291
    %v2308 = vadd.f32 %v2258, %v2292
    %v2309 = vadd.f32 %v2259, %v2293
    %v2310 = vadd.f32 %v2260, %v2294
    %v2311 = vadd.f32 %v2261, %v2295
    %v2312 = vadd.f32 %v2262, %v2296
    %v2313 = vadd.f32 %v2263, %v2297
    %v2314 = vadd.f32 %v2264, %v2298
    %v2315 = vadd.f32 %v2265, %v2299
    %v2316 = vadd.f32 %v2266, %v2300
    %v2317 = vadd.f32 %v2267, %v2301
    %s2318 = sld [smem:[#allocation4 + $0x404]]
    %v2319 = vstv %s2318
    %v2320 = vadd.f32 %v2302, %v2319
    %v2321 = vadd.f32 %v2303, %v2319
    %v2322 = vadd.f32 %v2304, %v2319
    %v2323 = vadd.f32 %v2305, %v2319
    %v2324 = vadd.f32 %v2306, %v2319
    %v2325 = vadd.f32 %v2307, %v2319
    %v2326 = vadd.f32 %v2308, %v2319
    %v2327 = vadd.f32 %v2309, %v2319
    %v2328 = vadd.f32 %v2310, %v2319
    %v2329 = vadd.f32 %v2311, %v2319
    %v2330 = vadd.f32 %v2312, %v2319
    %v2331 = vadd.f32 %v2313, %v2319
    %v2332 = vadd.f32 %v2314, %v2319
    %v2333 = vadd.f32 %v2315, %v2319
    %v2334 = vadd.f32 %v2316, %v2319
    %v2335 = vadd.f32 %v2317, %v2319
    %v2336 = vtanh.pop %v2320
    %v2337 = vtanh.pop %v2321
    %v2338 = vtanh.pop %v2322
    %v2339 = vtanh.pop %v2323
    %v2340 = vtanh.pop %v2324
    %v2341 = vtanh.pop %v2325
    %v2342 = vtanh.pop %v2326
    %v2343 = vtanh.pop %v2327
    %v2344 = vtanh.pop %v2328
    %v2345 = vtanh.pop %v2329
    %v2346 = vtanh.pop %v2330
    %v2347 = vtanh.pop %v2331
    %v2348 = vtanh.pop %v2332
    %v2349 = vtanh.pop %v2333
    %v2350 = vtanh.pop %v2334
    %v2351 = vtanh.pop %v2335
    %v2352 = vadd.f32 %v2336, %v2337
    %v2353 = vadd.f32 %v2352, %v2338
    %v2354 = vadd.f32 %v2353, %v2339
    %v2355 = vadd.f32 %v2354, %v2340
    %v2356 = vadd.f32 %v2355, %v2341
    %v2357 = vadd.f32 %v2356, %v2342
    %v2358 = vadd.f32 %v2357, %v2343
    %v2359 = vadd.f32 %v2358, %v2344
    %v2360 = vadd.f32 %v2359, %v2345
    %v2361 = vadd.f32 %v2360, %v2346
    %v2362 = vadd.f32 %v2361, %v2347
    %v2363 = vadd.f32 %v2362, %v2348
    %v2364 = vadd.f32 %v2363, %v2349
    %v2365 = vadd.f32 %v2364, %v2350
    %v2366 = vadd.f32 %v2365, %v2351
    %v2367 = vrot.slane %v2366, 4
    %v2368 = vadd.f32 %v2366, %v2367
    %v2369 = vrot.slane %v2368, 2
    %v2370 = vadd.f32 %v2368, %v2369
    %v2371 = vrot.slane %v2370, 1
    %v2372 = vadd.f32 %v2370, %v2371
    %2373 = vst [vmem:[#allocation2 + $0x8] sm:$0x1] %v2372
    %v2374 = vmax.f32 %v2336, %v2340
    %v2375 = vmax.f32 %v2337, %v2341
    %v2376 = vmax.f32 %v2338, %v2342
    %v2377 = vmax.f32 %v2339, %v2343
    %v2378 = vmax.f32 %v2374, %v2344
    %v2379 = vmax.f32 %v2375, %v2345
    %v2380 = vmax.f32 %v2376, %v2346
    %v2381 = vmax.f32 %v2377, %v2347
    %v2382 = vmax.f32 %v2378, %v2348
    %v2383 = vmax.f32 %v2379, %v2349
    %v2384 = vmax.f32 %v2380, %v2350
    %v2385 = vmax.f32 %v2381, %v2351
    %v2386 = vmax.f32 %v2382, %v2383
    %v2387 = vmax.f32 %v2384, %v2385
    %v2388 = vmax.f32 %v2386, %v2387
    %v2389 = vrot.slane %v2388, 4
    %v2390 = vmax.f32 %v2388, %v2389
    %v2391 = vrot.slane %v2390, 2
    %v2392 = vmax.f32 %v2390, %v2391
    %v2393 = vrot.slane %v2392, 1
    %v2394 = vmax.f32 %v2392, %v2393
    %2395 = vst [vmem:[#allocation3 + $0x8] sm:$0x1] %v2394
    %s2396 = sld [smem:[#allocation4 + $0x480]]
    %v2397 = vld [vmem:[%s0] sm:$0xff]
    %v2398 = vld [vmem:[%s0 + $0x8] sm:$0xff]
    %v2399 = vld [vmem:[%s0 + $0x10] sm:$0xff]
    %v2400 = vld [vmem:[%s0 + $0x18] sm:$0xff]
    %v2401 = vld [vmem:[%s0 + $0x20] sm:$0xff]
    %v2402 = vld [vmem:[%s0 + $0x28] sm:$0xff]
    %v2403 = vld [vmem:[%s0 + $0x30] sm:$0xff]
    %v2404 = vld [vmem:[%s0 + $0x38] sm:$0xff]
    %v2405 = vld [vmem:[%s0 + $0x40] sm:$0xff]
    %v2406 = vld [vmem:[%s0 + $0x48] sm:$0xff]
    %v2407 = vld [vmem:[%s0 + $0x50] sm:$0xff]
    %v2408 = vld [vmem:[%s0 + $0x58] sm:$0xff]
    %v2409 = vld [vmem:[%s0 + $0x60] sm:$0xff]
    %v2410 = vld [vmem:[%s0 + $0x68] sm:$0xff]
    %v2411 = vld [vmem:[%s0 + $0x70] sm:$0xff]
    %v2412 = vld [vmem:[%s0 + $0x78] sm:$0xff]
    %v2413 = vstv %s2396
    %v2414 = vmul.f32 %v2413, %v2397
    %v2415 = vmul.f32 %v2413, %v2398
    %v2416 = vmul.f32 %v2413, %v2399
    %v2417 = vmul.f32 %v2413, %v2400
    %v2418 = vmul.f32 %v2413, %v2401
    %v2419 = vmul.f32 %v2413, %v2402
    %v2420 = vmul.f32 %v2413, %v2403
    %v2421 = vmul.f32 %v2413, %v2404
    %v2422 = vmul.f32 %v2413, %v2405
    %v2423 = vmul.f32 %v2413, %v2406
    %v2424 = vmul.f32 %v2413, %v2407
    %v2425 = vmul.f32 %v2413, %v2408
    %v2426 = vmul.f32 %v2413, %v2409
    %v2427 = vmul.f32 %v2413, %v2410
    %v2428 = vmul.f32 %v2413, %v2411
    %v2429 = vmul.f32 %v2413, %v2412
    %s2430 = sld [smem:[#allocation4 + $0x481]]
    %v2431 = vld [vmem:[%s70] sm:$0xff]
    %v2432 = vld [vmem:[%s70 + $0x8] sm:$0xff]
    %v2433 = vld [vmem:[%s70 + $0x10] sm:$0xff]
    %v2434 = vld [vmem:[%s70 + $0x18] sm:$0xff]
    %v2435 = vld [vmem:[%s70 + $0x20] sm:$0xff]
    %v2436 = vld [vmem:[%s70 + $0x28] sm:$0xff]
    %v2437 = vld [vmem:[%s70 + $0x30] sm:$0xff]
    %v2438 = vld [vmem:[%s70 + $0x38] sm:$0xff]
    %v2439 = vld [vmem:[%s70 + $0x40] sm:$0xff]
    %v2440 = vld [vmem:[%s70 + $0x48] sm:$0xff]
    %v2441 = vld [vmem:[%s70 + $0x50] sm:$0xff]
    %v2442 = vld [vmem:[%s70 + $0x58] sm:$0xff]
    %v2443 = vld [vmem:[%s70 + $0x60] sm:$0xff]
    %v2444 = vld [vmem:[%s70 + $0x68] sm:$0xff]
    %v2445 = vld [vmem:[%s70 + $0x70] sm:$0xff]
    %v2446 = vld [vmem:[%s70 + $0x78] sm:$0xff]
    %v2447 = vstv %s2430
    %v2448 = vmul.f32 %v2447, %v2431
    %v2449 = vmul.f32 %v2447, %v2432
    %v2450 = vmul.f32 %v2447, %v2433
    %v2451 = vmul.f32 %v2447, %v2434
    %v2452 = vmul.f32 %v2447, %v2435
    %v2453 = vmul.f32 %v2447, %v2436
    %v2454 = vmul.f32 %v2447, %v2437
    %v2455 = vmul.f32 %v2447, %v2438
    %v2456 = vmul.f32 %v2447, %v2439
    %v2457 = vmul.f32 %v2447, %v2440
    %v2458 = vmul.f32 %v2447, %v2441
    %v2459 = vmul.f32 %v2447, %v2442
    %v2460 = vmul.f32 %v2447, %v2443
    %v2461 = vmul.f32 %v2447, %v2444
    %v2462 = vmul.f32 %v2447, %v2445
    %v2463 = vmul.f32 %v2447, %v2446
    %v2464 = vadd.f32 %v2414, %v2448
    %v2465 = vadd.f32 %v2415, %v2449
    %v2466 = vadd.f32 %v2416, %v2450
    %v2467 = vadd.f32 %v2417, %v2451
    %v2468 = vadd.f32 %v2418, %v2452
    %v2469 = vadd.f32 %v2419, %v2453
    %v2470 = vadd.f32 %v2420, %v2454
    %v2471 = vadd.f32 %v2421, %v2455
    %v2472 = vadd.f32 %v2422, %v2456
    %v2473 = vadd.f32 %v2423, %v2457
    %v2474 = vadd.f32 %v2424, %v2458
    %v2475 = vadd.f32 %v2425, %v2459
    %v2476 = vadd.f32 %v2426, %v2460
    %v2477 = vadd.f32 %v2427, %v2461
    %v2478 = vadd.f32 %v2428, %v2462
    %v2479 = vadd.f32 %v2429, %v2463
    %s2480 = sld [smem:[#allocation4 + $0x482]]
    %v2481 = vld [vmem:[%s121] sm:$0xff]
    %v2482 = vld [vmem:[%s121 + $0x8] sm:$0xff]
    %v2483 = vld [vmem:[%s121 + $0x10] sm:$0xff]
    %v2484 = vld [vmem:[%s121 + $0x18] sm:$0xff]
    %v2485 = vld [vmem:[%s121 + $0x20] sm:$0xff]
    %v2486 = vld [vmem:[%s121 + $0x28] sm:$0xff]
    %v2487 = vld [vmem:[%s121 + $0x30] sm:$0xff]
    %v2488 = vld [vmem:[%s121 + $0x38] sm:$0xff]
    %v2489 = vld [vmem:[%s121 + $0x40] sm:$0xff]
    %v2490 = vld [vmem:[%s121 + $0x48] sm:$0xff]
    %v2491 = vld [vmem:[%s121 + $0x50] sm:$0xff]
    %v2492 = vld [vmem:[%s121 + $0x58] sm:$0xff]
    %v2493 = vld [vmem:[%s121 + $0x60] sm:$0xff]
    %v2494 = vld [vmem:[%s121 + $0x68] sm:$0xff]
    %v2495 = vld [vmem:[%s121 + $0x70] sm:$0xff]
    %v2496 = vld [vmem:[%s121 + $0x78] sm:$0xff]
    %v2497 = vstv %s2480
    %v2498 = vmul.f32 %v2497, %v2481
    %v2499 = vmul.f32 %v2497, %v2482
    %v2500 = vmul.f32 %v2497, %v2483
    %v2501 = vmul.f32 %v2497, %v2484
    %v2502 = vmul.f32 %v2497, %v2485
    %v2503 = vmul.f32 %v2497, %v2486
    %v2504 = vmul.f32 %v2497, %v2487
    %v2505 = vmul.f32 %v2497, %v2488
    %v2506 = vmul.f32 %v2497, %v2489
    %v2507 = vmul.f32 %v2497, %v2490
    %v2508 = vmul.f32 %v2497, %v2491
    %v2509 = vmul.f32 %v2497, %v2492
    %v2510 = vmul.f32 %v2497, %v2493
    %v2511 = vmul.f32 %v2497, %v2494
    %v2512 = vmul.f32 %v2497, %v2495
    %v2513 = vmul.f32 %v2497, %v2496
    %v2514 = vadd.f32 %v2464, %v2498
    %v2515 = vadd.f32 %v2465, %v2499
    %v2516 = vadd.f32 %v2466, %v2500
    %v2517 = vadd.f32 %v2467, %v2501
    %v2518 = vadd.f32 %v2468, %v2502
    %v2519 = vadd.f32 %v2469, %v2503
    %v2520 = vadd.f32 %v2470, %v2504
    %v2521 = vadd.f32 %v2471, %v2505
    %v2522 = vadd.f32 %v2472, %v2506
    %v2523 = vadd.f32 %v2473, %v2507
    %v2524 = vadd.f32 %v2474, %v2508
    %v2525 = vadd.f32 %v2475, %v2509
    %v2526 = vadd.f32 %v2476, %v2510
    %v2527 = vadd.f32 %v2477, %v2511
    %v2528 = vadd.f32 %v2478, %v2512
    %v2529 = vadd.f32 %v2479, %v2513
    %s2530 = sld [smem:[#allocation4 + $0x483]]
    %v2531 = vld [vmem:[%s172] sm:$0xff]
    %v2532 = vld [vmem:[%s172 + $0x8] sm:$0xff]
    %v2533 = vld [vmem:[%s172 + $0x10] sm:$0xff]
    %v2534 = vld [vmem:[%s172 + $0x18] sm:$0xff]
    %v2535 = vld [vmem:[%s172 + $0x20] sm:$0xff]
    %v2536 = vld [vmem:[%s172 + $0x28] sm:$0xff]
    %v2537 = vld [vmem:[%s172 + $0x30] sm:$0xff]
    %v2538 = vld [vmem:[%s172 + $0x38] sm:$0xff]
    %v2539 = vld [vmem:[%s172 + $0x40] sm:$0xff]
    %v2540 = vld [vmem:[%s172 + $0x48] sm:$0xff]
    %v2541 = vld [vmem:[%s172 + $0x50] sm:$0xff]
    %v2542 = vld [vmem:[%s172 + $0x58] sm:$0xff]
    %v2543 = vld [vmem:[%s172 + $0x60] sm:$0xff]
    %v2544 = vld [vmem:[%s172 + $0x68] sm:$0xff]
    %v2545 = vld [vmem:[%s172 + $0x70] sm:$0xff]
    %v2546 = vld [vmem:[%s172 + $0x78] sm:$0xff]
    %v2547 = vstv %s2530
    %v2548 = vmul.f32 %v2547, %v2531
    %v2549 = vmul.f32 %v2547, %v2532
    %v2550 = vmul.f32 %v2547, %v2533
    %v2551 = vmul.f32 %v2547, %v2534
    %v2552 = vmul.f32 %v2547, %v2535
    %v2553 = vmul.f32 %v2547, %v2536
    %v2554 = vmul.f32 %v2547, %v2537
    %v2555 = vmul.f32 %v2547, %v2538
    %v2556 = vmul.f32 %v2547, %v2539
    %v2557 = vmul.f32 %v2547, %v2540
    %v2558 = vmul.f32 %v2547, %v2541
    %v2559 = vmul.f32 %v2547, %v2542
    %v2560 = vmul.f32 %v2547, %v2543
    %v2561 = vmul.f32 %v2547, %v2544
    %v2562 = vmul.f32 %v2547, %v2545
    %v2563 = vmul.f32 %v2547, %v2546
    %v2564 = vadd.f32 %v2514, %v2548
    %v2565 = vadd.f32 %v2515, %v2549
    %v2566 = vadd.f32 %v2516, %v2550
    %v2567 = vadd.f32 %v2517, %v2551
    %v2568 = vadd.f32 %v2518, %v2552
    %v2569 = vadd.f32 %v2519, %v2553
    %v2570 = vadd.f32 %v2520, %v2554
    %v2571 = vadd.f32 %v2521, %v2555
    %v2572 = vadd.f32 %v2522, %v2556
    %v2573 = vadd.f32 %v2523, %v2557
    %v2574 = vadd.f32 %v2524, %v2558
    %v2575 = vadd.f32 %v2525, %v2559
    %v2576 = vadd.f32 %v2526, %v2560
    %v2577 = vadd.f32 %v2527, %v2561
    %v2578 = vadd.f32 %v2528, %v2562
    %v2579 = vadd.f32 %v2529, %v2563
    %s2580 = sld [smem:[#allocation4 + $0x484]]
    %v2581 = vstv %s2580
    %v2582 = vadd.f32 %v2564, %v2581
    %v2583 = vadd.f32 %v2565, %v2581
    %v2584 = vadd.f32 %v2566, %v2581
    %v2585 = vadd.f32 %v2567, %v2581
    %v2586 = vadd.f32 %v2568, %v2581
    %v2587 = vadd.f32 %v2569, %v2581
    %v2588 = vadd.f32 %v2570, %v2581
    %v2589 = vadd.f32 %v2571, %v2581
    %v2590 = vadd.f32 %v2572, %v2581
    %v2591 = vadd.f32 %v2573, %v2581
    %v2592 = vadd.f32 %v2574, %v2581
    %v2593 = vadd.f32 %v2575, %v2581
    %v2594 = vadd.f32 %v2576, %v2581
    %v2595 = vadd.f32 %v2577, %v2581
    %v2596 = vadd.f32 %v2578, %v2581
    %v2597 = vadd.f32 %v2579, %v2581
    %v2598 = vtanh.pop %v2582
    %v2599 = vtanh.pop %v2583
    %v2600 = vtanh.pop %v2584
    %v2601 = vtanh.pop %v2585
    %v2602 = vtanh.pop %v2586
    %v2603 = vtanh.pop %v2587
    %v2604 = vtanh.pop %v2588
    %v2605 = vtanh.pop %v2589
    %v2606 = vtanh.pop %v2590
    %v2607 = vtanh.pop %v2591
    %v2608 = vtanh.pop %v2592
    %v2609 = vtanh.pop %v2593
    %v2610 = vtanh.pop %v2594
    %v2611 = vtanh.pop %v2595
    %v2612 = vtanh.pop %v2596
    %v2613 = vtanh.pop %v2597
    %v2614 = vadd.f32 %v2598, %v2599
    %v2615 = vadd.f32 %v2614, %v2600
    %v2616 = vadd.f32 %v2615, %v2601
    %v2617 = vadd.f32 %v2616, %v2602
    %v2618 = vadd.f32 %v2617, %v2603
    %v2619 = vadd.f32 %v2618, %v2604
    %v2620 = vadd.f32 %v2619, %v2605
    %v2621 = vadd.f32 %v2620, %v2606
    %v2622 = vadd.f32 %v2621, %v2607
    %v2623 = vadd.f32 %v2622, %v2608
    %v2624 = vadd.f32 %v2623, %v2609
    %v2625 = vadd.f32 %v2624, %v2610
    %v2626 = vadd.f32 %v2625, %v2611
    %v2627 = vadd.f32 %v2626, %v2612
    %v2628 = vadd.f32 %v2627, %v2613
    %v2629 = vrot.slane %v2628, 4
    %v2630 = vadd.f32 %v2628, %v2629
    %v2631 = vrot.slane %v2630, 2
    %v2632 = vadd.f32 %v2630, %v2631
    %v2633 = vrot.slane %v2632, 1
    %v2634 = vadd.f32 %v2632, %v2633
    %2635 = vst [vmem:[#allocation2 + $0x9] sm:$0x1] %v2634
    %v2636 = vmax.f32 %v2598, %v2602
    %v2637 = vmax.f32 %v2599, %v2603
    %v2638 = vmax.f32 %v2600, %v2604
    %v2639 = vmax.f32 %v2601, %v2605
    %v2640 = vmax.f32 %v2636, %v2606
    %v2641 = vmax.f32 %v2637, %v2607
    %v2642 = vmax.f32 %v2638, %v2608
    %v2643 = vmax.f32 %v2639, %v2609
    %v2644 = vmax.f32 %v2640, %v2610
    %v2645 = vmax.f32 %v2641, %v2611
    %v2646 = vmax.f32 %v2642, %v2612
    %v2647 = vmax.f32 %v2643, %v2613
    %v2648 = vmax.f32 %v2644, %v2645
    %v2649 = vmax.f32 %v2646, %v2647
    %v2650 = vmax.f32 %v2648, %v2649
    %v2651 = vrot.slane %v2650, 4
    %v2652 = vmax.f32 %v2650, %v2651
    %v2653 = vrot.slane %v2652, 2
    %v2654 = vmax.f32 %v2652, %v2653
    %v2655 = vrot.slane %v2654, 1
    %v2656 = vmax.f32 %v2654, %v2655
    %2657 = vst [vmem:[#allocation3 + $0x9] sm:$0x1] %v2656
    %s2658 = sld [smem:[#allocation4 + $0x500]]
    %v2659 = vld [vmem:[%s0] sm:$0xff]
    %v2660 = vld [vmem:[%s0 + $0x8] sm:$0xff]
    %v2661 = vld [vmem:[%s0 + $0x10] sm:$0xff]
    %v2662 = vld [vmem:[%s0 + $0x18] sm:$0xff]
    %v2663 = vld [vmem:[%s0 + $0x20] sm:$0xff]
    %v2664 = vld [vmem:[%s0 + $0x28] sm:$0xff]
    %v2665 = vld [vmem:[%s0 + $0x30] sm:$0xff]
    %v2666 = vld [vmem:[%s0 + $0x38] sm:$0xff]
    %v2667 = vld [vmem:[%s0 + $0x40] sm:$0xff]
    %v2668 = vld [vmem:[%s0 + $0x48] sm:$0xff]
    %v2669 = vld [vmem:[%s0 + $0x50] sm:$0xff]
    %v2670 = vld [vmem:[%s0 + $0x58] sm:$0xff]
    %v2671 = vld [vmem:[%s0 + $0x60] sm:$0xff]
    %v2672 = vld [vmem:[%s0 + $0x68] sm:$0xff]
    %v2673 = vld [vmem:[%s0 + $0x70] sm:$0xff]
    %v2674 = vld [vmem:[%s0 + $0x78] sm:$0xff]
    %v2675 = vstv %s2658
    %v2676 = vmul.f32 %v2675, %v2659
    %v2677 = vmul.f32 %v2675, %v2660
    %v2678 = vmul.f32 %v2675, %v2661
    %v2679 = vmul.f32 %v2675, %v2662
    %v2680 = vmul.f32 %v2675, %v2663
    %v2681 = vmul.f32 %v2675, %v2664
    %v2682 = vmul.f32 %v2675, %v2665
    %v2683 = vmul.f32 %v2675, %v2666
    %v2684 = vmul.f32 %v2675, %v2667
    %v2685 = vmul.f32 %v2675, %v2668
    %v2686 = vmul.f32 %v2675, %v2669
    %v2687 = vmul.f32 %v2675, %v2670
    %v2688 = vmul.f32 %v2675, %v2671
    %v2689 = vmul.f32 %v2675, %v2672
    %v2690 = vmul.f32 %v2675, %v2673
    %v2691 = vmul.f32 %v2675, %v2674
    %s2692 = sld [smem:[#allocation4 + $0x501]]
    %v2693 = vld [vmem:[%s70] sm:$0xff]
    %v2694 = vld [vmem:[%s70 + $0x8] sm:$0xff]
    %v2695 = vld [vmem:[%s70 + $0x10] sm:$0xff]
    %v2696 = vld [vmem:[%s70 + $0x18] sm:$0xff]
    %v2697 = vld [vmem:[%s70 + $0x20] sm:$0xff]
    %v2698 = vld [vmem:[%s70 + $0x28] sm:$0xff]
    %v2699 = vld [vmem:[%s70 + $0x30] sm:$0xff]
    %v2700 = vld [vmem:[%s70 + $0x38] sm:$0xff]
    %v2701 = vld [vmem:[%s70 + $0x40] sm:$0xff]
    %v2702 = vld [vmem:[%s70 + $0x48] sm:$0xff]
    %v2703 = vld [vmem:[%s70 + $0x50] sm:$0xff]
    %v2704 = vld [vmem:[%s70 + $0x58] sm:$0xff]
    %v2705 = vld [vmem:[%s70 + $0x60] sm:$0xff]
    %v2706 = vld [vmem:[%s70 + $0x68] sm:$0xff]
    %v2707 = vld [vmem:[%s70 + $0x70] sm:$0xff]
    %v2708 = vld [vmem:[%s70 + $0x78] sm:$0xff]
    %v2709 = vstv %s2692
    %v2710 = vmul.f32 %v2709, %v2693
    %v2711 = vmul.f32 %v2709, %v2694
    %v2712 = vmul.f32 %v2709, %v2695
    %v2713 = vmul.f32 %v2709, %v2696
    %v2714 = vmul.f32 %v2709, %v2697
    %v2715 = vmul.f32 %v2709, %v2698
    %v2716 = vmul.f32 %v2709, %v2699
    %v2717 = vmul.f32 %v2709, %v2700
    %v2718 = vmul.f32 %v2709, %v2701
    %v2719 = vmul.f32 %v2709, %v2702
    %v2720 = vmul.f32 %v2709, %v2703
    %v2721 = vmul.f32 %v2709, %v2704
    %v2722 = vmul.f32 %v2709, %v2705
    %v2723 = vmul.f32 %v2709, %v2706
    %v2724 = vmul.f32 %v2709, %v2707
    %v2725 = vmul.f32 %v2709, %v2708
    %v2726 = vadd.f32 %v2676, %v2710
    %v2727 = vadd.f32 %v2677, %v2711
    %v2728 = vadd.f32 %v2678, %v2712
    %v2729 = vadd.f32 %v2679, %v2713
    %v2730 = vadd.f32 %v2680, %v2714
    %v2731 = vadd.f32 %v2681, %v2715
    %v2732 = vadd.f32 %v2682, %v2716
    %v2733 = vadd.f32 %v2683, %v2717
    %v2734 = vadd.f32 %v2684, %v2718
    %v2735 = vadd.f32 %v2685, %v2719
    %v2736 = vadd.f32 %v2686, %v2720
    %v2737 = vadd.f32 %v2687, %v2721
    %v2738 = vadd.f32 %v2688, %v2722
    %v2739 = vadd.f32 %v2689, %v2723
    %v2740 = vadd.f32 %v2690, %v2724
    %v2741 = vadd.f32 %v2691, %v2725
    %s2742 = sld [smem:[#allocation4 + $0x502]]
    %v2743 = vld [vmem:[%s121] sm:$0xff]
    %v2744 = vld [vmem:[%s121 + $0x8] sm:$0xff]
    %v2745 = vld [vmem:[%s121 + $0x10] sm:$0xff]
    %v2746 = vld [vmem:[%s121 + $0x18] sm:$0xff]
    %v2747 = vld [vmem:[%s121 + $0x20] sm:$0xff]
    %v2748 = vld [vmem:[%s121 + $0x28] sm:$0xff]
    %v2749 = vld [vmem:[%s121 + $0x30] sm:$0xff]
    %v2750 = vld [vmem:[%s121 + $0x38] sm:$0xff]
    %v2751 = vld [vmem:[%s121 + $0x40] sm:$0xff]
    %v2752 = vld [vmem:[%s121 + $0x48] sm:$0xff]
    %v2753 = vld [vmem:[%s121 + $0x50] sm:$0xff]
    %v2754 = vld [vmem:[%s121 + $0x58] sm:$0xff]
    %v2755 = vld [vmem:[%s121 + $0x60] sm:$0xff]
    %v2756 = vld [vmem:[%s121 + $0x68] sm:$0xff]
    %v2757 = vld [vmem:[%s121 + $0x70] sm:$0xff]
    %v2758 = vld [vmem:[%s121 + $0x78] sm:$0xff]
    %v2759 = vstv %s2742
    %v2760 = vmul.f32 %v2759, %v2743
    %v2761 = vmul.f32 %v2759, %v2744
    %v2762 = vmul.f32 %v2759, %v2745
    %v2763 = vmul.f32 %v2759, %v2746
    %v2764 = vmul.f32 %v2759, %v2747
    %v2765 = vmul.f32 %v2759, %v2748
    %v2766 = vmul.f32 %v2759, %v2749
    %v2767 = vmul.f32 %v2759, %v2750
    %v2768 = vmul.f32 %v2759, %v2751
    %v2769 = vmul.f32 %v2759, %v2752
    %v2770 = vmul.f32 %v2759, %v2753
    %v2771 = vmul.f32 %v2759, %v2754
    %v2772 = vmul.f32 %v2759, %v2755
    %v2773 = vmul.f32 %v2759, %v2756
    %v2774 = vmul.f32 %v2759, %v2757
    %v2775 = vmul.f32 %v2759, %v2758
    %v2776 = vadd.f32 %v2726, %v2760
    %v2777 = vadd.f32 %v2727, %v2761
    %v2778 = vadd.f32 %v2728, %v2762
    %v2779 = vadd.f32 %v2729, %v2763
    %v2780 = vadd.f32 %v2730, %v2764
    %v2781 = vadd.f32 %v2731, %v2765
    %v2782 = vadd.f32 %v2732, %v2766
    %v2783 = vadd.f32 %v2733, %v2767
    %v2784 = vadd.f32 %v2734, %v2768
    %v2785 = vadd.f32 %v2735, %v2769
    %v2786 = vadd.f32 %v2736, %v2770
    %v2787 = vadd.f32 %v2737, %v2771
    %v2788 = vadd.f32 %v2738, %v2772
    %v2789 = vadd.f32 %v2739, %v2773
    %v2790 = vadd.f32 %v2740, %v2774
    %v2791 = vadd.f32 %v2741, %v2775
    %s2792 = sld [smem:[#allocation4 + $0x503]]
    %v2793 = vld [vmem:[%s172] sm:$0xff]
    %v2794 = vld [vmem:[%s172 + $0x8] sm:$0xff]
    %v2795 = vld [vmem:[%s172 + $0x10] sm:$0xff]
    %v2796 = vld [vmem:[%s172 + $0x18] sm:$0xff]
    %v2797 = vld [vmem:[%s172 + $0x20] sm:$0xff]
    %v2798 = vld [vmem:[%s172 + $0x28] sm:$0xff]
    %v2799 = vld [vmem:[%s172 + $0x30] sm:$0xff]
    %v2800 = vld [vmem:[%s172 + $0x38] sm:$0xff]
    %v2801 = vld [vmem:[%s172 + $0x40] sm:$0xff]
    %v2802 = vld [vmem:[%s172 + $0x48] sm:$0xff]
    %v2803 = vld [vmem:[%s172 + $0x50] sm:$0xff]
    %v2804 = vld [vmem:[%s172 + $0x58] sm:$0xff]
    %v2805 = vld [vmem:[%s172 + $0x60] sm:$0xff]
    %v2806 = vld [vmem:[%s172 + $0x68] sm:$0xff]
    %v2807 = vld [vmem:[%s172 + $0x70] sm:$0xff]
    %v2808 = vld [vmem:[%s172 + $0x78] sm:$0xff]
    %v2809 = vstv %s2792
    %v2810 = vmul.f32 %v2809, %v2793
    %v2811 = vmul.f32 %v2809, %v2794
    %v2812 = vmul.f32 %v2809, %v2795
    %v2813 = vmul.f32 %v2809, %v2796
    %v2814 = vmul.f32 %v2809, %v2797
    %v2815 = vmul.f32 %v2809, %v2798
    %v2816 = vmul.f32 %v2809, %v2799
    %v2817 = vmul.f32 %v2809, %v2800
    %v2818 = vmul.f32 %v2809, %v2801
    %v2819 = vmul.f32 %v2809, %v2802
    %v2820 = vmul.f32 %v2809, %v2803
    %v2821 = vmul.f32 %v2809, %v2804
    %v2822 = vmul.f32 %v2809, %v2805
    %v2823 = vmul.f32 %v2809, %v2806
    %v2824 = vmul.f32 %v2809, %v2807
    %v2825 = vmul.f32 %v2809, %v2808
    %v2826 = vadd.f32 %v2776, %v2810
    %v2827 = vadd.f32 %v2777, %v2811
    %v2828 = vadd.f32 %v2778, %v2812
    %v2829 = vadd.f32 %v2779, %v2813
    %v2830 = vadd.f32 %v2780, %v2814
    %v2831 = vadd.f32 %v2781, %v2815
    %v2832 = vadd.f32 %v2782, %v2816
    %v2833 = vadd.f32 %v2783, %v2817
    %v2834 = vadd.f32 %v2784, %v2818
    %v2835 = vadd.f32 %v2785, %v2819
    %v2836 = vadd.f32 %v2786, %v2820
    %v2837 = vadd.f32 %v2787, %v2821
    %v2838 = vadd.f32 %v2788, %v2822
    %v2839 = vadd.f32 %v2789, %v2823
    %v2840 = vadd.f32 %v2790, %v2824
    %v2841 = vadd.f32 %v2791, %v2825
    %s2842 = sld [smem:[#allocation4 + $0x504]]
    %v2843 = vstv %s2842
    %v2844 = vadd.f32 %v2826, %v2843
    %v2845 = vadd.f32 %v2827, %v2843
    %v2846 = vadd.f32 %v2828, %v2843
    %v2847 = vadd.f32 %v2829, %v2843
    %v2848 = vadd.f32 %v2830, %v2843
    %v2849 = vadd.f32 %v2831, %v2843
    %v2850 = vadd.f32 %v2832, %v2843
    %v2851 = vadd.f32 %v2833, %v2843
    %v2852 = vadd.f32 %v2834, %v2843
    %v2853 = vadd.f32 %v2835, %v2843
    %v2854 = vadd.f32 %v2836, %v2843
    %v2855 = vadd.f32 %v2837, %v2843
    %v2856 = vadd.f32 %v2838, %v2843
    %v2857 = vadd.f32 %v2839, %v2843
    %v2858 = vadd.f32 %v2840, %v2843
    %v2859 = vadd.f32 %v2841, %v2843
    %v2860 = vtanh.pop %v2844
    %v2861 = vtanh.pop %v2845
    %v2862 = vtanh.pop %v2846
    %v2863 = vtanh.pop %v2847
    %v2864 = vtanh.pop %v2848
    %v2865 = vtanh.pop %v2849
    %v2866 = vtanh.pop %v2850
    %v2867 = vtanh.pop %v2851
    %v2868 = vtanh.pop %v2852
    %v2869 = vtanh.pop %v2853
    %v2870 = vtanh.pop %v2854
    %v2871 = vtanh.pop %v2855
    %v2872 = vtanh.pop %v2856
    %v2873 = vtanh.pop %v2857
    %v2874 = vtanh.pop %v2858
    %v2875 = vtanh.pop %v2859
    %v2876 = vadd.f32 %v2860, %v2861
    %v2877 = vadd.f32 %v2876, %v2862
    %v2878 = vadd.f32 %v2877, %v2863
    %v2879 = vadd.f32 %v2878, %v2864
    %v2880 = vadd.f32 %v2879, %v2865
    %v2881 = vadd.f32 %v2880, %v2866
    %v2882 = vadd.f32 %v2881, %v2867
    %v2883 = vadd.f32 %v2882, %v2868
    %v2884 = vadd.f32 %v2883, %v2869
    %v2885 = vadd.f32 %v2884, %v2870
    %v2886 = vadd.f32 %v2885, %v2871
    %v2887 = vadd.f32 %v2886, %v2872
    %v2888 = vadd.f32 %v2887, %v2873
    %v2889 = vadd.f32 %v2888, %v2874
    %v2890 = vadd.f32 %v2889, %v2875
    %v2891 = vrot.slane %v2890, 4
    %v2892 = vadd.f32 %v2890, %v2891
    %v2893 = vrot.slane %v2892, 2
    %v2894 = vadd.f32 %v2892, %v2893
    %v2895 = vrot.slane %v2894, 1
    %v2896 = vadd.f32 %v2894, %v2895
    %2897 = vst [vmem:[#allocation2 + $0xa] sm:$0x1] %v2896
    %v2898 = vmax.f32 %v2860, %v2864
    %v2899 = vmax.f32 %v2861, %v2865
    %v2900 = vmax.f32 %v2862, %v2866
    %v2901 = vmax.f32 %v2863, %v2867
    %v2902 = vmax.f32 %v2898, %v2868
    %v2903 = vmax.f32 %v2899, %v2869
    %v2904 = vmax.f32 %v2900, %v2870
    %v2905 = vmax.f32 %v2901, %v2871
    %v2906 = vmax.f32 %v2902, %v2872
    %v2907 = vmax.f32 %v2903, %v2873
    %v2908 = vmax.f32 %v2904, %v2874
    %v2909 = vmax.f32 %v2905, %v2875
    %v2910 = vmax.f32 %v2906, %v2907
    %v2911 = vmax.f32 %v2908, %v2909
    %v2912 = vmax.f32 %v2910, %v2911
    %v2913 = vrot.slane %v2912, 4
    %v2914 = vmax.f32 %v2912, %v2913
    %v2915 = vrot.slane %v2914, 2
    %v2916 = vmax.f32 %v2914, %v2915
    %v2917 = vrot.slane %v2916, 1
    %v2918 = vmax.f32 %v2916, %v2917
    %2919 = vst [vmem:[#allocation3 + $0xa] sm:$0x1] %v2918
    %s2920 = sld [smem:[#allocation4 + $0x580]]
    %v2921 = vld [vmem:[%s0] sm:$0xff]
    %v2922 = vld [vmem:[%s0 + $0x8] sm:$0xff]
    %v2923 = vld [vmem:[%s0 + $0x10] sm:$0xff]
    %v2924 = vld [vmem:[%s0 + $0x18] sm:$0xff]
    %v2925 = vld [vmem:[%s0 + $0x20] sm:$0xff]
    %v2926 = vld [vmem:[%s0 + $0x28] sm:$0xff]
    %v2927 = vld [vmem:[%s0 + $0x30] sm:$0xff]
    %v2928 = vld [vmem:[%s0 + $0x38] sm:$0xff]
    %v2929 = vld [vmem:[%s0 + $0x40] sm:$0xff]
    %v2930 = vld [vmem:[%s0 + $0x48] sm:$0xff]
    %v2931 = vld [vmem:[%s0 + $0x50] sm:$0xff]
    %v2932 = vld [vmem:[%s0 + $0x58] sm:$0xff]
    %v2933 = vld [vmem:[%s0 + $0x60] sm:$0xff]
    %v2934 = vld [vmem:[%s0 + $0x68] sm:$0xff]
    %v2935 = vld [vmem:[%s0 + $0x70] sm:$0xff]
    %v2936 = vld [vmem:[%s0 + $0x78] sm:$0xff]
    %v2937 = vstv %s2920
    %v2938 = vmul.f32 %v2937, %v2921
    %v2939 = vmul.f32 %v2937, %v2922
    %v2940 = vmul.f32 %v2937, %v2923
    %v2941 = vmul.f32 %v2937, %v2924
    %v2942 = vmul.f32 %v2937, %v2925
    %v2943 = vmul.f32 %v2937, %v2926
    %v2944 = vmul.f32 %v2937, %v2927
    %v2945 = vmul.f32 %v2937, %v2928
    %v2946 = vmul.f32 %v2937, %v2929
    %v2947 = vmul.f32 %v2937, %v2930
    %v2948 = vmul.f32 %v2937, %v2931
    %v2949 = vmul.f32 %v2937, %v2932
    %v2950 = vmul.f32 %v2937, %v2933
    %v2951 = vmul.f32 %v2937, %v2934
    %v2952 = vmul.f32 %v2937, %v2935
    %v2953 = vmul.f32 %v2937, %v2936
    %s2954 = sld [smem:[#allocation4 + $0x581]]
    %v2955 = vld [vmem:[%s70] sm:$0xff]
    %v2956 = vld [vmem:[%s70 + $0x8] sm:$0xff]
    %v2957 = vld [vmem:[%s70 + $0x10] sm:$0xff]
    %v2958 = vld [vmem:[%s70 + $0x18] sm:$0xff]
    %v2959 = vld [vmem:[%s70 + $0x20] sm:$0xff]
    %v2960 = vld [vmem:[%s70 + $0x28] sm:$0xff]
    %v2961 = vld [vmem:[%s70 + $0x30] sm:$0xff]
    %v2962 = vld [vmem:[%s70 + $0x38] sm:$0xff]
    %v2963 = vld [vmem:[%s70 + $0x40] sm:$0xff]
    %v2964 = vld [vmem:[%s70 + $0x48] sm:$0xff]
    %v2965 = vld [vmem:[%s70 + $0x50] sm:$0xff]
    %v2966 = vld [vmem:[%s70 + $0x58] sm:$0xff]
    %v2967 = vld [vmem:[%s70 + $0x60] sm:$0xff]
    %v2968 = vld [vmem:[%s70 + $0x68] sm:$0xff]
    %v2969 = vld [vmem:[%s70 + $0x70] sm:$0xff]
    %v2970 = vld [vmem:[%s70 + $0x78] sm:$0xff]
    %v2971 = vstv %s2954
    %v2972 = vmul.f32 %v2971, %v2955
    %v2973 = vmul.f32 %v2971, %v2956
    %v2974 = vmul.f32 %v2971, %v2957
    %v2975 = vmul.f32 %v2971, %v2958
    %v2976 = vmul.f32 %v2971, %v2959
    %v2977 = vmul.f32 %v2971, %v2960
    %v2978 = vmul.f32 %v2971, %v2961
    %v2979 = vmul.f32 %v2971, %v2962
    %v2980 = vmul.f32 %v2971, %v2963
    %v2981 = vmul.f32 %v2971, %v2964
    %v2982 = vmul.f32 %v2971, %v2965
    %v2983 = vmul.f32 %v2971, %v2966
    %v2984 = vmul.f32 %v2971, %v2967
    %v2985 = vmul.f32 %v2971, %v2968
    %v2986 = vmul.f32 %v2971, %v2969
    %v2987 = vmul.f32 %v2971, %v2970
    %v2988 = vadd.f32 %v2938, %v2972
    %v2989 = vadd.f32 %v2939, %v2973
    %v2990 = vadd.f32 %v2940, %v2974
    %v2991 = vadd.f32 %v2941, %v2975
    %v2992 = vadd.f32 %v2942, %v2976
    %v2993 = vadd.f32 %v2943, %v2977
    %v2994 = vadd.f32 %v2944, %v2978
    %v2995 = vadd.f32 %v2945, %v2979
    %v2996 = vadd.f32 %v2946, %v2980
    %v2997 = vadd.f32 %v2947, %v2981
    %v2998 = vadd.f32 %v2948, %v2982
    %v2999 = vadd.f32 %v2949, %v2983
    %v3000 = vadd.f32 %v2950, %v2984
    %v3001 = vadd.f32 %v2951, %v2985
    %v3002 = vadd.f32 %v2952, %v2986
    %v3003 = vadd.f32 %v2953, %v2987
    %s3004 = sld [smem:[#allocation4 + $0x582]]
    %v3005 = vld [vmem:[%s121] sm:$0xff]
    %v3006 = vld [vmem:[%s121 + $0x8] sm:$0xff]
    %v3007 = vld [vmem:[%s121 + $0x10] sm:$0xff]
    %v3008 = vld [vmem:[%s121 + $0x18] sm:$0xff]
    %v3009 = vld [vmem:[%s121 + $0x20] sm:$0xff]
    %v3010 = vld [vmem:[%s121 + $0x28] sm:$0xff]
    %v3011 = vld [vmem:[%s121 + $0x30] sm:$0xff]
    %v3012 = vld [vmem:[%s121 + $0x38] sm:$0xff]
    %v3013 = vld [vmem:[%s121 + $0x40] sm:$0xff]
    %v3014 = vld [vmem:[%s121 + $0x48] sm:$0xff]
    %v3015 = vld [vmem:[%s121 + $0x50] sm:$0xff]
    %v3016 = vld [vmem:[%s121 + $0x58] sm:$0xff]
    %v3017 = vld [vmem:[%s121 + $0x60] sm:$0xff]
    %v3018 = vld [vmem:[%s121 + $0x68] sm:$0xff]
    %v3019 = vld [vmem:[%s121 + $0x70] sm:$0xff]
    %v3020 = vld [vmem:[%s121 + $0x78] sm:$0xff]
    %v3021 = vstv %s3004
    %v3022 = vmul.f32 %v3021, %v3005
    %v3023 = vmul.f32 %v3021, %v3006
    %v3024 = vmul.f32 %v3021, %v3007
    %v3025 = vmul.f32 %v3021, %v3008
    %v3026 = vmul.f32 %v3021, %v3009
    %v3027 = vmul.f32 %v3021, %v3010
    %v3028 = vmul.f32 %v3021, %v3011
    %v3029 = vmul.f32 %v3021, %v3012
    %v3030 = vmul.f32 %v3021, %v3013
    %v3031 = vmul.f32 %v3021, %v3014
    %v3032 = vmul.f32 %v3021, %v3015
    %v3033 = vmul.f32 %v3021, %v3016
    %v3034 = vmul.f32 %v3021, %v3017
    %v3035 = vmul.f32 %v3021, %v3018
    %v3036 = vmul.f32 %v3021, %v3019
    %v3037 = vmul.f32 %v3021, %v3020
    %v3038 = vadd.f32 %v2988, %v3022
    %v3039 = vadd.f32 %v2989, %v3023
    %v3040 = vadd.f32 %v2990, %v3024
    %v3041 = vadd.f32 %v2991, %v3025
    %v3042 = vadd.f32 %v2992, %v3026
    %v3043 = vadd.f32 %v2993, %v3027
    %v3044 = vadd.f32 %v2994, %v3028
    %v3045 = vadd.f32 %v2995, %v3029
    %v3046 = vadd.f32 %v2996, %v3030
    %v3047 = vadd.f32 %v2997, %v3031
    %v3048 = vadd.f32 %v2998, %v3032
    %v3049 = vadd.f32 %v2999, %v3033
    %v3050 = vadd.f32 %v3000, %v3034
    %v3051 = vadd.f32 %v3001, %v3035
    %v3052 = vadd.f32 %v3002, %v3036
    %v3053 = vadd.f32 %v3003, %v3037
    %s3054 = sld [smem:[#allocation4 + $0x583]]
    %v3055 = vld [vmem:[%s172] sm:$0xff]
    %v3056 = vld [vmem:[%s172 + $0x8] sm:$0xff]
    %v3057 = vld [vmem:[%s172 + $0x10] sm:$0xff]
    %v3058 = vld [vmem:[%s172 + $0x18] sm:$0xff]
    %v3059 = vld [vmem:[%s172 + $0x20] sm:$0xff]
    %v3060 = vld [vmem:[%s172 + $0x28] sm:$0xff]
    %v3061 = vld [vmem:[%s172 + $0x30] sm:$0xff]
    %v3062 = vld [vmem:[%s172 + $0x38] sm:$0xff]
    %v3063 = vld [vmem:[%s172 + $0x40] sm:$0xff]
    %v3064 = vld [vmem:[%s172 + $0x48] sm:$0xff]
    %v3065 = vld [vmem:[%s172 + $0x50] sm:$0xff]
    %v3066 = vld [vmem:[%s172 + $0x58] sm:$0xff]
    %v3067 = vld [vmem:[%s172 + $0x60] sm:$0xff]
    %v3068 = vld [vmem:[%s172 + $0x68] sm:$0xff]
    %v3069 = vld [vmem:[%s172 + $0x70] sm:$0xff]
    %v3070 = vld [vmem:[%s172 + $0x78] sm:$0xff]
    %v3071 = vstv %s3054
    %v3072 = vmul.f32 %v3071, %v3055
    %v3073 = vmul.f32 %v3071, %v3056
    %v3074 = vmul.f32 %v3071, %v3057
    %v3075 = vmul.f32 %v3071, %v3058
    %v3076 = vmul.f32 %v3071, %v3059
    %v3077 = vmul.f32 %v3071, %v3060
    %v3078 = vmul.f32 %v3071, %v3061
    %v3079 = vmul.f32 %v3071, %v3062
    %v3080 = vmul.f32 %v3071, %v3063
    %v3081 = vmul.f32 %v3071, %v3064
    %v3082 = vmul.f32 %v3071, %v3065
    %v3083 = vmul.f32 %v3071, %v3066
    %v3084 = vmul.f32 %v3071, %v3067
    %v3085 = vmul.f32 %v3071, %v3068
    %v3086 = vmul.f32 %v3071, %v3069
    %v3087 = vmul.f32 %v3071, %v3070
    %v3088 = vadd.f32 %v3038, %v3072
    %v3089 = vadd.f32 %v3039, %v3073
    %v3090 = vadd.f32 %v3040, %v3074
    %v3091 = vadd.f32 %v3041, %v3075
    %v3092 = vadd.f32 %v3042, %v3076
    %v3093 = vadd.f32 %v3043, %v3077
    %v3094 = vadd.f32 %v3044, %v3078
    %v3095 = vadd.f32 %v3045, %v3079
    %v3096 = vadd.f32 %v3046, %v3080
    %v3097 = vadd.f32 %v3047, %v3081
    %v3098 = vadd.f32 %v3048, %v3082
    %v3099 = vadd.f32 %v3049, %v3083
    %v3100 = vadd.f32 %v3050, %v3084
    %v3101 = vadd.f32 %v3051, %v3085
    %v3102 = vadd.f32 %v3052, %v3086
    %v3103 = vadd.f32 %v3053, %v3087
    %s3104 = sld [smem:[#allocation4 + $0x584]]
    %v3105 = vstv %s3104
    %v3106 = vadd.f32 %v3088, %v3105
    %v3107 = vadd.f32 %v3089, %v3105
    %v3108 = vadd.f32 %v3090, %v3105
    %v3109 = vadd.f32 %v3091, %v3105
    %v3110 = vadd.f32 %v3092, %v3105
    %v3111 = vadd.f32 %v3093, %v3105
    %v3112 = vadd.f32 %v3094, %v3105
    %v3113 = vadd.f32 %v3095, %v3105
    %v3114 = vadd.f32 %v3096, %v3105
    %v3115 = vadd.f32 %v3097, %v3105
    %v3116 = vadd.f32 %v3098, %v3105
    %v3117 = vadd.f32 %v3099, %v3105
    %v3118 = vadd.f32 %v3100, %v3105
    %v3119 = vadd.f32 %v3101, %v3105
    %v3120 = vadd.f32 %v3102, %v3105
    %v3121 = vadd.f32 %v3103, %v3105
    %v3122 = vtanh.pop %v3106
    %v3123 = vtanh.pop %v3107
    %v3124 = vtanh.pop %v3108
    %v3125 = vtanh.pop %v3109
    %v3126 = vtanh.pop %v3110
    %v3127 = vtanh.pop %v3111
    %v3128 = vtanh.pop %v3112
    %v3129 = vtanh.pop %v3113
    %v3130 = vtanh.pop %v3114
    %v3131 = vtanh.pop %v3115
    %v3132 = vtanh.pop %v3116
    %v3133 = vtanh.pop %v3117
    %v3134 = vtanh.pop %v3118
    %v3135 = vtanh.pop %v3119
    %v3136 = vtanh.pop %v3120
    %v3137 = vtanh.pop %v3121
    %v3138 = vadd.f32 %v3122, %v3123
    %v3139 = vadd.f32 %v3138, %v3124
    %v3140 = vadd.f32 %v3139, %v3125
    %v3141 = vadd.f32 %v3140, %v3126
    %v3142 = vadd.f32 %v3141, %v3127
    %v3143 = vadd.f32 %v3142, %v3128
    %v3144 = vadd.f32 %v3143, %v3129
    %v3145 = vadd.f32 %v3144, %v3130
    %v3146 = vadd.f32 %v3145, %v3131
    %v3147 = vadd.f32 %v3146, %v3132
    %v3148 = vadd.f32 %v3147, %v3133
    %v3149 = vadd.f32 %v3148, %v3134
    %v3150 = vadd.f32 %v3149, %v3135
    %v3151 = vadd.f32 %v3150, %v3136
    %v3152 = vadd.f32 %v3151, %v3137
    %v3153 = vrot.slane %v3152, 4
    %v3154 = vadd.f32 %v3152, %v3153
    %v3155 = vrot.slane %v3154, 2
    %v3156 = vadd.f32 %v3154, %v3155
    %v3157 = vrot.slane %v3156, 1
    %v3158 = vadd.f32 %v3156, %v3157
    %3159 = vst [vmem:[#allocation2 + $0xb] sm:$0x1] %v3158
    %v3160 = vmax.f32 %v3122, %v3126
    %v3161 = vmax.f32 %v3123, %v3127
    %v3162 = vmax.f32 %v3124, %v3128
    %v3163 = vmax.f32 %v3125, %v3129
    %v3164 = vmax.f32 %v3160, %v3130
    %v3165 = vmax.f32 %v3161, %v3131
    %v3166 = vmax.f32 %v3162, %v3132
    %v3167 = vmax.f32 %v3163, %v3133
    %v3168 = vmax.f32 %v3164, %v3134
    %v3169 = vmax.f32 %v3165, %v3135
    %v3170 = vmax.f32 %v3166, %v3136
    %v3171 = vmax.f32 %v3167, %v3137
    %v3172 = vmax.f32 %v3168, %v3169
    %v3173 = vmax.f32 %v3170, %v3171
    %v3174 = vmax.f32 %v3172, %v3173
    %v3175 = vrot.slane %v3174, 4
    %v3176 = vmax.f32 %v3174, %v3175
    %v3177 = vrot.slane %v3176, 2
    %v3178 = vmax.f32 %v3176, %v3177
    %v3179 = vrot.slane %v3178, 1
    %v3180 = vmax.f32 %v3178, %v3179
    %3181 = vst [vmem:[#allocation3 + $0xb] sm:$0x1] %v3180
    %s3182 = sld [smem:[#allocation4 + $0x600]]
    %v3183 = vld [vmem:[%s0] sm:$0xff]
    %v3184 = vld [vmem:[%s0 + $0x8] sm:$0xff]
    %v3185 = vld [vmem:[%s0 + $0x10] sm:$0xff]
    %v3186 = vld [vmem:[%s0 + $0x18] sm:$0xff]
    %v3187 = vld [vmem:[%s0 + $0x20] sm:$0xff]
    %v3188 = vld [vmem:[%s0 + $0x28] sm:$0xff]
    %v3189 = vld [vmem:[%s0 + $0x30] sm:$0xff]
    %v3190 = vld [vmem:[%s0 + $0x38] sm:$0xff]
    %v3191 = vld [vmem:[%s0 + $0x40] sm:$0xff]
    %v3192 = vld [vmem:[%s0 + $0x48] sm:$0xff]
    %v3193 = vld [vmem:[%s0 + $0x50] sm:$0xff]
    %v3194 = vld [vmem:[%s0 + $0x58] sm:$0xff]
    %v3195 = vld [vmem:[%s0 + $0x60] sm:$0xff]
    %v3196 = vld [vmem:[%s0 + $0x68] sm:$0xff]
    %v3197 = vld [vmem:[%s0 + $0x70] sm:$0xff]
    %v3198 = vld [vmem:[%s0 + $0x78] sm:$0xff]
    %v3199 = vstv %s3182
    %v3200 = vmul.f32 %v3199, %v3183
    %v3201 = vmul.f32 %v3199, %v3184
    %v3202 = vmul.f32 %v3199, %v3185
    %v3203 = vmul.f32 %v3199, %v3186
    %v3204 = vmul.f32 %v3199, %v3187
    %v3205 = vmul.f32 %v3199, %v3188
    %v3206 = vmul.f32 %v3199, %v3189
    %v3207 = vmul.f32 %v3199, %v3190
    %v3208 = vmul.f32 %v3199, %v3191
    %v3209 = vmul.f32 %v3199, %v3192
    %v3210 = vmul.f32 %v3199, %v3193
    %v3211 = vmul.f32 %v3199, %v3194
    %v3212 = vmul.f32 %v3199, %v3195
    %v3213 = vmul.f32 %v3199, %v3196
    %v3214 = vmul.f32 %v3199, %v3197
    %v3215 = vmul.f32 %v3199, %v3198
    %s3216 = sld [smem:[#allocation4 + $0x601]]
    %v3217 = vld [vmem:[%s70] sm:$0xff]
    %v3218 = vld [vmem:[%s70 + $0x8] sm:$0xff]
    %v3219 = vld [vmem:[%s70 + $0x10] sm:$0xff]
    %v3220 = vld [vmem:[%s70 + $0x18] sm:$0xff]
    %v3221 = vld [vmem:[%s70 + $0x20] sm:$0xff]
    %v3222 = vld [vmem:[%s70 + $0x28] sm:$0xff]
    %v3223 = vld [vmem:[%s70 + $0x30] sm:$0xff]
    %v3224 = vld [vmem:[%s70 + $0x38] sm:$0xff]
    %v3225 = vld [vmem:[%s70 + $0x40] sm:$0xff]
    %v3226 = vld [vmem:[%s70 + $0x48] sm:$0xff]
    %v3227 = vld [vmem:[%s70 + $0x50] sm:$0xff]
    %v3228 = vld [vmem:[%s70 + $0x58] sm:$0xff]
    %v3229 = vld [vmem:[%s70 + $0x60] sm:$0xff]
    %v3230 = vld [vmem:[%s70 + $0x68] sm:$0xff]
    %v3231 = vld [vmem:[%s70 + $0x70] sm:$0xff]
    %v3232 = vld [vmem:[%s70 + $0x78] sm:$0xff]
    %v3233 = vstv %s3216
    %v3234 = vmul.f32 %v3233, %v3217
    %v3235 = vmul.f32 %v3233, %v3218
    %v3236 = vmul.f32 %v3233, %v3219
    %v3237 = vmul.f32 %v3233, %v3220
    %v3238 = vmul.f32 %v3233, %v3221
    %v3239 = vmul.f32 %v3233, %v3222
    %v3240 = vmul.f32 %v3233, %v3223
    %v3241 = vmul.f32 %v3233, %v3224
    %v3242 = vmul.f32 %v3233, %v3225
    %v3243 = vmul.f32 %v3233, %v3226
    %v3244 = vmul.f32 %v3233, %v3227
    %v3245 = vmul.f32 %v3233, %v3228
    %v3246 = vmul.f32 %v3233, %v3229
    %v3247 = vmul.f32 %v3233, %v3230
    %v3248 = vmul.f32 %v3233, %v3231
    %v3249 = vmul.f32 %v3233, %v3232
    %v3250 = vadd.f32 %v3200, %v3234
    %v3251 = vadd.f32 %v3201, %v3235
    %v3252 = vadd.f32 %v3202, %v3236
    %v3253 = vadd.f32 %v3203, %v3237
    %v3254 = vadd.f32 %v3204, %v3238
    %v3255 = vadd.f32 %v3205, %v3239
    %v3256 = vadd.f32 %v3206, %v3240
    %v3257 = vadd.f32 %v3207, %v3241
    %v3258 = vadd.f32 %v3208, %v3242
    %v3259 = vadd.f32 %v3209, %v3243
    %v3260 = vadd.f32 %v3210, %v3244
    %v3261 = vadd.f32 %v3211, %v3245
    %v3262 = vadd.f32 %v3212, %v3246
    %v3263 = vadd.f32 %v3213, %v3247
    %v3264 = vadd.f32 %v3214, %v3248
    %v3265 = vadd.f32 %v3215, %v3249
    %s3266 = sld [smem:[#allocation4 + $0x602]]
    %v3267 = vld [vmem:[%s121] sm:$0xff]
    %v3268 = vld [vmem:[%s121 + $0x8] sm:$0xff]
    %v3269 = vld [vmem:[%s121 + $0x10] sm:$0xff]
    %v3270 = vld [vmem:[%s121 + $0x18] sm:$0xff]
    %v3271 = vld [vmem:[%s121 + $0x20] sm:$0xff]
    %v3272 = vld [vmem:[%s121 + $0x28] sm:$0xff]
    %v3273 = vld [vmem:[%s121 + $0x30] sm:$0xff]
    %v3274 = vld [vmem:[%s121 + $0x38] sm:$0xff]
    %v3275 = vld [vmem:[%s121 + $0x40] sm:$0xff]
    %v3276 = vld [vmem:[%s121 + $0x48] sm:$0xff]
    %v3277 = vld [vmem:[%s121 + $0x50] sm:$0xff]
    %v3278 = vld [vmem:[%s121 + $0x58] sm:$0xff]
    %v3279 = vld [vmem:[%s121 + $0x60] sm:$0xff]
    %v3280 = vld [vmem:[%s121 + $0x68] sm:$0xff]
    %v3281 = vld [vmem:[%s121 + $0x70] sm:$0xff]
    %v3282 = vld [vmem:[%s121 + $0x78] sm:$0xff]
    %v3283 = vstv %s3266
    %v3284 = vmul.f32 %v3283, %v3267
    %v3285 = vmul.f32 %v3283, %v3268
    %v3286 = vmul.f32 %v3283, %v3269
    %v3287 = vmul.f32 %v3283, %v3270
    %v3288 = vmul.f32 %v3283, %v3271
    %v3289 = vmul.f32 %v3283, %v3272
    %v3290 = vmul.f32 %v3283, %v3273
    %v3291 = vmul.f32 %v3283, %v3274
    %v3292 = vmul.f32 %v3283, %v3275
    %v3293 = vmul.f32 %v3283, %v3276
    %v3294 = vmul.f32 %v3283, %v3277
    %v3295 = vmul.f32 %v3283, %v3278
    %v3296 = vmul.f32 %v3283, %v3279
    %v3297 = vmul.f32 %v3283, %v3280
    %v3298 = vmul.f32 %v3283, %v3281
    %v3299 = vmul.f32 %v3283, %v3282
    %v3300 = vadd.f32 %v3250, %v3284
    %v3301 = vadd.f32 %v3251, %v3285
    %v3302 = vadd.f32 %v3252, %v3286
    %v3303 = vadd.f32 %v3253, %v3287
    %v3304 = vadd.f32 %v3254, %v3288
    %v3305 = vadd.f32 %v3255, %v3289
    %v3306 = vadd.f32 %v3256, %v3290
    %v3307 = vadd.f32 %v3257, %v3291
    %v3308 = vadd.f32 %v3258, %v3292
    %v3309 = vadd.f32 %v3259, %v3293
    %v3310 = vadd.f32 %v3260, %v3294
    %v3311 = vadd.f32 %v3261, %v3295
    %v3312 = vadd.f32 %v3262, %v3296
    %v3313 = vadd.f32 %v3263, %v3297
    %v3314 = vadd.f32 %v3264, %v3298
    %v3315 = vadd.f32 %v3265, %v3299
    %s3316 = sld [smem:[#allocation4 + $0x603]]
    %v3317 = vld [vmem:[%s172] sm:$0xff]
    %v3318 = vld [vmem:[%s172 + $0x8] sm:$0xff]
    %v3319 = vld [vmem:[%s172 + $0x10] sm:$0xff]
    %v3320 = vld [vmem:[%s172 + $0x18] sm:$0xff]
    %v3321 = vld [vmem:[%s172 + $0x20] sm:$0xff]
    %v3322 = vld [vmem:[%s172 + $0x28] sm:$0xff]
    %v3323 = vld [vmem:[%s172 + $0x30] sm:$0xff]
    %v3324 = vld [vmem:[%s172 + $0x38] sm:$0xff]
    %v3325 = vld [vmem:[%s172 + $0x40] sm:$0xff]
    %v3326 = vld [vmem:[%s172 + $0x48] sm:$0xff]
    %v3327 = vld [vmem:[%s172 + $0x50] sm:$0xff]
    %v3328 = vld [vmem:[%s172 + $0x58] sm:$0xff]
    %v3329 = vld [vmem:[%s172 + $0x60] sm:$0xff]
    %v3330 = vld [vmem:[%s172 + $0x68] sm:$0xff]
    %v3331 = vld [vmem:[%s172 + $0x70] sm:$0xff]
    %v3332 = vld [vmem:[%s172 + $0x78] sm:$0xff]
    %v3333 = vstv %s3316
    %v3334 = vmul.f32 %v3333, %v3317
    %v3335 = vmul.f32 %v3333, %v3318
    %v3336 = vmul.f32 %v3333, %v3319
    %v3337 = vmul.f32 %v3333, %v3320
    %v3338 = vmul.f32 %v3333, %v3321
    %v3339 = vmul.f32 %v3333, %v3322
    %v3340 = vmul.f32 %v3333, %v3323
    %v3341 = vmul.f32 %v3333, %v3324
    %v3342 = vmul.f32 %v3333, %v3325
    %v3343 = vmul.f32 %v3333, %v3326
    %v3344 = vmul.f32 %v3333, %v3327
    %v3345 = vmul.f32 %v3333, %v3328
    %v3346 = vmul.f32 %v3333, %v3329
    %v3347 = vmul.f32 %v3333, %v3330
    %v3348 = vmul.f32 %v3333, %v3331
    %v3349 = vmul.f32 %v3333, %v3332
    %v3350 = vadd.f32 %v3300, %v3334
    %v3351 = vadd.f32 %v3301, %v3335
    %v3352 = vadd.f32 %v3302, %v3336
    %v3353 = vadd.f32 %v3303, %v3337
    %v3354 = vadd.f32 %v3304, %v3338
    %v3355 = vadd.f32 %v3305, %v3339
    %v3356 = vadd.f32 %v3306, %v3340
    %v3357 = vadd.f32 %v3307, %v3341
    %v3358 = vadd.f32 %v3308, %v3342
    %v3359 = vadd.f32 %v3309, %v3343
    %v3360 = vadd.f32 %v3310, %v3344
    %v3361 = vadd.f32 %v3311, %v3345
    %v3362 = vadd.f32 %v3312, %v3346
    %v3363 = vadd.f32 %v3313, %v3347
    %v3364 = vadd.f32 %v3314, %v3348
    %v3365 = vadd.f32 %v3315, %v3349
    %s3366 = sld [smem:[#allocation4 + $0x604]]
    %v3367 = vstv %s3366
    %v3368 = vadd.f32 %v3350, %v3367
    %v3369 = vadd.f32 %v3351, %v3367
    %v3370 = vadd.f32 %v3352, %v3367
    %v3371 = vadd.f32 %v3353, %v3367
    %v3372 = vadd.f32 %v3354, %v3367
    %v3373 = vadd.f32 %v3355, %v3367
    %v3374 = vadd.f32 %v3356, %v3367
    %v3375 = vadd.f32 %v3357, %v3367
    %v3376 = vadd.f32 %v3358, %v3367
    %v3377 = vadd.f32 %v3359, %v3367
    %v3378 = vadd.f32 %v3360, %v3367
    %v3379 = vadd.f32 %v3361, %v3367
    %v3380 = vadd.f32 %v3362, %v3367
    %v3381 = vadd.f32 %v3363, %v3367
    %v3382 = vadd.f32 %v3364, %v3367
    %v3383 = vadd.f32 %v3365, %v3367
    %v3384 = vtanh.pop %v3368
    %v3385 = vtanh.pop %v3369
    %v3386 = vtanh.pop %v3370
    %v3387 = vtanh.pop %v3371
    %v3388 = vtanh.pop %v3372
    %v3389 = vtanh.pop %v3373
    %v3390 = vtanh.pop %v3374
    %v3391 = vtanh.pop %v3375
    %v3392 = vtanh.pop %v3376
    %v3393 = vtanh.pop %v3377
    %v3394 = vtanh.pop %v3378
    %v3395 = vtanh.pop %v3379
    %v3396 = vtanh.pop %v3380
    %v3397 = vtanh.pop %v3381
    %v3398 = vtanh.pop %v3382
    %v3399 = vtanh.pop %v3383
    %v3400 = vadd.f32 %v3384, %v3385
    %v3401 = vadd.f32 %v3400, %v3386
    %v3402 = vadd.f32 %v3401, %v3387
    %v3403 = vadd.f32 %v3402, %v3388
    %v3404 = vadd.f32 %v3403, %v3389
    %v3405 = vadd.f32 %v3404, %v3390
    %v3406 = vadd.f32 %v3405, %v3391
    %v3407 = vadd.f32 %v3406, %v3392
    %v3408 = vadd.f32 %v3407, %v3393
    %v3409 = vadd.f32 %v3408, %v3394
    %v3410 = vadd.f32 %v3409, %v3395
    %v3411 = vadd.f32 %v3410, %v3396
    %v3412 = vadd.f32 %v3411, %v3397
    %v3413 = vadd.f32 %v3412, %v3398
    %v3414 = vadd.f32 %v3413, %v3399
    %v3415 = vrot.slane %v3414, 4
    %v3416 = vadd.f32 %v3414, %v3415
    %v3417 = vrot.slane %v3416, 2
    %v3418 = vadd.f32 %v3416, %v3417
    %v3419 = vrot.slane %v3418, 1
    %v3420 = vadd.f32 %v3418, %v3419
    %3421 = vst [vmem:[#allocation2 + $0xc] sm:$0x1] %v3420
    %v3422 = vmax.f32 %v3384, %v3388
    %v3423 = vmax.f32 %v3385, %v3389
    %v3424 = vmax.f32 %v3386, %v3390
    %v3425 = vmax.f32 %v3387, %v3391
    %v3426 = vmax.f32 %v3422, %v3392
    %v3427 = vmax.f32 %v3423, %v3393
    %v3428 = vmax.f32 %v3424, %v3394
    %v3429 = vmax.f32 %v3425, %v3395
    %v3430 = vmax.f32 %v3426, %v3396
    %v3431 = vmax.f32 %v3427, %v3397
    %v3432 = vmax.f32 %v3428, %v3398
    %v3433 = vmax.f32 %v3429, %v3399
    %v3434 = vmax.f32 %v3430, %v3431
    %v3435 = vmax.f32 %v3432, %v3433
    %v3436 = vmax.f32 %v3434, %v3435
    %v3437 = vrot.slane %v3436, 4
    %v3438 = vmax.f32 %v3436, %v3437
    %v3439 = vrot.slane %v3438, 2
    %v3440 = vmax.f32 %v3438, %v3439
    %v3441 = vrot.slane %v3440, 1
    %v3442 = vmax.f32 %v3440, %v3441
    %3443 = vst [vmem:[#allocation3 + $0xc] sm:$0x1] %v3442
    %s3444 = sld [smem:[#allocation4 + $0x680]]
    %v3445 = vld [vmem:[%s0] sm:$0xff]
    %v3446 = vld [vmem:[%s0 + $0x8] sm:$0xff]
    %v3447 = vld [vmem:[%s0 + $0x10] sm:$0xff]
    %v3448 = vld [vmem:[%s0 + $0x18] sm:$0xff]
    %v3449 = vld [vmem:[%s0 + $0x20] sm:$0xff]
    %v3450 = vld [vmem:[%s0 + $0x28] sm:$0xff]
    %v3451 = vld [vmem:[%s0 + $0x30] sm:$0xff]
    %v3452 = vld [vmem:[%s0 + $0x38] sm:$0xff]
    %v3453 = vld [vmem:[%s0 + $0x40] sm:$0xff]
    %v3454 = vld [vmem:[%s0 + $0x48] sm:$0xff]
    %v3455 = vld [vmem:[%s0 + $0x50] sm:$0xff]
    %v3456 = vld [vmem:[%s0 + $0x58] sm:$0xff]
    %v3457 = vld [vmem:[%s0 + $0x60] sm:$0xff]
    %v3458 = vld [vmem:[%s0 + $0x68] sm:$0xff]
    %v3459 = vld [vmem:[%s0 + $0x70] sm:$0xff]
    %v3460 = vld [vmem:[%s0 + $0x78] sm:$0xff]
    %v3461 = vstv %s3444
    %v3462 = vmul.f32 %v3461, %v3445
    %v3463 = vmul.f32 %v3461, %v3446
    %v3464 = vmul.f32 %v3461, %v3447
    %v3465 = vmul.f32 %v3461, %v3448
    %v3466 = vmul.f32 %v3461, %v3449
    %v3467 = vmul.f32 %v3461, %v3450
    %v3468 = vmul.f32 %v3461, %v3451
    %v3469 = vmul.f32 %v3461, %v3452
    %v3470 = vmul.f32 %v3461, %v3453
    %v3471 = vmul.f32 %v3461, %v3454
    %v3472 = vmul.f32 %v3461, %v3455
    %v3473 = vmul.f32 %v3461, %v3456
    %v3474 = vmul.f32 %v3461, %v3457
    %v3475 = vmul.f32 %v3461, %v3458
    %v3476 = vmul.f32 %v3461, %v3459
    %v3477 = vmul.f32 %v3461, %v3460
    %s3478 = sld [smem:[#allocation4 + $0x681]]
    %v3479 = vld [vmem:[%s70] sm:$0xff]
    %v3480 = vld [vmem:[%s70 + $0x8] sm:$0xff]
    %v3481 = vld [vmem:[%s70 + $0x10] sm:$0xff]
    %v3482 = vld [vmem:[%s70 + $0x18] sm:$0xff]
    %v3483 = vld [vmem:[%s70 + $0x20] sm:$0xff]
    %v3484 = vld [vmem:[%s70 + $0x28] sm:$0xff]
    %v3485 = vld [vmem:[%s70 + $0x30] sm:$0xff]
    %v3486 = vld [vmem:[%s70 + $0x38] sm:$0xff]
    %v3487 = vld [vmem:[%s70 + $0x40] sm:$0xff]
    %v3488 = vld [vmem:[%s70 + $0x48] sm:$0xff]
    %v3489 = vld [vmem:[%s70 + $0x50] sm:$0xff]
    %v3490 = vld [vmem:[%s70 + $0x58] sm:$0xff]
    %v3491 = vld [vmem:[%s70 + $0x60] sm:$0xff]
    %v3492 = vld [vmem:[%s70 + $0x68] sm:$0xff]
    %v3493 = vld [vmem:[%s70 + $0x70] sm:$0xff]
    %v3494 = vld [vmem:[%s70 + $0x78] sm:$0xff]
    %v3495 = vstv %s3478
    %v3496 = vmul.f32 %v3495, %v3479
    %v3497 = vmul.f32 %v3495, %v3480
    %v3498 = vmul.f32 %v3495, %v3481
    %v3499 = vmul.f32 %v3495, %v3482
    %v3500 = vmul.f32 %v3495, %v3483
    %v3501 = vmul.f32 %v3495, %v3484
    %v3502 = vmul.f32 %v3495, %v3485
    %v3503 = vmul.f32 %v3495, %v3486
    %v3504 = vmul.f32 %v3495, %v3487
    %v3505 = vmul.f32 %v3495, %v3488
    %v3506 = vmul.f32 %v3495, %v3489
    %v3507 = vmul.f32 %v3495, %v3490
    %v3508 = vmul.f32 %v3495, %v3491
    %v3509 = vmul.f32 %v3495, %v3492
    %v3510 = vmul.f32 %v3495, %v3493
    %v3511 = vmul.f32 %v3495, %v3494
    %v3512 = vadd.f32 %v3462, %v3496
    %v3513 = vadd.f32 %v3463, %v3497
    %v3514 = vadd.f32 %v3464, %v3498
    %v3515 = vadd.f32 %v3465, %v3499
    %v3516 = vadd.f32 %v3466, %v3500
    %v3517 = vadd.f32 %v3467, %v3501
    %v3518 = vadd.f32 %v3468, %v3502
    %v3519 = vadd.f32 %v3469, %v3503
    %v3520 = vadd.f32 %v3470, %v3504
    %v3521 = vadd.f32 %v3471, %v3505
    %v3522 = vadd.f32 %v3472, %v3506
    %v3523 = vadd.f32 %v3473, %v3507
    %v3524 = vadd.f32 %v3474, %v3508
    %v3525 = vadd.f32 %v3475, %v3509
    %v3526 = vadd.f32 %v3476, %v3510
    %v3527 = vadd.f32 %v3477, %v3511
    %s3528 = sld [smem:[#allocation4 + $0x682]]
    %v3529 = vld [vmem:[%s121] sm:$0xff]
    %v3530 = vld [vmem:[%s121 + $0x8] sm:$0xff]
    %v3531 = vld [vmem:[%s121 + $0x10] sm:$0xff]
    %v3532 = vld [vmem:[%s121 + $0x18] sm:$0xff]
    %v3533 = vld [vmem:[%s121 + $0x20] sm:$0xff]
    %v3534 = vld [vmem:[%s121 + $0x28] sm:$0xff]
    %v3535 = vld [vmem:[%s121 + $0x30] sm:$0xff]
    %v3536 = vld [vmem:[%s121 + $0x38] sm:$0xff]
    %v3537 = vld [vmem:[%s121 + $0x40] sm:$0xff]
    %v3538 = vld [vmem:[%s121 + $0x48] sm:$0xff]
    %v3539 = vld [vmem:[%s121 + $0x50] sm:$0xff]
    %v3540 = vld [vmem:[%s121 + $0x58] sm:$0xff]
    %v3541 = vld [vmem:[%s121 + $0x60] sm:$0xff]
    %v3542 = vld [vmem:[%s121 + $0x68] sm:$0xff]
    %v3543 = vld [vmem:[%s121 + $0x70] sm:$0xff]
    %v3544 = vld [vmem:[%s121 + $0x78] sm:$0xff]
    %v3545 = vstv %s3528
    %v3546 = vmul.f32 %v3545, %v3529
    %v3547 = vmul.f32 %v3545, %v3530
    %v3548 = vmul.f32 %v3545, %v3531
    %v3549 = vmul.f32 %v3545, %v3532
    %v3550 = vmul.f32 %v3545, %v3533
    %v3551 = vmul.f32 %v3545, %v3534
    %v3552 = vmul.f32 %v3545, %v3535
    %v3553 = vmul.f32 %v3545, %v3536
    %v3554 = vmul.f32 %v3545, %v3537
    %v3555 = vmul.f32 %v3545, %v3538
    %v3556 = vmul.f32 %v3545, %v3539
    %v3557 = vmul.f32 %v3545, %v3540
    %v3558 = vmul.f32 %v3545, %v3541
    %v3559 = vmul.f32 %v3545, %v3542
    %v3560 = vmul.f32 %v3545, %v3543
    %v3561 = vmul.f32 %v3545, %v3544
    %v3562 = vadd.f32 %v3512, %v3546
    %v3563 = vadd.f32 %v3513, %v3547
    %v3564 = vadd.f32 %v3514, %v3548
    %v3565 = vadd.f32 %v3515, %v3549
    %v3566 = vadd.f32 %v3516, %v3550
    %v3567 = vadd.f32 %v3517, %v3551
    %v3568 = vadd.f32 %v3518, %v3552
    %v3569 = vadd.f32 %v3519, %v3553
    %v3570 = vadd.f32 %v3520, %v3554
    %v3571 = vadd.f32 %v3521, %v3555
    %v3572 = vadd.f32 %v3522, %v3556
    %v3573 = vadd.f32 %v3523, %v3557
    %v3574 = vadd.f32 %v3524, %v3558
    %v3575 = vadd.f32 %v3525, %v3559
    %v3576 = vadd.f32 %v3526, %v3560
    %v3577 = vadd.f32 %v3527, %v3561
    %s3578 = sld [smem:[#allocation4 + $0x683]]
    %v3579 = vld [vmem:[%s172] sm:$0xff]
    %v3580 = vld [vmem:[%s172 + $0x8] sm:$0xff]
    %v3581 = vld [vmem:[%s172 + $0x10] sm:$0xff]
    %v3582 = vld [vmem:[%s172 + $0x18] sm:$0xff]
    %v3583 = vld [vmem:[%s172 + $0x20] sm:$0xff]
    %v3584 = vld [vmem:[%s172 + $0x28] sm:$0xff]
    %v3585 = vld [vmem:[%s172 + $0x30] sm:$0xff]
    %v3586 = vld [vmem:[%s172 + $0x38] sm:$0xff]
    %v3587 = vld [vmem:[%s172 + $0x40] sm:$0xff]
    %v3588 = vld [vmem:[%s172 + $0x48] sm:$0xff]
    %v3589 = vld [vmem:[%s172 + $0x50] sm:$0xff]
    %v3590 = vld [vmem:[%s172 + $0x58] sm:$0xff]
    %v3591 = vld [vmem:[%s172 + $0x60] sm:$0xff]
    %v3592 = vld [vmem:[%s172 + $0x68] sm:$0xff]
    %v3593 = vld [vmem:[%s172 + $0x70] sm:$0xff]
    %v3594 = vld [vmem:[%s172 + $0x78] sm:$0xff]
    %v3595 = vstv %s3578
    %v3596 = vmul.f32 %v3595, %v3579
    %v3597 = vmul.f32 %v3595, %v3580
    %v3598 = vmul.f32 %v3595, %v3581
    %v3599 = vmul.f32 %v3595, %v3582
    %v3600 = vmul.f32 %v3595, %v3583
    %v3601 = vmul.f32 %v3595, %v3584
    %v3602 = vmul.f32 %v3595, %v3585
    %v3603 = vmul.f32 %v3595, %v3586
    %v3604 = vmul.f32 %v3595, %v3587
    %v3605 = vmul.f32 %v3595, %v3588
    %v3606 = vmul.f32 %v3595, %v3589
    %v3607 = vmul.f32 %v3595, %v3590
    %v3608 = vmul.f32 %v3595, %v3591
    %v3609 = vmul.f32 %v3595, %v3592
    %v3610 = vmul.f32 %v3595, %v3593
    %v3611 = vmul.f32 %v3595, %v3594
    %v3612 = vadd.f32 %v3562, %v3596
    %v3613 = vadd.f32 %v3563, %v3597
    %v3614 = vadd.f32 %v3564, %v3598
    %v3615 = vadd.f32 %v3565, %v3599
    %v3616 = vadd.f32 %v3566, %v3600
    %v3617 = vadd.f32 %v3567, %v3601
    %v3618 = vadd.f32 %v3568, %v3602
    %v3619 = vadd.f32 %v3569, %v3603
    %v3620 = vadd.f32 %v3570, %v3604
    %v3621 = vadd.f32 %v3571, %v3605
    %v3622 = vadd.f32 %v3572, %v3606
    %v3623 = vadd.f32 %v3573, %v3607
    %v3624 = vadd.f32 %v3574, %v3608
    %v3625 = vadd.f32 %v3575, %v3609
    %v3626 = vadd.f32 %v3576, %v3610
    %v3627 = vadd.f32 %v3577, %v3611
    %s3628 = sld [smem:[#allocation4 + $0x684]]
    %v3629 = vstv %s3628
    %v3630 = vadd.f32 %v3612, %v3629
    %v3631 = vadd.f32 %v3613, %v3629
    %v3632 = vadd.f32 %v3614, %v3629
    %v3633 = vadd.f32 %v3615, %v3629
    %v3634 = vadd.f32 %v3616, %v3629
    %v3635 = vadd.f32 %v3617, %v3629
    %v3636 = vadd.f32 %v3618, %v3629
    %v3637 = vadd.f32 %v3619, %v3629
    %v3638 = vadd.f32 %v3620, %v3629
    %v3639 = vadd.f32 %v3621, %v3629
    %v3640 = vadd.f32 %v3622, %v3629
    %v3641 = vadd.f32 %v3623, %v3629
    %v3642 = vadd.f32 %v3624, %v3629
    %v3643 = vadd.f32 %v3625, %v3629
    %v3644 = vadd.f32 %v3626, %v3629
    %v3645 = vadd.f32 %v3627, %v3629
    %v3646 = vtanh.pop %v3630
    %v3647 = vtanh.pop %v3631
    %v3648 = vtanh.pop %v3632
    %v3649 = vtanh.pop %v3633
    %v3650 = vtanh.pop %v3634
    %v3651 = vtanh.pop %v3635
    %v3652 = vtanh.pop %v3636
    %v3653 = vtanh.pop %v3637
    %v3654 = vtanh.pop %v3638
    %v3655 = vtanh.pop %v3639
    %v3656 = vtanh.pop %v3640
    %v3657 = vtanh.pop %v3641
    %v3658 = vtanh.pop %v3642
    %v3659 = vtanh.pop %v3643
    %v3660 = vtanh.pop %v3644
    %v3661 = vtanh.pop %v3645
    %v3662 = vadd.f32 %v3646, %v3647
    %v3663 = vadd.f32 %v3662, %v3648
    %v3664 = vadd.f32 %v3663, %v3649
    %v3665 = vadd.f32 %v3664, %v3650
    %v3666 = vadd.f32 %v3665, %v3651
    %v3667 = vadd.f32 %v3666, %v3652
    %v3668 = vadd.f32 %v3667, %v3653
    %v3669 = vadd.f32 %v3668, %v3654
    %v3670 = vadd.f32 %v3669, %v3655
    %v3671 = vadd.f32 %v3670, %v3656
    %v3672 = vadd.f32 %v3671, %v3657
    %v3673 = vadd.f32 %v3672, %v3658
    %v3674 = vadd.f32 %v3673, %v3659
    %v3675 = vadd.f32 %v3674, %v3660
    %v3676 = vadd.f32 %v3675, %v3661
    %v3677 = vrot.slane %v3676, 4
    %v3678 = vadd.f32 %v3676, %v3677
    %v3679 = vrot.slane %v3678, 2
    %v3680 = vadd.f32 %v3678, %v3679
    %v3681 = vrot.slane %v3680, 1
    %v3682 = vadd.f32 %v3680, %v3681
    %3683 = vst [vmem:[#allocation2 + $0xd] sm:$0x1] %v3682
    %v3684 = vmax.f32 %v3646, %v3650
    %v3685 = vmax.f32 %v3647, %v3651
    %v3686 = vmax.f32 %v3648, %v3652
    %v3687 = vmax.f32 %v3649, %v3653
    %v3688 = vmax.f32 %v3684, %v3654
    %v3689 = vmax.f32 %v3685, %v3655
    %v3690 = vmax.f32 %v3686, %v3656
    %v3691 = vmax.f32 %v3687, %v3657
    %v3692 = vmax.f32 %v3688, %v3658
    %v3693 = vmax.f32 %v3689, %v3659
    %v3694 = vmax.f32 %v3690, %v3660
    %v3695 = vmax.f32 %v3691, %v3661
    %v3696 = vmax.f32 %v3692, %v3693
    %v3697 = vmax.f32 %v3694, %v3695
    %v3698 = vmax.f32 %v3696, %v3697
    %v3699 = vrot.slane %v3698, 4
    %v3700 = vmax.f32 %v3698, %v3699
    %v3701 = vrot.slane %v3700, 2
    %v3702 = vmax.f32 %v3700, %v3701
    %v3703 = vrot.slane %v3702, 1
    %v3704 = vmax.f32 %v3702, %v3703
    %3705 = vst [vmem:[#allocation3 + $0xd] sm:$0x1] %v3704
    %s3706 = sld [smem:[#allocation4 + $0x700]]
    %v3707 = vld [vmem:[%s0] sm:$0xff]
    %v3708 = vld [vmem:[%s0 + $0x8] sm:$0xff]
    %v3709 = vld [vmem:[%s0 + $0x10] sm:$0xff]
    %v3710 = vld [vmem:[%s0 + $0x18] sm:$0xff]
    %v3711 = vld [vmem:[%s0 + $0x20] sm:$0xff]
    %v3712 = vld [vmem:[%s0 + $0x28] sm:$0xff]
    %v3713 = vld [vmem:[%s0 + $0x30] sm:$0xff]
    %v3714 = vld [vmem:[%s0 + $0x38] sm:$0xff]
    %v3715 = vld [vmem:[%s0 + $0x40] sm:$0xff]
    %v3716 = vld [vmem:[%s0 + $0x48] sm:$0xff]
    %v3717 = vld [vmem:[%s0 + $0x50] sm:$0xff]
    %v3718 = vld [vmem:[%s0 + $0x58] sm:$0xff]
    %v3719 = vld [vmem:[%s0 + $0x60] sm:$0xff]
    %v3720 = vld [vmem:[%s0 + $0x68] sm:$0xff]
    %v3721 = vld [vmem:[%s0 + $0x70] sm:$0xff]
    %v3722 = vld [vmem:[%s0 + $0x78] sm:$0xff]
    %v3723 = vstv %s3706
    %v3724 = vmul.f32 %v3723, %v3707
    %v3725 = vmul.f32 %v3723, %v3708
    %v3726 = vmul.f32 %v3723, %v3709
    %v3727 = vmul.f32 %v3723, %v3710
    %v3728 = vmul.f32 %v3723, %v3711
    %v3729 = vmul.f32 %v3723, %v3712
    %v3730 = vmul.f32 %v3723, %v3713
    %v3731 = vmul.f32 %v3723, %v3714
    %v3732 = vmul.f32 %v3723, %v3715
    %v3733 = vmul.f32 %v3723, %v3716
    %v3734 = vmul.f32 %v3723, %v3717
    %v3735 = vmul.f32 %v3723, %v3718
    %v3736 = vmul.f32 %v3723, %v3719
    %v3737 = vmul.f32 %v3723, %v3720
    %v3738 = vmul.f32 %v3723, %v3721
    %v3739 = vmul.f32 %v3723, %v3722
    %s3740 = sld [smem:[#allocation4 + $0x701]]
    %v3741 = vld [vmem:[%s70] sm:$0xff]
    %v3742 = vld [vmem:[%s70 + $0x8] sm:$0xff]
    %v3743 = vld [vmem:[%s70 + $0x10] sm:$0xff]
    %v3744 = vld [vmem:[%s70 + $0x18] sm:$0xff]
    %v3745 = vld [vmem:[%s70 + $0x20] sm:$0xff]
    %v3746 = vld [vmem:[%s70 + $0x28] sm:$0xff]
    %v3747 = vld [vmem:[%s70 + $0x30] sm:$0xff]
    %v3748 = vld [vmem:[%s70 + $0x38] sm:$0xff]
    %v3749 = vld [vmem:[%s70 + $0x40] sm:$0xff]
    %v3750 = vld [vmem:[%s70 + $0x48] sm:$0xff]
    %v3751 = vld [vmem:[%s70 + $0x50] sm:$0xff]
    %v3752 = vld [vmem:[%s70 + $0x58] sm:$0xff]
    %v3753 = vld [vmem:[%s70 + $0x60] sm:$0xff]
    %v3754 = vld [vmem:[%s70 + $0x68] sm:$0xff]
    %v3755 = vld [vmem:[%s70 + $0x70] sm:$0xff]
    %v3756 = vld [vmem:[%s70 + $0x78] sm:$0xff]
    %v3757 = vstv %s3740
    %v3758 = vmul.f32 %v3757, %v3741
    %v3759 = vmul.f32 %v3757, %v3742
    %v3760 = vmul.f32 %v3757, %v3743
    %v3761 = vmul.f32 %v3757, %v3744
    %v3762 = vmul.f32 %v3757, %v3745
    %v3763 = vmul.f32 %v3757, %v3746
    %v3764 = vmul.f32 %v3757, %v3747
    %v3765 = vmul.f32 %v3757, %v3748
    %v3766 = vmul.f32 %v3757, %v3749
    %v3767 = vmul.f32 %v3757, %v3750
    %v3768 = vmul.f32 %v3757, %v3751
    %v3769 = vmul.f32 %v3757, %v3752
    %v3770 = vmul.f32 %v3757, %v3753
    %v3771 = vmul.f32 %v3757, %v3754
    %v3772 = vmul.f32 %v3757, %v3755
    %v3773 = vmul.f32 %v3757, %v3756
    %v3774 = vadd.f32 %v3724, %v3758
    %v3775 = vadd.f32 %v3725, %v3759
    %v3776 = vadd.f32 %v3726, %v3760
    %v3777 = vadd.f32 %v3727, %v3761
    %v3778 = vadd.f32 %v3728, %v3762
    %v3779 = vadd.f32 %v3729, %v3763
    %v3780 = vadd.f32 %v3730, %v3764
    %v3781 = vadd.f32 %v3731, %v3765
    %v3782 = vadd.f32 %v3732, %v3766
    %v3783 = vadd.f32 %v3733, %v3767
    %v3784 = vadd.f32 %v3734, %v3768
    %v3785 = vadd.f32 %v3735, %v3769
    %v3786 = vadd.f32 %v3736, %v3770
    %v3787 = vadd.f32 %v3737, %v3771
    %v3788 = vadd.f32 %v3738, %v3772
    %v3789 = vadd.f32 %v3739, %v3773
    %s3790 = sld [smem:[#allocation4 + $0x702]]
    %v3791 = vld [vmem:[%s121] sm:$0xff]
    %v3792 = vld [vmem:[%s121 + $0x8] sm:$0xff]
    %v3793 = vld [vmem:[%s121 + $0x10] sm:$0xff]
    %v3794 = vld [vmem:[%s121 + $0x18] sm:$0xff]
    %v3795 = vld [vmem:[%s121 + $0x20] sm:$0xff]
    %v3796 = vld [vmem:[%s121 + $0x28] sm:$0xff]
    %v3797 = vld [vmem:[%s121 + $0x30] sm:$0xff]
    %v3798 = vld [vmem:[%s121 + $0x38] sm:$0xff]
    %v3799 = vld [vmem:[%s121 + $0x40] sm:$0xff]
    %v3800 = vld [vmem:[%s121 + $0x48] sm:$0xff]
    %v3801 = vld [vmem:[%s121 + $0x50] sm:$0xff]
    %v3802 = vld [vmem:[%s121 + $0x58] sm:$0xff]
    %v3803 = vld [vmem:[%s121 + $0x60] sm:$0xff]
    %v3804 = vld [vmem:[%s121 + $0x68] sm:$0xff]
    %v3805 = vld [vmem:[%s121 + $0x70] sm:$0xff]
    %v3806 = vld [vmem:[%s121 + $0x78] sm:$0xff]
    %v3807 = vstv %s3790
    %v3808 = vmul.f32 %v3807, %v3791
    %v3809 = vmul.f32 %v3807, %v3792
    %v3810 = vmul.f32 %v3807, %v3793
    %v3811 = vmul.f32 %v3807, %v3794
    %v3812 = vmul.f32 %v3807, %v3795
    %v3813 = vmul.f32 %v3807, %v3796
    %v3814 = vmul.f32 %v3807, %v3797
    %v3815 = vmul.f32 %v3807, %v3798
    %v3816 = vmul.f32 %v3807, %v3799
    %v3817 = vmul.f32 %v3807, %v3800
    %v3818 = vmul.f32 %v3807, %v3801
    %v3819 = vmul.f32 %v3807, %v3802
    %v3820 = vmul.f32 %v3807, %v3803
    %v3821 = vmul.f32 %v3807, %v3804
    %v3822 = vmul.f32 %v3807, %v3805
    %v3823 = vmul.f32 %v3807, %v3806
    %v3824 = vadd.f32 %v3774, %v3808
    %v3825 = vadd.f32 %v3775, %v3809
    %v3826 = vadd.f32 %v3776, %v3810
    %v3827 = vadd.f32 %v3777, %v3811
    %v3828 = vadd.f32 %v3778, %v3812
    %v3829 = vadd.f32 %v3779, %v3813
    %v3830 = vadd.f32 %v3780, %v3814
    %v3831 = vadd.f32 %v3781, %v3815
    %v3832 = vadd.f32 %v3782, %v3816
    %v3833 = vadd.f32 %v3783, %v3817
    %v3834 = vadd.f32 %v3784, %v3818
    %v3835 = vadd.f32 %v3785, %v3819
    %v3836 = vadd.f32 %v3786, %v3820
    %v3837 = vadd.f32 %v3787, %v3821
    %v3838 = vadd.f32 %v3788, %v3822
    %v3839 = vadd.f32 %v3789, %v3823
    %s3840 = sld [smem:[#allocation4 + $0x703]]
    %v3841 = vld [vmem:[%s172] sm:$0xff]
    %v3842 = vld [vmem:[%s172 + $0x8] sm:$0xff]
    %v3843 = vld [vmem:[%s172 + $0x10] sm:$0xff]
    %v3844 = vld [vmem:[%s172 + $0x18] sm:$0xff]
    %v3845 = vld [vmem:[%s172 + $0x20] sm:$0xff]
    %v3846 = vld [vmem:[%s172 + $0x28] sm:$0xff]
    %v3847 = vld [vmem:[%s172 + $0x30] sm:$0xff]
    %v3848 = vld [vmem:[%s172 + $0x38] sm:$0xff]
    %v3849 = vld [vmem:[%s172 + $0x40] sm:$0xff]
    %v3850 = vld [vmem:[%s172 + $0x48] sm:$0xff]
    %v3851 = vld [vmem:[%s172 + $0x50] sm:$0xff]
    %v3852 = vld [vmem:[%s172 + $0x58] sm:$0xff]
    %v3853 = vld [vmem:[%s172 + $0x60] sm:$0xff]
    %v3854 = vld [vmem:[%s172 + $0x68] sm:$0xff]
    %v3855 = vld [vmem:[%s172 + $0x70] sm:$0xff]
    %v3856 = vld [vmem:[%s172 + $0x78] sm:$0xff]
    %v3857 = vstv %s3840
    %v3858 = vmul.f32 %v3857, %v3841
    %v3859 = vmul.f32 %v3857, %v3842
    %v3860 = vmul.f32 %v3857, %v3843
    %v3861 = vmul.f32 %v3857, %v3844
    %v3862 = vmul.f32 %v3857, %v3845
    %v3863 = vmul.f32 %v3857, %v3846
    %v3864 = vmul.f32 %v3857, %v3847
    %v3865 = vmul.f32 %v3857, %v3848
    %v3866 = vmul.f32 %v3857, %v3849
    %v3867 = vmul.f32 %v3857, %v3850
    %v3868 = vmul.f32 %v3857, %v3851
    %v3869 = vmul.f32 %v3857, %v3852
    %v3870 = vmul.f32 %v3857, %v3853
    %v3871 = vmul.f32 %v3857, %v3854
    %v3872 = vmul.f32 %v3857, %v3855
    %v3873 = vmul.f32 %v3857, %v3856
    %v3874 = vadd.f32 %v3824, %v3858
    %v3875 = vadd.f32 %v3825, %v3859
    %v3876 = vadd.f32 %v3826, %v3860
    %v3877 = vadd.f32 %v3827, %v3861
    %v3878 = vadd.f32 %v3828, %v3862
    %v3879 = vadd.f32 %v3829, %v3863
    %v3880 = vadd.f32 %v3830, %v3864
    %v3881 = vadd.f32 %v3831, %v3865
    %v3882 = vadd.f32 %v3832, %v3866
    %v3883 = vadd.f32 %v3833, %v3867
    %v3884 = vadd.f32 %v3834, %v3868
    %v3885 = vadd.f32 %v3835, %v3869
    %v3886 = vadd.f32 %v3836, %v3870
    %v3887 = vadd.f32 %v3837, %v3871
    %v3888 = vadd.f32 %v3838, %v3872
    %v3889 = vadd.f32 %v3839, %v3873
    %s3890 = sld [smem:[#allocation4 + $0x704]]
    %v3891 = vstv %s3890
    %v3892 = vadd.f32 %v3874, %v3891
    %v3893 = vadd.f32 %v3875, %v3891
    %v3894 = vadd.f32 %v3876, %v3891
    %v3895 = vadd.f32 %v3877, %v3891
    %v3896 = vadd.f32 %v3878, %v3891
    %v3897 = vadd.f32 %v3879, %v3891
    %v3898 = vadd.f32 %v3880, %v3891
    %v3899 = vadd.f32 %v3881, %v3891
    %v3900 = vadd.f32 %v3882, %v3891
    %v3901 = vadd.f32 %v3883, %v3891
    %v3902 = vadd.f32 %v3884, %v3891
    %v3903 = vadd.f32 %v3885, %v3891
    %v3904 = vadd.f32 %v3886, %v3891
    %v3905 = vadd.f32 %v3887, %v3891
    %v3906 = vadd.f32 %v3888, %v3891
    %v3907 = vadd.f32 %v3889, %v3891
    %v3908 = vtanh.pop %v3892
    %v3909 = vtanh.pop %v3893
    %v3910 = vtanh.pop %v3894
    %v3911 = vtanh.pop %v3895
    %v3912 = vtanh.pop %v3896
    %v3913 = vtanh.pop %v3897
    %v3914 = vtanh.pop %v3898
    %v3915 = vtanh.pop %v3899
    %v3916 = vtanh.pop %v3900
    %v3917 = vtanh.pop %v3901
    %v3918 = vtanh.pop %v3902
    %v3919 = vtanh.pop %v3903
    %v3920 = vtanh.pop %v3904
    %v3921 = vtanh.pop %v3905
    %v3922 = vtanh.pop %v3906
    %v3923 = vtanh.pop %v3907
    %v3924 = vadd.f32 %v3908, %v3909
    %v3925 = vadd.f32 %v3924, %v3910
    %v3926 = vadd.f32 %v3925, %v3911
    %v3927 = vadd.f32 %v3926, %v3912
    %v3928 = vadd.f32 %v3927, %v3913
    %v3929 = vadd.f32 %v3928, %v3914
    %v3930 = vadd.f32 %v3929, %v3915
    %v3931 = vadd.f32 %v3930, %v3916
    %v3932 = vadd.f32 %v3931, %v3917
    %v3933 = vadd.f32 %v3932, %v3918
    %v3934 = vadd.f32 %v3933, %v3919
    %v3935 = vadd.f32 %v3934, %v3920
    %v3936 = vadd.f32 %v3935, %v3921
    %v3937 = vadd.f32 %v3936, %v3922
    %v3938 = vadd.f32 %v3937, %v3923
    %v3939 = vrot.slane %v3938, 4
    %v3940 = vadd.f32 %v3938, %v3939
    %v3941 = vrot.slane %v3940, 2
    %v3942 = vadd.f32 %v3940, %v3941
    %v3943 = vrot.slane %v3942, 1
    %v3944 = vadd.f32 %v3942, %v3943
    %3945 = vst [vmem:[#allocation2 + $0xe] sm:$0x1] %v3944
    %v3946 = vmax.f32 %v3908, %v3912
    %v3947 = vmax.f32 %v3909, %v3913
    %v3948 = vmax.f32 %v3910, %v3914
    %v3949 = vmax.f32 %v3911, %v3915
    %v3950 = vmax.f32 %v3946, %v3916
    %v3951 = vmax.f32 %v3947, %v3917
    %v3952 = vmax.f32 %v3948, %v3918
    %v3953 = vmax.f32 %v3949, %v3919
    %v3954 = vmax.f32 %v3950, %v3920
    %v3955 = vmax.f32 %v3951, %v3921
    %v3956 = vmax.f32 %v3952, %v3922
    %v3957 = vmax.f32 %v3953, %v3923
    %v3958 = vmax.f32 %v3954, %v3955
    %v3959 = vmax.f32 %v3956, %v3957
    %v3960 = vmax.f32 %v3958, %v3959
    %v3961 = vrot.slane %v3960, 4
    %v3962 = vmax.f32 %v3960, %v3961
    %v3963 = vrot.slane %v3962, 2
    %v3964 = vmax.f32 %v3962, %v3963
    %v3965 = vrot.slane %v3964, 1
    %v3966 = vmax.f32 %v3964, %v3965
    %3967 = vst [vmem:[#allocation3 + $0xe] sm:$0x1] %v3966
    %s3968 = sld [smem:[#allocation4 + $0x780]]
    %v3969 = vld [vmem:[%s0] sm:$0xff]
    %v3970 = vld [vmem:[%s0 + $0x8] sm:$0xff]
    %v3971 = vld [vmem:[%s0 + $0x10] sm:$0xff]
    %v3972 = vld [vmem:[%s0 + $0x18] sm:$0xff]
    %v3973 = vld [vmem:[%s0 + $0x20] sm:$0xff]
    %v3974 = vld [vmem:[%s0 + $0x28] sm:$0xff]
    %v3975 = vld [vmem:[%s0 + $0x30] sm:$0xff]
    %v3976 = vld [vmem:[%s0 + $0x38] sm:$0xff]
    %v3977 = vld [vmem:[%s0 + $0x40] sm:$0xff]
    %v3978 = vld [vmem:[%s0 + $0x48] sm:$0xff]
    %v3979 = vld [vmem:[%s0 + $0x50] sm:$0xff]
    %v3980 = vld [vmem:[%s0 + $0x58] sm:$0xff]
    %v3981 = vld [vmem:[%s0 + $0x60] sm:$0xff]
    %v3982 = vld [vmem:[%s0 + $0x68] sm:$0xff]
    %v3983 = vld [vmem:[%s0 + $0x70] sm:$0xff]
    %v3984 = vld [vmem:[%s0 + $0x78] sm:$0xff]
    %v3985 = vstv %s3968
    %v3986 = vmul.f32 %v3985, %v3969
    %v3987 = vmul.f32 %v3985, %v3970
    %v3988 = vmul.f32 %v3985, %v3971
    %v3989 = vmul.f32 %v3985, %v3972
    %v3990 = vmul.f32 %v3985, %v3973
    %v3991 = vmul.f32 %v3985, %v3974
    %v3992 = vmul.f32 %v3985, %v3975
    %v3993 = vmul.f32 %v3985, %v3976
    %v3994 = vmul.f32 %v3985, %v3977
    %v3995 = vmul.f32 %v3985, %v3978
    %v3996 = vmul.f32 %v3985, %v3979
    %v3997 = vmul.f32 %v3985, %v3980
    %v3998 = vmul.f32 %v3985, %v3981
    %v3999 = vmul.f32 %v3985, %v3982
    %v4000 = vmul.f32 %v3985, %v3983
    %v4001 = vmul.f32 %v3985, %v3984
    %s4002 = sld [smem:[#allocation4 + $0x781]]
    %v4003 = vld [vmem:[%s70] sm:$0xff]
    %v4004 = vld [vmem:[%s70 + $0x8] sm:$0xff]
    %v4005 = vld [vmem:[%s70 + $0x10] sm:$0xff]
    %v4006 = vld [vmem:[%s70 + $0x18] sm:$0xff]
    %v4007 = vld [vmem:[%s70 + $0x20] sm:$0xff]
    %v4008 = vld [vmem:[%s70 + $0x28] sm:$0xff]
    %v4009 = vld [vmem:[%s70 + $0x30] sm:$0xff]
    %v4010 = vld [vmem:[%s70 + $0x38] sm:$0xff]
    %v4011 = vld [vmem:[%s70 + $0x40] sm:$0xff]
    %v4012 = vld [vmem:[%s70 + $0x48] sm:$0xff]
    %v4013 = vld [vmem:[%s70 + $0x50] sm:$0xff]
    %v4014 = vld [vmem:[%s70 + $0x58] sm:$0xff]
    %v4015 = vld [vmem:[%s70 + $0x60] sm:$0xff]
    %v4016 = vld [vmem:[%s70 + $0x68] sm:$0xff]
    %v4017 = vld [vmem:[%s70 + $0x70] sm:$0xff]
    %v4018 = vld [vmem:[%s70 + $0x78] sm:$0xff]
    %v4019 = vstv %s4002
    %v4020 = vmul.f32 %v4019, %v4003
    %v4021 = vmul.f32 %v4019, %v4004
    %v4022 = vmul.f32 %v4019, %v4005
    %v4023 = vmul.f32 %v4019, %v4006
    %v4024 = vmul.f32 %v4019, %v4007
    %v4025 = vmul.f32 %v4019, %v4008
    %v4026 = vmul.f32 %v4019, %v4009
    %v4027 = vmul.f32 %v4019, %v4010
    %v4028 = vmul.f32 %v4019, %v4011
    %v4029 = vmul.f32 %v4019, %v4012
    %v4030 = vmul.f32 %v4019, %v4013
    %v4031 = vmul.f32 %v4019, %v4014
    %v4032 = vmul.f32 %v4019, %v4015
    %v4033 = vmul.f32 %v4019, %v4016
    %v4034 = vmul.f32 %v4019, %v4017
    %v4035 = vmul.f32 %v4019, %v4018
    %v4036 = vadd.f32 %v3986, %v4020
    %v4037 = vadd.f32 %v3987, %v4021
    %v4038 = vadd.f32 %v3988, %v4022
    %v4039 = vadd.f32 %v3989, %v4023
    %v4040 = vadd.f32 %v3990, %v4024
    %v4041 = vadd.f32 %v3991, %v4025
    %v4042 = vadd.f32 %v3992, %v4026
    %v4043 = vadd.f32 %v3993, %v4027
    %v4044 = vadd.f32 %v3994, %v4028
    %v4045 = vadd.f32 %v3995, %v4029
    %v4046 = vadd.f32 %v3996, %v4030
    %v4047 = vadd.f32 %v3997, %v4031
    %v4048 = vadd.f32 %v3998, %v4032
    %v4049 = vadd.f32 %v3999, %v4033
    %v4050 = vadd.f32 %v4000, %v4034
    %v4051 = vadd.f32 %v4001, %v4035
    %s4052 = sld [smem:[#allocation4 + $0x782]]
    %v4053 = vld [vmem:[%s121] sm:$0xff]
    %v4054 = vld [vmem:[%s121 + $0x8] sm:$0xff]
    %v4055 = vld [vmem:[%s121 + $0x10] sm:$0xff]
    %v4056 = vld [vmem:[%s121 + $0x18] sm:$0xff]
    %v4057 = vld [vmem:[%s121 + $0x20] sm:$0xff]
    %v4058 = vld [vmem:[%s121 + $0x28] sm:$0xff]
    %v4059 = vld [vmem:[%s121 + $0x30] sm:$0xff]
    %v4060 = vld [vmem:[%s121 + $0x38] sm:$0xff]
    %v4061 = vld [vmem:[%s121 + $0x40] sm:$0xff]
    %v4062 = vld [vmem:[%s121 + $0x48] sm:$0xff]
    %v4063 = vld [vmem:[%s121 + $0x50] sm:$0xff]
    %v4064 = vld [vmem:[%s121 + $0x58] sm:$0xff]
    %v4065 = vld [vmem:[%s121 + $0x60] sm:$0xff]
    %v4066 = vld [vmem:[%s121 + $0x68] sm:$0xff]
    %v4067 = vld [vmem:[%s121 + $0x70] sm:$0xff]
    %v4068 = vld [vmem:[%s121 + $0x78] sm:$0xff]
    %v4069 = vstv %s4052
    %v4070 = vmul.f32 %v4069, %v4053
    %v4071 = vmul.f32 %v4069, %v4054
    %v4072 = vmul.f32 %v4069, %v4055
    %v4073 = vmul.f32 %v4069, %v4056
    %v4074 = vmul.f32 %v4069, %v4057
    %v4075 = vmul.f32 %v4069, %v4058
    %v4076 = vmul.f32 %v4069, %v4059
    %v4077 = vmul.f32 %v4069, %v4060
    %v4078 = vmul.f32 %v4069, %v4061
    %v4079 = vmul.f32 %v4069, %v4062
    %v4080 = vmul.f32 %v4069, %v4063
    %v4081 = vmul.f32 %v4069, %v4064
    %v4082 = vmul.f32 %v4069, %v4065
    %v4083 = vmul.f32 %v4069, %v4066
    %v4084 = vmul.f32 %v4069, %v4067
    %v4085 = vmul.f32 %v4069, %v4068
    %v4086 = vadd.f32 %v4036, %v4070
    %v4087 = vadd.f32 %v4037, %v4071
    %v4088 = vadd.f32 %v4038, %v4072
    %v4089 = vadd.f32 %v4039, %v4073
    %v4090 = vadd.f32 %v4040, %v4074
    %v4091 = vadd.f32 %v4041, %v4075
    %v4092 = vadd.f32 %v4042, %v4076
    %v4093 = vadd.f32 %v4043, %v4077
    %v4094 = vadd.f32 %v4044, %v4078
    %v4095 = vadd.f32 %v4045, %v4079
    %v4096 = vadd.f32 %v4046, %v4080
    %v4097 = vadd.f32 %v4047, %v4081
    %v4098 = vadd.f32 %v4048, %v4082
    %v4099 = vadd.f32 %v4049, %v4083
    %v4100 = vadd.f32 %v4050, %v4084
    %v4101 = vadd.f32 %v4051, %v4085
    %s4102 = sld [smem:[#allocation4 + $0x783]]
    %v4103 = vld [vmem:[%s172] sm:$0xff]
    %v4104 = vld [vmem:[%s172 + $0x8] sm:$0xff]
    %v4105 = vld [vmem:[%s172 + $0x10] sm:$0xff]
    %v4106 = vld [vmem:[%s172 + $0x18] sm:$0xff]
    %v4107 = vld [vmem:[%s172 + $0x20] sm:$0xff]
    %v4108 = vld [vmem:[%s172 + $0x28] sm:$0xff]
    %v4109 = vld [vmem:[%s172 + $0x30] sm:$0xff]
    %v4110 = vld [vmem:[%s172 + $0x38] sm:$0xff]
    %v4111 = vld [vmem:[%s172 + $0x40] sm:$0xff]
    %v4112 = vld [vmem:[%s172 + $0x48] sm:$0xff]
    %v4113 = vld [vmem:[%s172 + $0x50] sm:$0xff]
    %v4114 = vld [vmem:[%s172 + $0x58] sm:$0xff]
    %v4115 = vld [vmem:[%s172 + $0x60] sm:$0xff]
    %v4116 = vld [vmem:[%s172 + $0x68] sm:$0xff]
    %v4117 = vld [vmem:[%s172 + $0x70] sm:$0xff]
    %v4118 = vld [vmem:[%s172 + $0x78] sm:$0xff]
    %v4119 = vstv %s4102
    %v4120 = vmul.f32 %v4119, %v4103
    %v4121 = vmul.f32 %v4119, %v4104
    %v4122 = vmul.f32 %v4119, %v4105
    %v4123 = vmul.f32 %v4119, %v4106
    %v4124 = vmul.f32 %v4119, %v4107
    %v4125 = vmul.f32 %v4119, %v4108
    %v4126 = vmul.f32 %v4119, %v4109
    %v4127 = vmul.f32 %v4119, %v4110
    %v4128 = vmul.f32 %v4119, %v4111
    %v4129 = vmul.f32 %v4119, %v4112
    %v4130 = vmul.f32 %v4119, %v4113
    %v4131 = vmul.f32 %v4119, %v4114
    %v4132 = vmul.f32 %v4119, %v4115
    %v4133 = vmul.f32 %v4119, %v4116
    %v4134 = vmul.f32 %v4119, %v4117
    %v4135 = vmul.f32 %v4119, %v4118
    %v4136 = vadd.f32 %v4086, %v4120
    %v4137 = vadd.f32 %v4087, %v4121
    %v4138 = vadd.f32 %v4088, %v4122
    %v4139 = vadd.f32 %v4089, %v4123
    %v4140 = vadd.f32 %v4090, %v4124
    %v4141 = vadd.f32 %v4091, %v4125
    %v4142 = vadd.f32 %v4092, %v4126
    %v4143 = vadd.f32 %v4093, %v4127
    %v4144 = vadd.f32 %v4094, %v4128
    %v4145 = vadd.f32 %v4095, %v4129
    %v4146 = vadd.f32 %v4096, %v4130
    %v4147 = vadd.f32 %v4097, %v4131
    %v4148 = vadd.f32 %v4098, %v4132
    %v4149 = vadd.f32 %v4099, %v4133
    %v4150 = vadd.f32 %v4100, %v4134
    %v4151 = vadd.f32 %v4101, %v4135
    %s4152 = sld [smem:[#allocation4 + $0x784]]
    %v4153 = vstv %s4152
    %v4154 = vadd.f32 %v4136, %v4153
    %v4155 = vadd.f32 %v4137, %v4153
    %v4156 = vadd.f32 %v4138, %v4153
    %v4157 = vadd.f32 %v4139, %v4153
    %v4158 = vadd.f32 %v4140, %v4153
    %v4159 = vadd.f32 %v4141, %v4153
    %v4160 = vadd.f32 %v4142, %v4153
    %v4161 = vadd.f32 %v4143, %v4153
    %v4162 = vadd.f32 %v4144, %v4153
    %v4163 = vadd.f32 %v4145, %v4153
    %v4164 = vadd.f32 %v4146, %v4153
    %v4165 = vadd.f32 %v4147, %v4153
    %v4166 = vadd.f32 %v4148, %v4153
    %v4167 = vadd.f32 %v4149, %v4153
    %v4168 = vadd.f32 %v4150, %v4153
    %v4169 = vadd.f32 %v4151, %v4153
    %v4170 = vtanh.pop %v4154
    %v4171 = vtanh.pop %v4155
    %v4172 = vtanh.pop %v4156
    %v4173 = vtanh.pop %v4157
    %v4174 = vtanh.pop %v4158
    %v4175 = vtanh.pop %v4159
    %v4176 = vtanh.pop %v4160
    %v4177 = vtanh.pop %v4161
    %v4178 = vtanh.pop %v4162
    %v4179 = vtanh.pop %v4163
    %v4180 = vtanh.pop %v4164
    %v4181 = vtanh.pop %v4165
    %v4182 = vtanh.pop %v4166
    %v4183 = vtanh.pop %v4167
    %v4184 = vtanh.pop %v4168
    %v4185 = vtanh.pop %v4169
    %v4186 = vadd.f32 %v4170, %v4171
    %v4187 = vadd.f32 %v4186, %v4172
    %v4188 = vadd.f32 %v4187, %v4173
    %v4189 = vadd.f32 %v4188, %v4174
    %v4190 = vadd.f32 %v4189, %v4175
    %v4191 = vadd.f32 %v4190, %v4176
    %v4192 = vadd.f32 %v4191, %v4177
    %v4193 = vadd.f32 %v4192, %v4178
    %v4194 = vadd.f32 %v4193, %v4179
    %v4195 = vadd.f32 %v4194, %v4180
    %v4196 = vadd.f32 %v4195, %v4181
    %v4197 = vadd.f32 %v4196, %v4182
    %v4198 = vadd.f32 %v4197, %v4183
    %v4199 = vadd.f32 %v4198, %v4184
    %v4200 = vadd.f32 %v4199, %v4185
    %v4201 = vrot.slane %v4200, 4
    %v4202 = vadd.f32 %v4200, %v4201
    %v4203 = vrot.slane %v4202, 2
    %v4204 = vadd.f32 %v4202, %v4203
    %v4205 = vrot.slane %v4204, 1
    %v4206 = vadd.f32 %v4204, %v4205
    %4207 = vst [vmem:[#allocation2 + $0xf] sm:$0x1] %v4206
    %v4208 = vmax.f32 %v4170, %v4174
    %v4209 = vmax.f32 %v4171, %v4175
    %v4210 = vmax.f32 %v4172, %v4176
    %v4211 = vmax.f32 %v4173, %v4177
    %v4212 = vmax.f32 %v4208, %v4178
    %v4213 = vmax.f32 %v4209, %v4179
    %v4214 = vmax.f32 %v4210, %v4180
    %v4215 = vmax.f32 %v4211, %v4181
    %v4216 = vmax.f32 %v4212, %v4182
    %v4217 = vmax.f32 %v4213, %v4183
    %v4218 = vmax.f32 %v4214, %v4184
    %v4219 = vmax.f32 %v4215, %v4185
    %v4220 = vmax.f32 %v4216, %v4217
    %v4221 = vmax.f32 %v4218, %v4219
    %v4222 = vmax.f32 %v4220, %v4221
    %v4223 = vrot.slane %v4222, 4
    %v4224 = vmax.f32 %v4222, %v4223
    %v4225 = vrot.slane %v4224, 2
    %v4226 = vmax.f32 %v4224, %v4225
    %v4227 = vrot.slane %v4226, 1
    %v4228 = vmax.f32 %v4226, %v4227
    %4229 = vst [vmem:[#allocation3 + $0xf] sm:$0x1] %v4228
    %v4230 = vld [vmem:[#allocation2] sm:$0xff]
    %v4231 = vld [vmem:[#allocation2 + $0x8] sm:$0xff]
    %v4232 = vld [vmem:[#allocation3] sm:$0xff]
    %v4233 = vld [vmem:[#allocation3 + $0x8] sm:$0xff]
    %v4234 = vld [vmem:[%s4] sm:$0xff]
    %v4235 = vld [vmem:[%s4 + $0x8] sm:$0xff]
    %v4236 = vld [vmem:[%s2] sm:$0xff]
    %v4237 = vld [vmem:[%s2 + $0x8] sm:$0xff]
    %4239 = vset.pattern.permute.xlu0 0
    %4240 = vperm.xlu0 %4239, %v4234
    %v4241 = vpop.permute.xlu0 %4240
    %4244 = vset.pattern.permute.xlu0 0
    %4245 = vperm.xlu0 %4244, %v4235
    %v4246 = vpop.permute.xlu0 %4245
    %vm4248 = vcmask 130048
    %v4250 = vsel %vm4248, %v4236, 0
    %v4253 = vsel %vm4248, %v4237, 0
    %4255 = vmatpush.msra.mxu0 0.0
    %4256 = vmatpush.msra.mxu0 0.0
    %4257 = vmatpush.msra.mxu0 0.0
    %4258 = vmatpush.msra.mxu0 0.0
    %4259 = vmatpush.msra.mxu0 0.0
    %4260 = vmatpush.msra.mxu0 0.0
    %4261 = vmatpush.msra.mxu0 0.0
    %4262 = vmatpush.msra.mxu0 0.0
    %4263 = vmatpush.msra.mxu0 0.0
    %4264 = vmatpush.msra.mxu0 0.0
    %4265 = vmatpush.msra.mxu0 0.0
    %4266 = vmatpush.msra.mxu0 0.0
    %4267 = vmatpush.msra.mxu0 0.0
    %4268 = vmatpush.msra.mxu0 0.0
    %4269 = vmatpush.msra.mxu0 %v4231
    %4270 = vmatpush.msra.mxu0 %v4230
    %4271 = vmatmul.f32.gmra.mxu0 %v4250
    %v4272 = vpop.f32.mrf.mxu0
    %v4273 = vadd.f32 %v4241, %v4272
    %4274 = vmatmul.f32.gmra.mxu0 %v4253
    %v4275 = vpop.f32.mrf.mxu0
    %v4276 = vadd.f32 %v4246, %v4275
    %4277 = vdwg.mxu0
    %v4278 = vmax.f32 %v4273, %v4276
    %v4279 = vrot.slane %v4278, 4
    %v4280 = vmax.f32 %v4278, %v4279
    %v4281 = vrot.slane %v4280, 2
    %v4282 = vmax.f32 %v4280, %v4281
    %v4283 = vrot.slane %v4282, 1
    %v4284 = vmax.f32 %v4282, %v4283
    %v4285 = vsub.f32 %v4273, %v4284
    %v4286 = vsub.f32 %v4276, %v4284
    %v4287 = vmul.f32 %v4285, 1.442695
    %v4288 = vpow.pop %v4287
    %v4289 = vmul.f32 %v4286, 1.442695
    %v4290 = vpow.pop %v4289
    %v4291 = vadd.f32 %v4288, %v4290
    %v4292 = vrot.slane %v4291, 4
    %v4293 = vadd.f32 %v4291, %v4292
    %v4294 = vrot.slane %v4293, 2
    %v4295 = vadd.f32 %v4293, %v4294
    %v4296 = vrot.slane %v4295, 1
    %v4297 = vadd.f32 %v4295, %v4296
    %v4298 = vrcp.pop %v4297
    %v4299 = vmul.f32 %v4288, %v4298
    %v4300 = vmul.f32 %v4290, %v4298
    %v4301 = vadd.f32 %v4232, 1.0
    %v4302 = vadd.f32 %v4233, 1.0
    %v4303 = vmul.f32 %v4299, %v4301
    %v4304 = vmul.f32 %v4300, %v4302
    %v4305 = vld [vmem:[%s4 + $0x10] sm:$0xff]
    %v4306 = vld [vmem:[%s4 + $0x18] sm:$0xff]
    %v4307 = vld [vmem:[%s4 + $0x20] sm:$0xff]
    %v4308 = vld [vmem:[%s4 + $0x28] sm:$0xff]
    %v4309 = vld [vmem:[%s4 + $0x30] sm:$0xff]
    %v4310 = vld [vmem:[%s4 + $0x38] sm:$0xff]
    %v4311 = vld [vmem:[%s4 + $0x40] sm:$0xff]
    %v4312 = vld [vmem:[%s4 + $0x48] sm:$0xff]
    %v4313 = vld [vmem:[%s4 + $0x50] sm:$0xff]
    %v4314 = vld [vmem:[%s4 + $0x58] sm:$0xff]
    %v4315 = vld [vmem:[%s4 + $0x60] sm:$0xff]
    %v4316 = vld [vmem:[%s4 + $0x68] sm:$0xff]
    %v4317 = vld [vmem:[%s3] sm:$0xff]
    %v4318 = vld [vmem:[%s3 + $0x8] sm:$0xff]
    %v4319 = vld [vmem:[%s3 + $0x10] sm:$0xff]
    %v4320 = vld [vmem:[%s3 + $0x18] sm:$0xff]
    %v4321 = vld [vmem:[%s3 + $0x20] sm:$0xff]
    %v4322 = vld [vmem:[%s3 + $0x28] sm:$0xff]
    %v4323 = vld [vmem:[%s3 + $0x30] sm:$0xff]
    %v4324 = vld [vmem:[%s3 + $0x38] sm:$0xff]
    %v4325 = vld [vmem:[%s3 + $0x40] sm:$0xff]
    %v4326 = vld [vmem:[%s3 + $0x48] sm:$0xff]
    %v4327 = vld [vmem:[%s3 + $0x50] sm:$0xff]
    %v4328 = vld [vmem:[%s3 + $0x58] sm:$0xff]
    %4330 = vset.pattern.permute.xlu0 0
    %4331 = vperm.xlu0 %4330, %v4305
    %v4332 = vpop.permute.xlu0 %4331
    %4335 = vset.pattern.permute.xlu0 0
    %4336 = vperm.xlu0 %4335, %v4306
    %v4337 = vpop.permute.xlu0 %4336
    %4340 = vset.pattern.permute.xlu0 0
    %4341 = vperm.xlu0 %4340, %v4307
    %v4342 = vpop.permute.xlu0 %4341
    %4345 = vset.pattern.permute.xlu0 0
    %4346 = vperm.xlu0 %4345, %v4308
    %v4347 = vpop.permute.xlu0 %4346
    %4350 = vset.pattern.permute.xlu0 0
    %4351 = vperm.xlu0 %4350, %v4309
    %v4352 = vpop.permute.xlu0 %4351
    %4355 = vset.pattern.permute.xlu0 0
    %4356 = vperm.xlu0 %4355, %v4310
    %v4357 = vpop.permute.xlu0 %4356
    %4360 = vset.pattern.permute.xlu0 0
    %4361 = vperm.xlu0 %4360, %v4311
    %v4362 = vpop.permute.xlu0 %4361
    %4365 = vset.pattern.permute.xlu0 0
    %4366 = vperm.xlu0 %4365, %v4312
    %v4367 = vpop.permute.xlu0 %4366
    %4370 = vset.pattern.permute.xlu0 0
    %4371 = vperm.xlu0 %4370, %v4313
    %v4372 = vpop.permute.xlu0 %4371
    %4375 = vset.pattern.permute.xlu0 0
    %4376 = vperm.xlu0 %4375, %v4314
    %v4377 = vpop.permute.xlu0 %4376
    %4380 = vset.pattern.permute.xlu0 0
    %4381 = vperm.xlu0 %4380, %v4315
    %v4382 = vpop.permute.xlu0 %4381
    %4385 = vset.pattern.permute.xlu0 0
    %4386 = vperm.xlu0 %4385, %v4316
    %v4387 = vpop.permute.xlu0 %4386
    %v4390 = vsel %vm4248, %v4317, 0
    %v4393 = vsel %vm4248, %v4318, 0
    %v4396 = vsel %vm4248, %v4319, 0
    %v4399 = vsel %vm4248, %v4320, 0
    %v4402 = vsel %vm4248, %v4321, 0
    %v4405 = vsel %vm4248, %v4322, 0
    %v4408 = vsel %vm4248, %v4323, 0
    %v4411 = vsel %vm4248, %v4324, 0
    %v4414 = vsel %vm4248, %v4325, 0
    %v4417 = vsel %vm4248, %v4326, 0
    %v4420 = vsel %vm4248, %v4327, 0
    %v4423 = vsel %vm4248, %v4328, 0
    %4425 = vmatpush.msra.mxu0 0.0
    %4426 = vmatpush.msra.mxu0 0.0
    %4427 = vmatpush.msra.mxu0 0.0
    %4428 = vmatpush.msra.mxu0 0.0
    %4429 = vmatpush.msra.mxu0 0.0
    %4430 = vmatpush.msra.mxu0 0.0
    %4431 = vmatpush.msra.mxu0 0.0
    %4432 = vmatpush.msra.mxu0 0.0
    %4433 = vmatpush.msra.mxu0 0.0
    %4434 = vmatpush.msra.mxu0 0.0
    %4435 = vmatpush.msra.mxu0 0.0
    %4436 = vmatpush.msra.mxu0 0.0
    %4437 = vmatpush.msra.mxu0 0.0
    %4438 = vmatpush.msra.mxu0 0.0
    %4439 = vmatpush.msra.mxu0 %v4304
    %4440 = vmatpush.msra.mxu0 %v4303
    %4441 = vmatmul.f32.gmra.mxu0 %v4390
    %v4442 = vpop.f32.mrf.mxu0
    %v4443 = vadd.f32 %v4332, %v4442
    %4444 = vmatmul.f32.gmra.mxu0 %v4393
    %v4445 = vpop.f32.mrf.mxu0
    %v4446 = vadd.f32 %v4337, %v4445
    %4447 = vmatmul.f32.gmra.mxu0 %v4396
    %v4448 = vpop.f32.mrf.mxu0
    %v4449 = vadd.f32 %v4342, %v4448
    %4450 = vmatmul.f32.gmra.mxu0 %v4399
    %v4451 = vpop.f32.mrf.mxu0
    %v4452 = vadd.f32 %v4347, %v4451
    %4453 = vmatmul.f32.gmra.mxu0 %v4402
    %v4454 = vpop.f32.mrf.mxu0
    %v4455 = vadd.f32 %v4352, %v4454
    %4456 = vmatmul.f32.gmra.mxu0 %v4405
    %v4457 = vpop.f32.mrf.mxu0
    %v4458 = vadd.f32 %v4357, %v4457
    %4459 = vmatmul.f32.gmra.mxu0 %v4408
    %v4460 = vpop.f32.mrf.mxu0
    %v4461 = vadd.f32 %v4362, %v4460
    %4462 = vmatmul.f32.gmra.mxu0 %v4411
    %v4463 = vpop.f32.mrf.mxu0
    %v4464 = vadd.f32 %v4367, %v4463
    %4465 = vmatmul.f32.gmra.mxu0 %v4414
    %v4466 = vpop.f32.mrf.mxu0
    %v4467 = vadd.f32 %v4372, %v4466
    %4468 = vmatmul.f32.gmra.mxu0 %v4417
    %v4469 = vpop.f32.mrf.mxu0
    %v4470 = vadd.f32 %v4377, %v4469
    %4471 = vmatmul.f32.gmra.mxu0 %v4420
    %v4472 = vpop.f32.mrf.mxu0
    %v4473 = vadd.f32 %v4382, %v4472
    %4474 = vmatmul.f32.gmra.mxu0 %v4423
    %v4475 = vpop.f32.mrf.mxu0
    %v4476 = vadd.f32 %v4387, %v4475
    %4477 = vdwg.mxu0
    %v4478 = vmul.f32 %v4443, 0.5
    %v4479 = vmul.f32 %v4446, 0.5
    %v4480 = vmul.f32 %v4449, 0.5
    %v4481 = vmul.f32 %v4452, 0.5
    %v4482 = vtanh.pop %v4478
    %v4483 = vtanh.pop %v4479
    %v4484 = vtanh.pop %v4480
    %v4485 = vtanh.pop %v4481
    %v4486 = vmul.f32 %v4482, 0.5
    %v4487 = vmul.f32 %v4483, 0.5
    %v4488 = vmul.f32 %v4484, 0.5
    %v4489 = vmul.f32 %v4485, 0.5
    %v4490 = vadd.f32 %v4486, 0.5
    %v4491 = vadd.f32 %v4487, 0.5
    %v4492 = vadd.f32 %v4488, 0.5
    %v4493 = vadd.f32 %v4489, 0.5
    %v4494 = vtanh.pop %v4455
    %v4495 = vtanh.pop %v4458
    %v4496 = vtanh.pop %v4461
    %v4497 = vtanh.pop %v4464
    %v4498 = vmul.f32 %v4467, 0.5
    %v4499 = vmul.f32 %v4470, 0.5
    %v4500 = vmul.f32 %v4473, 0.5
    %v4501 = vmul.f32 %v4476, 0.5
    %v4502 = vtanh.pop %v4498
    %v4503 = vtanh.pop %v4499
    %v4504 = vtanh.pop %v4500
    %v4505 = vtanh.pop %v4501
    %v4506 = vmul.f32 %v4502, 0.5
    %v4507 = vmul.f32 %v4503, 0.5
    %v4508 = vmul.f32 %v4504, 0.5
    %v4509 = vmul.f32 %v4505, 0.5
    %v4510 = vadd.f32 %v4506, 0.5
    %v4511 = vadd.f32 %v4507, 0.5
    %v4512 = vadd.f32 %v4508, 0.5
    %v4513 = vadd.f32 %v4509, 0.5
    %v4514 = vmul.f32 %v4490, %v4494
    %v4515 = vmul.f32 %v4491, %v4495
    %v4516 = vmul.f32 %v4492, %v4496
    %v4517 = vmul.f32 %v4493, %v4497
    %v4518 = vtanh.pop %v4514
    %v4519 = vtanh.pop %v4515
    %v4520 = vtanh.pop %v4516
    %v4521 = vtanh.pop %v4517
    %v4522 = vmul.f32 %v4510, %v4518
    %v4523 = vmul.f32 %v4511, %v4519
    %v4524 = vmul.f32 %v4512, %v4520
    %v4525 = vmul.f32 %v4513, %v4521
    %v4526 = vtanh.pop %v4522
    %v4527 = vtanh.pop %v4523
    %v4528 = vtanh.pop %v4524
    %v4529 = vtanh.pop %v4525
    %v4530 = vld [vmem:[%s4 + $0x70] sm:$0xff]
    %v4531 = vld [vmem:[%s4 + $0x78] sm:$0xff]
    %v4532 = vld [vmem:[%s4 + $0x80] sm:$0xff]
    %v4533 = vld [vmem:[%s4 + $0x88] sm:$0xff]
    %v4534 = vld [vmem:[%s4 + $0x90] sm:$0x1]
    %4536 = vset.pattern.permute.xlu0 0
    %4537 = vperm.xlu0 %4536, %v4530
    %v4538 = vpop.permute.xlu0 %4537
    %4541 = vset.pattern.permute.xlu0 0
    %4542 = vperm.xlu0 %4541, %v4531
    %v4543 = vpop.permute.xlu0 %4542
    %4546 = vset.pattern.permute.xlu0 0
    %4547 = vperm.xlu0 %4546, %v4532
    %v4548 = vpop.permute.xlu0 %4547
    %4551 = vset.pattern.permute.xlu0 0
    %4552 = vperm.xlu0 %4551, %v4533
    %v4553 = vpop.permute.xlu0 %4552
    %v4555 = vmul.f32 %v4538, %v4526
    %v4556 = vmul.f32 %v4543, %v4527
    %v4557 = vmul.f32 %v4548, %v4528
    %v4558 = vmul.f32 %v4553, %v4529
    %v4559 = vadd.f32 %v4555, %v4556
    %v4560 = vadd.f32 %v4559, %v4557
    %v4561 = vadd.f32 %v4560, %v4558
    %v4562 = vrot.slane %v4561, 4
    %v4563 = vadd.f32 %v4561, %v4562
    %v4564 = vrot.slane %v4563, 2
    %v4565 = vadd.f32 %v4563, %v4564
    %v4566 = vrot.slane %v4565, 1
    %v4567 = vadd.f32 %v4565, %v4566
    %4569 = vset.pattern.permute.xlu0 0
    %4570 = vperm.xlu0 %4569, %v4534
    %v4571 = vpop.permute.xlu0 %4570
    %v4573 = vadd.f32 %v4567, %v4571
    %v4574 = vtanh.pop %v4573
    %4575 = vst [vmem:[%s5] sm:$0x1] %v4574
    // Predicated region
    $region26: #{cnn_lstm_forward.1} parent=1 // pred_check
      _
    $region27: #{cnn_lstm_forward.1} parent=1 // pred_check_branch
      %4577 = sbr.rel (0) target = $region29
    $region28: #{cnn_lstm_forward.1} parent=1 // pred_region
      _
    $region29: #{cnn_lstm_forward.1} parent=1 // pred_fallthru
      _
    // Predicated region
    $region30: #{cnn_lstm_forward.1} parent=1 // pred_check
      _
    $region31: #{cnn_lstm_forward.1} parent=1 // pred_check_branch
      %4579 = sbr.rel (0) target = $region33
    $region32: #{cnn_lstm_forward.1} parent=1 // pred_region
      _
    $region33: #{cnn_lstm_forward.1} parent=1 // pred_fallthru
      _
    %4580 = vsyncpa [#allocation5], 1

</llo_original>
